<compile_context>
chip_gen: v6e
topology: v6e:2x2x1
jax: 0.10.0
libtpu: 0.0.40
codegen_flags: <defaults>
</compile_context>

<pallas_src>
import functools

import jax
import jax.numpy as jnp
from jax.experimental import pallas as pl
from jax.experimental.pallas import tpu as pltpu


# ----------------------------------------------------------------------------
# Packed parameter-vector layout (all slots 128-lane aligned).
# ----------------------------------------------------------------------------
def _round_up(n, m):
    return ((n + m - 1) // m) * m


def _vec_layout(H):
    """128-lane-aligned slots for every 1-row parameter vector (one fused ref)."""
    H2 = 2 * H
    widths = (
        ("bg", 8 * H),                        # fused LSTM bias (i|f|g|o, each [cpu|mem])
        ("g1", H2), ("be1", H2),              # BatchNorm(hidden) gamma/beta, both branches
        ("b1", 2 * 512), ("g2", 2 * 512), ("be2", 2 * 512),
        ("b2", 2 * 128), ("g3", 2 * 128), ("be3", 2 * 128),
        ("b3", 128),                          # final bias, zero-padded to a full 128 lanes
    )
    layout, off = {}, 0
    for name, w in widths:
        layout[name] = (off, w)
        off += _round_up(w, 128)
    return layout, off


# ----------------------------------------------------------------------------
# Fused kernel body.
# ----------------------------------------------------------------------------
def _batchnorm(x, gamma, beta, eps=1e-5):
    # BatchNorm1d training-mode batch statistics, biased variance.
    mean = jnp.mean(x, axis=0, keepdims=True)
    diff = x - mean
    var = jnp.mean(diff * diff, axis=0, keepdims=True)
    return diff * (gamma * jax.lax.rsqrt(var + eps)) + beta


def _fused_kernel(x_ref, wih_ref, whh_ref, w1_ref, w2_ref, w3_ref, vec_ref,
                  out_ref, *, T, B, H, layout):
    H2 = 2 * H  # cpu & mem hidden states live side-by-side along the lane dim

    def vp(name):  # static, 128-aligned lane slice of the packed param vector
        off, w = layout[name]
        return vec_ref[:, off:off + w]

    # Hoisted input projection for all time steps & both branches:
    #   (T*B, D) @ (D, 8H) + (1, 8H)   (bias folded in, one lane-dense matmul)
    xproj = jnp.dot(x_ref[...], wih_ref[...],
                    preferred_element_type=jnp.float32) + vp("bg")

    whh = whh_ref[...]                      # (2H, 8H), block-diag over branches

    h = jnp.zeros((B, H2), jnp.float32)     # [h_cpu | h_mem]
    c = jnp.zeros((B, H2), jnp.float32)     # [c_cpu | c_mem]

    # Recurrence: fully unrolled, one fused matmul per step.
    # Gate column layout: gate-major, branch-minor -> i|f|g|o, each [cpu|mem].
    for t in range(T):
        gates = xproj[t * B:(t + 1) * B, :] + jnp.dot(
            h, whh, preferred_element_type=jnp.float32)          # (B, 8H)
        i = jax.nn.sigmoid(gates[:, 0 * H2:1 * H2])
        f = jax.nn.sigmoid(gates[:, 1 * H2:2 * H2])
        g = jnp.tanh(gates[:, 2 * H2:3 * H2])
        o = jax.nn.sigmoid(gates[:, 3 * H2:4 * H2])
        c = f * c + i * g
        h = o * jnp.tanh(c)

    # Heads (cpu & mem fused along the feature dim with block-diagonal Linears).
    x1 = _batchnorm(jnp.maximum(h, 0.0), vp("g1"), vp("be1"))              # (B, 2H)
    x1 = jnp.dot(x1, w1_ref[...], preferred_element_type=jnp.float32) + vp("b1")
    x2 = _batchnorm(jnp.maximum(x1, 0.0), vp("g2"), vp("be2"))             # (B, 1024)
    x2 = jnp.dot(x2, w2_ref[...], preferred_element_type=jnp.float32) + vp("b2")
    x3 = _batchnorm(jnp.maximum(x2, 0.0), vp("g3"), vp("be3"))             # (B, 256)
    y = jnp.dot(x3, w3_ref[...], preferred_element_type=jnp.float32) + vp("b3")
    # Lane-dense (B, 128) store; cols 0,1 = |cpu_out|, |mem_out|, rest are zeros.
    out_ref[...] = jnp.abs(y)


# ----------------------------------------------------------------------------
# Wrapper: single pallas_call, no grid (everything fits in VMEM, <2 MiB).
# ----------------------------------------------------------------------------
@jax.jit
def utilization_lstm_forward(x_btd, fused):
    """x_btd: (B, T, input_size) float32 -> (B, 2) float32."""
    B, T, D = x_btd.shape
    H = fused["whh"].shape[0] // 2
    layout, _ = _vec_layout(H)
    # batch_first -> time-major, flattened to (T*B, D) for the hoisted projection.
    x2d = jnp.transpose(x_btd, (1, 0, 2)).reshape(T * B, D).astype(jnp.float32)

    args = (x2d, fused["wih"], fused["whh"], fused["w1"], fused["w2"],
            fused["w3"], fused["vec"])

    kernel = functools.partial(_fused_kernel, T=T, B=B, H=H, layout=layout)
    out = pl.pallas_call(
        kernel,
        out_shape=jax.ShapeDtypeStruct((B, 128), jnp.float32),
        in_specs=[pl.BlockSpec(memory_space=pltpu.MemorySpace.VMEM)] * len(args),
        out_specs=pl.BlockSpec(memory_space=pltpu.MemorySpace.VMEM),
    )(*args)
    # Columns >= 2 are zero padding (lane-dense store).
    # output[(num_layers-1)*B:] is a no-op for num_layers=1.
    return out[:, :2]


# ----------------------------------------------------------------------------
# Parameter construction (deterministic, mimics PyTorch init scales).
# ----------------------------------------------------------------------------
def _uniform(key, shape, scale):
    return jax.random.uniform(key, shape, jnp.float32, -scale, scale)


def init_lstm_params(key, input_size, hidden_size):
    """PyTorch nn.LSTM layout, re-laid per gate as (in, out)."""
    k1, k2, k3, k4 = jax.random.split(key, 4)
    s = 1.0 / float(hidden_size) ** 0.5
    w_ih = _uniform(k1, (4 * hidden_size, input_size), s)    # (4H, D)
    w_hh = _uniform(k2, (4 * hidden_size, hidden_size), s)   # (4H, H)
    b_ih = _uniform(k3, (4 * hidden_size,), s)
    b_hh = _uniform(k4, (4 * hidden_size,), s)
    wih = jnp.transpose(w_ih.reshape(4, hidden_size, input_size), (0, 2, 1))   # (4, D, H)
    whh = jnp.transpose(w_hh.reshape(4, hidden_size, hidden_size), (0, 2, 1))  # (4, H, H)
    b = (b_ih + b_hh).reshape(4, hidden_size)                                  # (4, H)
    return {"wih": wih, "whh": whh, "b": b}


def init_head_params(key, hidden_size):
    ks = jax.random.split(key, 6)
    s1 = 1.0 / float(hidden_size) ** 0.5
    s2 = 1.0 / float(512) ** 0.5
    s3 = 1.0 / float(128) ** 0.5
    return {
        # BatchNorm1d defaults: gamma=1, beta=0.
        "g1": jnp.ones((1, hidden_size), jnp.float32), "be1": jnp.zeros((1, hidden_size), jnp.float32),
        "g2": jnp.ones((1, 512), jnp.float32),         "be2": jnp.zeros((1, 512), jnp.float32),
        "g3": jnp.ones((1, 128), jnp.float32),         "be3": jnp.zeros((1, 128), jnp.float32),
        # Linear weights stored transposed: (in, out).
        "w1": _uniform(ks[0], (hidden_size, 512), s1), "b1": _uniform(ks[1], (1, 512), s1),
        "w2": _uniform(ks[2], (512, 128), s2),         "b2": _uniform(ks[3], (1, 128), s2),
        "w3": _uniform(ks[4], (128, 1), s3),           "b3": _uniform(ks[5], (1, 1), s3),
    }


def _block_diag(a, b):
    m, n = a.shape
    p, q = b.shape
    top = jnp.concatenate([a, jnp.zeros((m, q), a.dtype)], axis=1)
    bot = jnp.concatenate([jnp.zeros((p, n), b.dtype), b], axis=1)
    return jnp.concatenate([top, bot], axis=0)


def fuse_params(cpu_lstm, mem_lstm, cpu_head, mem_head):
    """One-time host-side re-layout: fuse gates & branches into lane-dense mats,
    pack all 1-row vectors into a single 128-aligned parameter vector."""
    D = cpu_lstm["wih"].shape[1]
    H = cpu_lstm["whh"].shape[1]
    layout, total = _vec_layout(H)

    wih = jnp.stack([cpu_lstm["wih"], mem_lstm["wih"]], axis=0)   # (2, 4, D, H)
    whh = jnp.stack([cpu_lstm["whh"], mem_lstm["whh"]], axis=0)   # (2, 4, H, H)
    b = jnp.stack([cpu_lstm["b"], mem_lstm["b"]], axis=0)         # (2, 4, H)

    # Column order: col = gate*2H + branch*H + h  (matches h = [h_cpu | h_mem]).
    wih_cat = jnp.transpose(wih, (2, 1, 0, 3)).reshape(D, 8 * H)          # (D, 8H)
    b_cat = jnp.transpose(b, (1, 0, 2)).reshape(1, 8 * H)                 # (1, 8H)
    eye2 = jnp.eye(2, dtype=jnp.float32)
    # blk[b_in, h_in, gate, b_out, h_out] = whh[b_in, gate, h_in, h_out] * I[b_in, b_out]
    whh_blk = jnp.einsum('bghi,bc->bhgci', whh, eye2).reshape(2 * H, 8 * H)  # (2H, 8H)

    def cat1(k):
        return jnp.concatenate([cpu_head[k], mem_head[k]], axis=1)

    # Final Linear zero-padded from (256, 2) to (256, 128) for a lane-dense store.
    w3_bd = _block_diag(cpu_head["w3"], mem_head["w3"])                   # (256, 2)
    w3 = jnp.zeros((w3_bd.shape[0], 128), jnp.float32).at[:, :w3_bd.shape[1]].set(w3_bd)

    pieces = {
        "bg": b_cat,
        "g1": cat1("g1"), "be1": cat1("be1"), "b1": cat1("b1"),
        "g2": cat1("g2"), "be2": cat1("be2"), "b2": cat1("b2"),
        "g3": cat1("g3"), "be3": cat1("be3"), "b3": cat1("b3"),
    }
    vec = jnp.zeros((1, total), jnp.float32)
    for name, arr in pieces.items():
        off, _ = layout[name]
        vec = vec.at[:, off:off + arr.shape[1]].set(arr.astype(jnp.float32))

    return {
        "wih": wih_cat, "whh": whh_blk,
        "w1": _block_diag(cpu_head["w1"], mem_head["w1"]),
        "w2": _block_diag(cpu_head["w2"], mem_head["w2"]),
        "w3": w3,
        "vec": vec,
    }


if __name__ == "__main__":
    # Module config: num_classes=2 (unused in forward), input_size=4, hidden=32,
    # num_layers=1, generalization='batch', lstm_mode='full'.
    B, T, D, H = 2, 8, 4, 32

    key = jax.random.PRNGKey(0)
    kx, k_cpu_lstm, k_mem_lstm, k_cpu_head, k_mem_head = jax.random.split(key, 5)

    x = jax.random.normal(kx, (B, T, D), jnp.float32)

    fused = fuse_params(
        init_lstm_params(k_cpu_lstm, D, H),
        init_lstm_params(k_mem_lstm, D, H),
        init_head_params(k_cpu_head, H),
        init_head_params(k_mem_head, H),
    )

    out = utilization_lstm_forward(x, fused)
    out = jax.block_until_ready(out)
    assert out.shape == (B, 2), out.shape
    assert bool(jnp.all(jnp.isfinite(out)))
    print("KERNEL_OK")
</pallas_src>

<mosaic_0001>
module attributes {stable_mosaic.version = 11 : i64} {
  func.func @_fused_kernel(%arg0: memref<16x4xf32, #tpu.memory_space<vmem>>, %arg1: memref<4x256xf32, #tpu.memory_space<vmem>>, %arg2: memref<64x256xf32, #tpu.memory_space<vmem>>, %arg3: memref<64x1024xf32, #tpu.memory_space<vmem>>, %arg4: memref<1024x256xf32, #tpu.memory_space<vmem>>, %arg5: memref<256x128xf32, #tpu.memory_space<vmem>>, %arg6: memref<1x4480xf32, #tpu.memory_space<vmem>>, %arg7: memref<2x128xf32, #tpu.memory_space<vmem>>) attributes {dimension_semantics = [], scalar_prefetch = 0 : i64, scratch_operands = 0 : i64, tpu.core_type = #tpu.core_type<tc>} {
    %c0 = arith.constant 0 : index
    %c0_0 = arith.constant 0 : index
    %0 = vector.load %arg0[%c0, %c0_0] : memref<16x4xf32, #tpu.memory_space<vmem>>, vector<16x4xf32>
    %c0_1 = arith.constant 0 : index
    %c0_2 = arith.constant 0 : index
    %1 = vector.load %arg1[%c0_1, %c0_2] : memref<4x256xf32, #tpu.memory_space<vmem>>, vector<4x256xf32>
    %cst = arith.constant dense<0.000000e+00> : vector<16x256xf32>
    %2 = tpu.matmul %0, %1, %cst {dimension_numbers = #tpu.dot_dimension_numbers<[1], [0], [0], [1], [0, 0, 1, 1], [], []>} : vector<16x4xf32>, vector<4x256xf32>, vector<16x256xf32> -> vector<16x256xf32>
    %c0_3 = arith.constant 0 : index
    %c0_4 = arith.constant 0 : index
    %3 = vector.load %arg6[%c0_3, %c0_4] : memref<1x4480xf32, #tpu.memory_space<vmem>>, vector<1x256xf32>
    %4 = vector.broadcast %3 : vector<1x256xf32> to vector<16x256xf32>
    %5 = arith.addf %2, %4 : vector<16x256xf32>
    %c0_5 = arith.constant 0 : index
    %c0_6 = arith.constant 0 : index
    %6 = vector.load %arg2[%c0_5, %c0_6] : memref<64x256xf32, #tpu.memory_space<vmem>>, vector<64x256xf32>
    %cst_7 = arith.constant 0.000000e+00 : f32
    %7 = vector.broadcast %cst_7 : f32 to vector<2x64xf32>
    %cst_8 = arith.constant 0.000000e+00 : f32
    %8 = vector.broadcast %cst_8 : f32 to vector<2x64xf32>
    %9 = vector.extract_strided_slice %5 {offsets = [0, 0], sizes = [2, 256], strides = [1, 1]} : vector<16x256xf32> to vector<2x256xf32>
    %cst_9 = arith.constant dense<0.000000e+00> : vector<2x256xf32>
    %10 = tpu.matmul %7, %6, %cst_9 {dimension_numbers = #tpu.dot_dimension_numbers<[1], [0], [0], [1], [0, 0, 1, 1], [], []>} : vector<2x64xf32>, vector<64x256xf32>, vector<2x256xf32> -> vector<2x256xf32>
    %11 = arith.addf %9, %10 : vector<2x256xf32>
    %12 = vector.extract_strided_slice %11 {offsets = [0, 0], sizes = [2, 64], strides = [1, 1]} : vector<2x256xf32> to vector<2x64xf32>
    %13 = arith.negf %12 : vector<2x64xf32>
    %14 = math.exp %13 : vector<2x64xf32>
    %cst_10 = arith.constant 1.000000e+00 : f32
    %15 = vector.broadcast %cst_10 : f32 to vector<2x64xf32>
    %16 = arith.addf %15, %14 : vector<2x64xf32>
    %17 = arith.divf %15, %16 : vector<2x64xf32>
    %18 = vector.extract_strided_slice %11 {offsets = [0, 64], sizes = [2, 64], strides = [1, 1]} : vector<2x256xf32> to vector<2x64xf32>
    %19 = arith.negf %18 : vector<2x64xf32>
    %20 = math.exp %19 : vector<2x64xf32>
    %cst_11 = arith.constant 1.000000e+00 : f32
    %21 = vector.broadcast %cst_11 : f32 to vector<2x64xf32>
    %22 = arith.addf %21, %20 : vector<2x64xf32>
    %23 = arith.divf %21, %22 : vector<2x64xf32>
    %24 = vector.extract_strided_slice %11 {offsets = [0, 128], sizes = [2, 64], strides = [1, 1]} : vector<2x256xf32> to vector<2x64xf32>
    %25 = math.tanh %24 : vector<2x64xf32>
    %26 = vector.extract_strided_slice %11 {offsets = [0, 192], sizes = [2, 64], strides = [1, 1]} : vector<2x256xf32> to vector<2x64xf32>
    %27 = arith.negf %26 : vector<2x64xf32>
    %28 = math.exp %27 : vector<2x64xf32>
    %cst_12 = arith.constant 1.000000e+00 : f32
    %29 = vector.broadcast %cst_12 : f32 to vector<2x64xf32>
    %30 = arith.addf %29, %28 : vector<2x64xf32>
    %31 = arith.divf %29, %30 : vector<2x64xf32>
    %32 = arith.mulf %23, %8 : vector<2x64xf32>
    %33 = arith.mulf %17, %25 : vector<2x64xf32>
    %34 = arith.addf %32, %33 : vector<2x64xf32>
    %35 = math.tanh %34 : vector<2x64xf32>
    %36 = arith.mulf %31, %35 : vector<2x64xf32>
    %37 = vector.extract_strided_slice %5 {offsets = [2, 0], sizes = [2, 256], strides = [1, 1]} : vector<16x256xf32> to vector<2x256xf32>
    %cst_13 = arith.constant dense<0.000000e+00> : vector<2x256xf32>
    %38 = tpu.matmul %36, %6, %cst_13 {dimension_numbers = #tpu.dot_dimension_numbers<[1], [0], [0], [1], [0, 0, 1, 1], [], []>} : vector<2x64xf32>, vector<64x256xf32>, vector<2x256xf32> -> vector<2x256xf32>
    %39 = arith.addf %37, %38 : vector<2x256xf32>
    %40 = vector.extract_strided_slice %39 {offsets = [0, 0], sizes = [2, 64], strides = [1, 1]} : vector<2x256xf32> to vector<2x64xf32>
    %41 = arith.negf %40 : vector<2x64xf32>
    %42 = math.exp %41 : vector<2x64xf32>
    %cst_14 = arith.constant 1.000000e+00 : f32
    %43 = vector.broadcast %cst_14 : f32 to vector<2x64xf32>
    %44 = arith.addf %43, %42 : vector<2x64xf32>
    %45 = arith.divf %43, %44 : vector<2x64xf32>
    %46 = vector.extract_strided_slice %39 {offsets = [0, 64], sizes = [2, 64], strides = [1, 1]} : vector<2x256xf32> to vector<2x64xf32>
    %47 = arith.negf %46 : vector<2x64xf32>
    %48 = math.exp %47 : vector<2x64xf32>
    %cst_15 = arith.constant 1.000000e+00 : f32
    %49 = vector.broadcast %cst_15 : f32 to vector<2x64xf32>
    %50 = arith.addf %49, %48 : vector<2x64xf32>
    %51 = arith.divf %49, %50 : vector<2x64xf32>
    %52 = vector.extract_strided_slice %39 {offsets = [0, 128], sizes = [2, 64], strides = [1, 1]} : vector<2x256xf32> to vector<2x64xf32>
    %53 = math.tanh %52 : vector<2x64xf32>
    %54 = vector.extract_strided_slice %39 {offsets = [0, 192], sizes = [2, 64], strides = [1, 1]} : vector<2x256xf32> to vector<2x64xf32>
    %55 = arith.negf %54 : vector<2x64xf32>
    %56 = math.exp %55 : vector<2x64xf32>
    %cst_16 = arith.constant 1.000000e+00 : f32
    %57 = vector.broadcast %cst_16 : f32 to vector<2x64xf32>
    %58 = arith.addf %57, %56 : vector<2x64xf32>
    %59 = arith.divf %57, %58 : vector<2x64xf32>
    %60 = arith.mulf %51, %34 : vector<2x64xf32>
    %61 = arith.mulf %45, %53 : vector<2x64xf32>
    %62 = arith.addf %60, %61 : vector<2x64xf32>
    %63 = math.tanh %62 : vector<2x64xf32>
    %64 = arith.mulf %59, %63 : vector<2x64xf32>
    %65 = vector.extract_strided_slice %5 {offsets = [4, 0], sizes = [2, 256], strides = [1, 1]} : vector<16x256xf32> to vector<2x256xf32>
    %cst_17 = arith.constant dense<0.000000e+00> : vector<2x256xf32>
    %66 = tpu.matmul %64, %6, %cst_17 {dimension_numbers = #tpu.dot_dimension_numbers<[1], [0], [0], [1], [0, 0, 1, 1], [], []>} : vector<2x64xf32>, vector<64x256xf32>, vector<2x256xf32> -> vector<2x256xf32>
    %67 = arith.addf %65, %66 : vector<2x256xf32>
    %68 = vector.extract_strided_slice %67 {offsets = [0, 0], sizes = [2, 64], strides = [1, 1]} : vector<2x256xf32> to vector<2x64xf32>
    %69 = arith.negf %68 : vector<2x64xf32>
    %70 = math.exp %69 : vector<2x64xf32>
    %cst_18 = arith.constant 1.000000e+00 : f32
    %71 = vector.broadcast %cst_18 : f32 to vector<2x64xf32>
    %72 = arith.addf %71, %70 : vector<2x64xf32>
    %73 = arith.divf %71, %72 : vector<2x64xf32>
    %74 = vector.extract_strided_slice %67 {offsets = [0, 64], sizes = [2, 64], strides = [1, 1]} : vector<2x256xf32> to vector<2x64xf32>
    %75 = arith.negf %74 : vector<2x64xf32>
    %76 = math.exp %75 : vector<2x64xf32>
    %cst_19 = arith.constant 1.000000e+00 : f32
    %77 = vector.broadcast %cst_19 : f32 to vector<2x64xf32>
    %78 = arith.addf %77, %76 : vector<2x64xf32>
    %79 = arith.divf %77, %78 : vector<2x64xf32>
    %80 = vector.extract_strided_slice %67 {offsets = [0, 128], sizes = [2, 64], strides = [1, 1]} : vector<2x256xf32> to vector<2x64xf32>
    %81 = math.tanh %80 : vector<2x64xf32>
    %82 = vector.extract_strided_slice %67 {offsets = [0, 192], sizes = [2, 64], strides = [1, 1]} : vector<2x256xf32> to vector<2x64xf32>
    %83 = arith.negf %82 : vector<2x64xf32>
    %84 = math.exp %83 : vector<2x64xf32>
    %cst_20 = arith.constant 1.000000e+00 : f32
    %85 = vector.broadcast %cst_20 : f32 to vector<2x64xf32>
    %86 = arith.addf %85, %84 : vector<2x64xf32>
    %87 = arith.divf %85, %86 : vector<2x64xf32>
    %88 = arith.mulf %79, %62 : vector<2x64xf32>
    %89 = arith.mulf %73, %81 : vector<2x64xf32>
    %90 = arith.addf %88, %89 : vector<2x64xf32>
    %91 = math.tanh %90 : vector<2x64xf32>
    %92 = arith.mulf %87, %91 : vector<2x64xf32>
    %93 = vector.extract_strided_slice %5 {offsets = [6, 0], sizes = [2, 256], strides = [1, 1]} : vector<16x256xf32> to vector<2x256xf32>
    %cst_21 = arith.constant dense<0.000000e+00> : vector<2x256xf32>
    %94 = tpu.matmul %92, %6, %cst_21 {dimension_numbers = #tpu.dot_dimension_numbers<[1], [0], [0], [1], [0, 0, 1, 1], [], []>} : vector<2x64xf32>, vector<64x256xf32>, vector<2x256xf32> -> vector<2x256xf32>
    %95 = arith.addf %93, %94 : vector<2x256xf32>
    %96 = vector.extract_strided_slice %95 {offsets = [0, 0], sizes = [2, 64], strides = [1, 1]} : vector<2x256xf32> to vector<2x64xf32>
    %97 = arith.negf %96 : vector<2x64xf32>
    %98 = math.exp %97 : vector<2x64xf32>
    %cst_22 = arith.constant 1.000000e+00 : f32
    %99 = vector.broadcast %cst_22 : f32 to vector<2x64xf32>
    %100 = arith.addf %99, %98 : vector<2x64xf32>
    %101 = arith.divf %99, %100 : vector<2x64xf32>
    %102 = vector.extract_strided_slice %95 {offsets = [0, 64], sizes = [2, 64], strides = [1, 1]} : vector<2x256xf32> to vector<2x64xf32>
    %103 = arith.negf %102 : vector<2x64xf32>
    %104 = math.exp %103 : vector<2x64xf32>
    %cst_23 = arith.constant 1.000000e+00 : f32
    %105 = vector.broadcast %cst_23 : f32 to vector<2x64xf32>
    %106 = arith.addf %105, %104 : vector<2x64xf32>
    %107 = arith.divf %105, %106 : vector<2x64xf32>
    %108 = vector.extract_strided_slice %95 {offsets = [0, 128], sizes = [2, 64], strides = [1, 1]} : vector<2x256xf32> to vector<2x64xf32>
    %109 = math.tanh %108 : vector<2x64xf32>
    %110 = vector.extract_strided_slice %95 {offsets = [0, 192], sizes = [2, 64], strides = [1, 1]} : vector<2x256xf32> to vector<2x64xf32>
    %111 = arith.negf %110 : vector<2x64xf32>
    %112 = math.exp %111 : vector<2x64xf32>
    %cst_24 = arith.constant 1.000000e+00 : f32
    %113 = vector.broadcast %cst_24 : f32 to vector<2x64xf32>
    %114 = arith.addf %113, %112 : vector<2x64xf32>
    %115 = arith.divf %113, %114 : vector<2x64xf32>
    %116 = arith.mulf %107, %90 : vector<2x64xf32>
    %117 = arith.mulf %101, %109 : vector<2x64xf32>
    %118 = arith.addf %116, %117 : vector<2x64xf32>
    %119 = math.tanh %118 : vector<2x64xf32>
    %120 = arith.mulf %115, %119 : vector<2x64xf32>
    %121 = vector.extract_strided_slice %5 {offsets = [8, 0], sizes = [2, 256], strides = [1, 1]} : vector<16x256xf32> to vector<2x256xf32>
    %cst_25 = arith.constant dense<0.000000e+00> : vector<2x256xf32>
    %122 = tpu.matmul %120, %6, %cst_25 {dimension_numbers = #tpu.dot_dimension_numbers<[1], [0], [0], [1], [0, 0, 1, 1], [], []>} : vector<2x64xf32>, vector<64x256xf32>, vector<2x256xf32> -> vector<2x256xf32>
    %123 = arith.addf %121, %122 : vector<2x256xf32>
    %124 = vector.extract_strided_slice %123 {offsets = [0, 0], sizes = [2, 64], strides = [1, 1]} : vector<2x256xf32> to vector<2x64xf32>
    %125 = arith.negf %124 : vector<2x64xf32>
    %126 = math.exp %125 : vector<2x64xf32>
    %cst_26 = arith.constant 1.000000e+00 : f32
    %127 = vector.broadcast %cst_26 : f32 to vector<2x64xf32>
    %128 = arith.addf %127, %126 : vector<2x64xf32>
    %129 = arith.divf %127, %128 : vector<2x64xf32>
    %130 = vector.extract_strided_slice %123 {offsets = [0, 64], sizes = [2, 64], strides = [1, 1]} : vector<2x256xf32> to vector<2x64xf32>
    %131 = arith.negf %130 : vector<2x64xf32>
    %132 = math.exp %131 : vector<2x64xf32>
    %cst_27 = arith.constant 1.000000e+00 : f32
    %133 = vector.broadcast %cst_27 : f32 to vector<2x64xf32>
    %134 = arith.addf %133, %132 : vector<2x64xf32>
    %135 = arith.divf %133, %134 : vector<2x64xf32>
    %136 = vector.extract_strided_slice %123 {offsets = [0, 128], sizes = [2, 64], strides = [1, 1]} : vector<2x256xf32> to vector<2x64xf32>
    %137 = math.tanh %136 : vector<2x64xf32>
    %138 = vector.extract_strided_slice %123 {offsets = [0, 192], sizes = [2, 64], strides = [1, 1]} : vector<2x256xf32> to vector<2x64xf32>
    %139 = arith.negf %138 : vector<2x64xf32>
    %140 = math.exp %139 : vector<2x64xf32>
    %cst_28 = arith.constant 1.000000e+00 : f32
    %141 = vector.broadcast %cst_28 : f32 to vector<2x64xf32>
    %142 = arith.addf %141, %140 : vector<2x64xf32>
    %143 = arith.divf %141, %142 : vector<2x64xf32>
    %144 = arith.mulf %135, %118 : vector<2x64xf32>
    %145 = arith.mulf %129, %137 : vector<2x64xf32>
    %146 = arith.addf %144, %145 : vector<2x64xf32>
    %147 = math.tanh %146 : vector<2x64xf32>
    %148 = arith.mulf %143, %147 : vector<2x64xf32>
    %149 = vector.extract_strided_slice %5 {offsets = [10, 0], sizes = [2, 256], strides = [1, 1]} : vector<16x256xf32> to vector<2x256xf32>
    %cst_29 = arith.constant dense<0.000000e+00> : vector<2x256xf32>
    %150 = tpu.matmul %148, %6, %cst_29 {dimension_numbers = #tpu.dot_dimension_numbers<[1], [0], [0], [1], [0, 0, 1, 1], [], []>} : vector<2x64xf32>, vector<64x256xf32>, vector<2x256xf32> -> vector<2x256xf32>
    %151 = arith.addf %149, %150 : vector<2x256xf32>
    %152 = vector.extract_strided_slice %151 {offsets = [0, 0], sizes = [2, 64], strides = [1, 1]} : vector<2x256xf32> to vector<2x64xf32>
    %153 = arith.negf %152 : vector<2x64xf32>
    %154 = math.exp %153 : vector<2x64xf32>
    %cst_30 = arith.constant 1.000000e+00 : f32
    %155 = vector.broadcast %cst_30 : f32 to vector<2x64xf32>
    %156 = arith.addf %155, %154 : vector<2x64xf32>
    %157 = arith.divf %155, %156 : vector<2x64xf32>
    %158 = vector.extract_strided_slice %151 {offsets = [0, 64], sizes = [2, 64], strides = [1, 1]} : vector<2x256xf32> to vector<2x64xf32>
    %159 = arith.negf %158 : vector<2x64xf32>
    %160 = math.exp %159 : vector<2x64xf32>
    %cst_31 = arith.constant 1.000000e+00 : f32
    %161 = vector.broadcast %cst_31 : f32 to vector<2x64xf32>
    %162 = arith.addf %161, %160 : vector<2x64xf32>
    %163 = arith.divf %161, %162 : vector<2x64xf32>
    %164 = vector.extract_strided_slice %151 {offsets = [0, 128], sizes = [2, 64], strides = [1, 1]} : vector<2x256xf32> to vector<2x64xf32>
    %165 = math.tanh %164 : vector<2x64xf32>
    %166 = vector.extract_strided_slice %151 {offsets = [0, 192], sizes = [2, 64], strides = [1, 1]} : vector<2x256xf32> to vector<2x64xf32>
    %167 = arith.negf %166 : vector<2x64xf32>
    %168 = math.exp %167 : vector<2x64xf32>
    %cst_32 = arith.constant 1.000000e+00 : f32
    %169 = vector.broadcast %cst_32 : f32 to vector<2x64xf32>
    %170 = arith.addf %169, %168 : vector<2x64xf32>
    %171 = arith.divf %169, %170 : vector<2x64xf32>
    %172 = arith.mulf %163, %146 : vector<2x64xf32>
    %173 = arith.mulf %157, %165 : vector<2x64xf32>
    %174 = arith.addf %172, %173 : vector<2x64xf32>
    %175 = math.tanh %174 : vector<2x64xf32>
    %176 = arith.mulf %171, %175 : vector<2x64xf32>
    %177 = vector.extract_strided_slice %5 {offsets = [12, 0], sizes = [2, 256], strides = [1, 1]} : vector<16x256xf32> to vector<2x256xf32>
    %cst_33 = arith.constant dense<0.000000e+00> : vector<2x256xf32>
    %178 = tpu.matmul %176, %6, %cst_33 {dimension_numbers = #tpu.dot_dimension_numbers<[1], [0], [0], [1], [0, 0, 1, 1], [], []>} : vector<2x64xf32>, vector<64x256xf32>, vector<2x256xf32> -> vector<2x256xf32>
    %179 = arith.addf %177, %178 : vector<2x256xf32>
    %180 = vector.extract_strided_slice %179 {offsets = [0, 0], sizes = [2, 64], strides = [1, 1]} : vector<2x256xf32> to vector<2x64xf32>
    %181 = arith.negf %180 : vector<2x64xf32>
    %182 = math.exp %181 : vector<2x64xf32>
    %cst_34 = arith.constant 1.000000e+00 : f32
    %183 = vector.broadcast %cst_34 : f32 to vector<2x64xf32>
    %184 = arith.addf %183, %182 : vector<2x64xf32>
    %185 = arith.divf %183, %184 : vector<2x64xf32>
    %186 = vector.extract_strided_slice %179 {offsets = [0, 64], sizes = [2, 64], strides = [1, 1]} : vector<2x256xf32> to vector<2x64xf32>
    %187 = arith.negf %186 : vector<2x64xf32>
    %188 = math.exp %187 : vector<2x64xf32>
    %cst_35 = arith.constant 1.000000e+00 : f32
    %189 = vector.broadcast %cst_35 : f32 to vector<2x64xf32>
    %190 = arith.addf %189, %188 : vector<2x64xf32>
    %191 = arith.divf %189, %190 : vector<2x64xf32>
    %192 = vector.extract_strided_slice %179 {offsets = [0, 128], sizes = [2, 64], strides = [1, 1]} : vector<2x256xf32> to vector<2x64xf32>
    %193 = math.tanh %192 : vector<2x64xf32>
    %194 = vector.extract_strided_slice %179 {offsets = [0, 192], sizes = [2, 64], strides = [1, 1]} : vector<2x256xf32> to vector<2x64xf32>
    %195 = arith.negf %194 : vector<2x64xf32>
    %196 = math.exp %195 : vector<2x64xf32>
    %cst_36 = arith.constant 1.000000e+00 : f32
    %197 = vector.broadcast %cst_36 : f32 to vector<2x64xf32>
    %198 = arith.addf %197, %196 : vector<2x64xf32>
    %199 = arith.divf %197, %198 : vector<2x64xf32>
    %200 = arith.mulf %191, %174 : vector<2x64xf32>
    %201 = arith.mulf %185, %193 : vector<2x64xf32>
    %202 = arith.addf %200, %201 : vector<2x64xf32>
    %203 = math.tanh %202 : vector<2x64xf32>
    %204 = arith.mulf %199, %203 : vector<2x64xf32>
    %205 = vector.extract_strided_slice %5 {offsets = [14, 0], sizes = [2, 256], strides = [1, 1]} : vector<16x256xf32> to vector<2x256xf32>
    %cst_37 = arith.constant dense<0.000000e+00> : vector<2x256xf32>
    %206 = tpu.matmul %204, %6, %cst_37 {dimension_numbers = #tpu.dot_dimension_numbers<[1], [0], [0], [1], [0, 0, 1, 1], [], []>} : vector<2x64xf32>, vector<64x256xf32>, vector<2x256xf32> -> vector<2x256xf32>
    %207 = arith.addf %205, %206 : vector<2x256xf32>
    %208 = vector.extract_strided_slice %207 {offsets = [0, 0], sizes = [2, 64], strides = [1, 1]} : vector<2x256xf32> to vector<2x64xf32>
    %209 = arith.negf %208 : vector<2x64xf32>
    %210 = math.exp %209 : vector<2x64xf32>
    %cst_38 = arith.constant 1.000000e+00 : f32
    %211 = vector.broadcast %cst_38 : f32 to vector<2x64xf32>
    %212 = arith.addf %211, %210 : vector<2x64xf32>
    %213 = arith.divf %211, %212 : vector<2x64xf32>
    %214 = vector.extract_strided_slice %207 {offsets = [0, 64], sizes = [2, 64], strides = [1, 1]} : vector<2x256xf32> to vector<2x64xf32>
    %215 = arith.negf %214 : vector<2x64xf32>
    %216 = math.exp %215 : vector<2x64xf32>
    %cst_39 = arith.constant 1.000000e+00 : f32
    %217 = vector.broadcast %cst_39 : f32 to vector<2x64xf32>
    %218 = arith.addf %217, %216 : vector<2x64xf32>
    %219 = arith.divf %217, %218 : vector<2x64xf32>
    %220 = vector.extract_strided_slice %207 {offsets = [0, 128], sizes = [2, 64], strides = [1, 1]} : vector<2x256xf32> to vector<2x64xf32>
    %221 = math.tanh %220 : vector<2x64xf32>
    %222 = vector.extract_strided_slice %207 {offsets = [0, 192], sizes = [2, 64], strides = [1, 1]} : vector<2x256xf32> to vector<2x64xf32>
    %223 = arith.negf %222 : vector<2x64xf32>
    %224 = math.exp %223 : vector<2x64xf32>
    %cst_40 = arith.constant 1.000000e+00 : f32
    %225 = vector.broadcast %cst_40 : f32 to vector<2x64xf32>
    %226 = arith.addf %225, %224 : vector<2x64xf32>
    %227 = arith.divf %225, %226 : vector<2x64xf32>
    %228 = arith.mulf %219, %202 : vector<2x64xf32>
    %229 = arith.mulf %213, %221 : vector<2x64xf32>
    %230 = arith.addf %228, %229 : vector<2x64xf32>
    %231 = math.tanh %230 : vector<2x64xf32>
    %232 = arith.mulf %227, %231 : vector<2x64xf32>
    %cst_41 = arith.constant 0.000000e+00 : f32
    %233 = vector.broadcast %cst_41 : f32 to vector<2x64xf32>
    %234 = arith.maximumf %232, %233 : vector<2x64xf32>
    %c0_42 = arith.constant 0 : index
    %c256 = arith.constant 256 : index
    %235 = vector.load %arg6[%c0_42, %c256] : memref<1x4480xf32, #tpu.memory_space<vmem>>, vector<1x64xf32>
    %c0_43 = arith.constant 0 : index
    %c384 = arith.constant 384 : index
    %236 = vector.load %arg6[%c0_43, %c384] : memref<1x4480xf32, #tpu.memory_space<vmem>>, vector<1x64xf32>
    %cst_44 = arith.constant dense<0.000000e+00> : vector<64xf32>
    %237 = vector.multi_reduction <add>, %234, %cst_44 [0] : vector<2x64xf32> to vector<64xf32>
    %238 = vector.shape_cast %237 : vector<64xf32> to vector<1x64xf32>
    %cst_45 = arith.constant 2.000000e+00 : f32
    %239 = vector.broadcast %cst_45 : f32 to vector<1x64xf32>
    %240 = arith.divf %238, %239 : vector<1x64xf32>
    %241 = vector.broadcast %240 : vector<1x64xf32> to vector<2x64xf32>
    %242 = arith.subf %234, %241 : vector<2x64xf32>
    %243 = arith.mulf %242, %242 : vector<2x64xf32>
    %cst_46 = arith.constant dense<0.000000e+00> : vector<64xf32>
    %244 = vector.multi_reduction <add>, %243, %cst_46 [0] : vector<2x64xf32> to vector<64xf32>
    %245 = vector.shape_cast %244 : vector<64xf32> to vector<1x64xf32>
    %cst_47 = arith.constant 2.000000e+00 : f32
    %246 = vector.broadcast %cst_47 : f32 to vector<1x64xf32>
    %247 = arith.divf %245, %246 : vector<1x64xf32>
    %cst_48 = arith.constant 9.99999974E-6 : f32
    %248 = vector.broadcast %cst_48 : f32 to vector<1x64xf32>
    %249 = arith.addf %247, %248 : vector<1x64xf32>
    %250 = math.rsqrt %249 : vector<1x64xf32>
    %251 = arith.mulf %235, %250 : vector<1x64xf32>
    %252 = vector.broadcast %251 : vector<1x64xf32> to vector<2x64xf32>
    %253 = arith.mulf %242, %252 : vector<2x64xf32>
    %254 = vector.broadcast %236 : vector<1x64xf32> to vector<2x64xf32>
    %255 = arith.addf %253, %254 : vector<2x64xf32>
    %c0_49 = arith.constant 0 : index
    %c0_50 = arith.constant 0 : index
    %256 = vector.load %arg3[%c0_49, %c0_50] : memref<64x1024xf32, #tpu.memory_space<vmem>>, vector<64x1024xf32>
    %cst_51 = arith.constant dense<0.000000e+00> : vector<2x1024xf32>
    %257 = tpu.matmul %255, %256, %cst_51 {dimension_numbers = #tpu.dot_dimension_numbers<[1], [0], [0], [1], [0, 0, 1, 1], [], []>} : vector<2x64xf32>, vector<64x1024xf32>, vector<2x1024xf32> -> vector<2x1024xf32>
    %c0_52 = arith.constant 0 : index
    %c512 = arith.constant 512 : index
    %258 = vector.load %arg6[%c0_52, %c512] : memref<1x4480xf32, #tpu.memory_space<vmem>>, vector<1x1024xf32>
    %259 = vector.broadcast %258 : vector<1x1024xf32> to vector<2x1024xf32>
    %260 = arith.addf %257, %259 : vector<2x1024xf32>
    %cst_53 = arith.constant 0.000000e+00 : f32
    %261 = vector.broadcast %cst_53 : f32 to vector<2x1024xf32>
    %262 = arith.maximumf %260, %261 : vector<2x1024xf32>
    %c0_54 = arith.constant 0 : index
    %c1536 = arith.constant 1536 : index
    %263 = vector.load %arg6[%c0_54, %c1536] : memref<1x4480xf32, #tpu.memory_space<vmem>>, vector<1x1024xf32>
    %c0_55 = arith.constant 0 : index
    %c2560 = arith.constant 2560 : index
    %264 = vector.load %arg6[%c0_55, %c2560] : memref<1x4480xf32, #tpu.memory_space<vmem>>, vector<1x1024xf32>
    %cst_56 = arith.constant dense<0.000000e+00> : vector<1024xf32>
    %265 = vector.multi_reduction <add>, %262, %cst_56 [0] : vector<2x1024xf32> to vector<1024xf32>
    %266 = vector.shape_cast %265 : vector<1024xf32> to vector<1x1024xf32>
    %cst_57 = arith.constant 2.000000e+00 : f32
    %267 = vector.broadcast %cst_57 : f32 to vector<1x1024xf32>
    %268 = arith.divf %266, %267 : vector<1x1024xf32>
    %269 = vector.broadcast %268 : vector<1x1024xf32> to vector<2x1024xf32>
    %270 = arith.subf %262, %269 : vector<2x1024xf32>
    %271 = arith.mulf %270, %270 : vector<2x1024xf32>
    %cst_58 = arith.constant dense<0.000000e+00> : vector<1024xf32>
    %272 = vector.multi_reduction <add>, %271, %cst_58 [0] : vector<2x1024xf32> to vector<1024xf32>
    %273 = vector.shape_cast %272 : vector<1024xf32> to vector<1x1024xf32>
    %cst_59 = arith.constant 2.000000e+00 : f32
    %274 = vector.broadcast %cst_59 : f32 to vector<1x1024xf32>
    %275 = arith.divf %273, %274 : vector<1x1024xf32>
    %cst_60 = arith.constant 9.99999974E-6 : f32
    %276 = vector.broadcast %cst_60 : f32 to vector<1x1024xf32>
    %277 = arith.addf %275, %276 : vector<1x1024xf32>
    %278 = math.rsqrt %277 : vector<1x1024xf32>
    %279 = arith.mulf %263, %278 : vector<1x1024xf32>
    %280 = vector.broadcast %279 : vector<1x1024xf32> to vector<2x1024xf32>
    %281 = arith.mulf %270, %280 : vector<2x1024xf32>
    %282 = vector.broadcast %264 : vector<1x1024xf32> to vector<2x1024xf32>
    %283 = arith.addf %281, %282 : vector<2x1024xf32>
    %c0_61 = arith.constant 0 : index
    %c0_62 = arith.constant 0 : index
    %284 = vector.load %arg4[%c0_61, %c0_62] : memref<1024x256xf32, #tpu.memory_space<vmem>>, vector<1024x256xf32>
    %cst_63 = arith.constant dense<0.000000e+00> : vector<2x256xf32>
    %285 = tpu.matmul %283, %284, %cst_63 {dimension_numbers = #tpu.dot_dimension_numbers<[1], [0], [0], [1], [0, 0, 1, 1], [], []>} : vector<2x1024xf32>, vector<1024x256xf32>, vector<2x256xf32> -> vector<2x256xf32>
    %c0_64 = arith.constant 0 : index
    %c3584 = arith.constant 3584 : index
    %286 = vector.load %arg6[%c0_64, %c3584] : memref<1x4480xf32, #tpu.memory_space<vmem>>, vector<1x256xf32>
    %287 = vector.broadcast %286 : vector<1x256xf32> to vector<2x256xf32>
    %288 = arith.addf %285, %287 : vector<2x256xf32>
    %cst_65 = arith.constant 0.000000e+00 : f32
    %289 = vector.broadcast %cst_65 : f32 to vector<2x256xf32>
    %290 = arith.maximumf %288, %289 : vector<2x256xf32>
    %c0_66 = arith.constant 0 : index
    %c3840 = arith.constant 3840 : index
    %291 = vector.load %arg6[%c0_66, %c3840] : memref<1x4480xf32, #tpu.memory_space<vmem>>, vector<1x256xf32>
    %c0_67 = arith.constant 0 : index
    %c4096 = arith.constant 4096 : index
    %292 = vector.load %arg6[%c0_67, %c4096] : memref<1x4480xf32, #tpu.memory_space<vmem>>, vector<1x256xf32>
    %cst_68 = arith.constant dense<0.000000e+00> : vector<256xf32>
    %293 = vector.multi_reduction <add>, %290, %cst_68 [0] : vector<2x256xf32> to vector<256xf32>
    %294 = vector.shape_cast %293 : vector<256xf32> to vector<1x256xf32>
    %cst_69 = arith.constant 2.000000e+00 : f32
    %295 = vector.broadcast %cst_69 : f32 to vector<1x256xf32>
    %296 = arith.divf %294, %295 : vector<1x256xf32>
    %297 = vector.broadcast %296 : vector<1x256xf32> to vector<2x256xf32>
    %298 = arith.subf %290, %297 : vector<2x256xf32>
    %299 = arith.mulf %298, %298 : vector<2x256xf32>
    %cst_70 = arith.constant dense<0.000000e+00> : vector<256xf32>
    %300 = vector.multi_reduction <add>, %299, %cst_70 [0] : vector<2x256xf32> to vector<256xf32>
    %301 = vector.shape_cast %300 : vector<256xf32> to vector<1x256xf32>
    %cst_71 = arith.constant 2.000000e+00 : f32
    %302 = vector.broadcast %cst_71 : f32 to vector<1x256xf32>
    %303 = arith.divf %301, %302 : vector<1x256xf32>
    %cst_72 = arith.constant 9.99999974E-6 : f32
    %304 = vector.broadcast %cst_72 : f32 to vector<1x256xf32>
    %305 = arith.addf %303, %304 : vector<1x256xf32>
    %306 = math.rsqrt %305 : vector<1x256xf32>
    %307 = arith.mulf %291, %306 : vector<1x256xf32>
    %308 = vector.broadcast %307 : vector<1x256xf32> to vector<2x256xf32>
    %309 = arith.mulf %298, %308 : vector<2x256xf32>
    %310 = vector.broadcast %292 : vector<1x256xf32> to vector<2x256xf32>
    %311 = arith.addf %309, %310 : vector<2x256xf32>
    %c0_73 = arith.constant 0 : index
    %c0_74 = arith.constant 0 : index
    %312 = vector.load %arg5[%c0_73, %c0_74] : memref<256x128xf32, #tpu.memory_space<vmem>>, vector<256x128xf32>
    %cst_75 = arith.constant dense<0.000000e+00> : vector<2x128xf32>
    %313 = tpu.matmul %311, %312, %cst_75 {dimension_numbers = #tpu.dot_dimension_numbers<[1], [0], [0], [1], [0, 0, 1, 1], [], []>} : vector<2x256xf32>, vector<256x128xf32>, vector<2x128xf32> -> vector<2x128xf32>
    %c0_76 = arith.constant 0 : index
    %c4352 = arith.constant 4352 : index
    %314 = vector.load %arg6[%c0_76, %c4352] : memref<1x4480xf32, #tpu.memory_space<vmem>>, vector<1x128xf32>
    %315 = vector.broadcast %314 : vector<1x128xf32> to vector<2x128xf32>
    %316 = arith.addf %313, %315 : vector<2x128xf32>
    %317 = math.absf %316 : vector<2x128xf32>
    %c0_77 = arith.constant 0 : index
    %c0_78 = arith.constant 0 : index
    %318 = vector.load %arg7[%c0_77, %c0_78] : memref<2x128xf32, #tpu.memory_space<vmem>>, vector<2x128xf32>
    tpu.vector_store %arg7[%c0_77, %c0_78], %317 {strides = array<i32>} : memref<2x128xf32, #tpu.memory_space<vmem>>, vector<2x128xf32>,
    return
  }
}

</mosaic_0001>

<llo_original>
// kernel: utilization_lstm_forward.1
$region0: #{utilization_lstm_forward.1}
  #allocation0 [shape = 'u32[]', space=smem, size = 0x4, offset = 0x4, fixed_abs, tag = 'smem constant byte address 0x4 - core index']
  #allocation1 [shape = 'u32[144,128]{1,0:T(1,128)}', space=vmem, size = 0x12000, scoped, tag = 'internal scratch']
  %s0 = inlined_call_operand.vmem [shape: f32[16,4], index: 0, kind: input, shape index: {}]
  %s1 = inlined_call_operand.vmem [shape: f32[4,256], index: 1, kind: input, shape index: {}]
  %s2 = inlined_call_operand.hbm [shape: f32[64,256], index: 2, kind: input, shape index: {}]
  %s3 = inlined_call_operand.hbm [shape: f32[64,1024], index: 3, kind: input, shape index: {}]
  %s4 = inlined_call_operand.hbm [shape: f32[1024,256], index: 4, kind: input, shape index: {}]
  %s5 = inlined_call_operand.hbm [shape: f32[256,128], index: 5, kind: input, shape index: {}]
  %s6 = inlined_call_operand.hbm [shape: f32[1,4480], index: 6, kind: input, shape index: {}]
  %s7 = inlined_call_operand.hbm [shape: f32[2,128], index: 7, kind: output, shape index: {}]
  %s8 = sld [smem:[#allocation0]]
  $region58: #{utilization_lstm_forward.1} parent=0
    _
  %s10 = ssub.s32 1, %s8
  %s11 = scalar_select 0, %s10, %s8
  $region1: #{utilization_lstm_forward.1} parent=0
    #allocation2 [shape = 'u8[65536]{0}', space=vmem, size = 0x10000, scoped, tag = 'input window, operand 2, single buffered']
    #allocation3 [shape = 's32[1]{0}', space=sflag, size = 0x4, scoped, tag = 'scoped memory for utilization_lstm_forward.1']
    #allocation4 [shape = 's32[1]{0}', space=sflag, size = 0x4, scoped, tag = 'scoped memory for utilization_lstm_forward.1']
    #allocation5 [shape = 'u8[262144]{0}', space=vmem, size = 0x40000, scoped, tag = 'input window, operand 3, single buffered']
    #allocation6 [shape = 's32[1]{0}', space=sflag, size = 0x4, scoped, tag = 'scoped memory for utilization_lstm_forward.1']
    #allocation7 [shape = 'u8[1048576]{0}', space=vmem, size = 0x100000, scoped, tag = 'input window, operand 4, single buffered']
    #allocation8 [shape = 'u8[131072]{0}', space=vmem, size = 0x20000, scoped, tag = 'input window, operand 5, single buffered']
    #allocation9 [shape = 's32[1]{0}', space=sflag, size = 0x4, scoped, tag = 'scoped memory for utilization_lstm_forward.1']
    #allocation10 [shape = 'u8[17920]{0}', space=vmem, size = 0x4800, scoped, tag = 'input window, operand 6, single buffered']
    #allocation11 [shape = 'u8[1024]{0}', space=vmem, size = 0x400, scoped, tag = 'output window, operand 0, single buffered']
    %12 = vsyncpa [#allocation3], 0
    %13 = vsyncpa [#allocation6], 0
    %14 = vsyncpa [#allocation9], 0
    %15 = vsyncpa [#allocation4], 0
    // Predicated region
    $region2: #{utilization_lstm_forward.1} parent=1 // pred_check
      _
    $region3: #{utilization_lstm_forward.1} parent=1 // pred_check_branch
      %17 = sbr.rel (0) target = $region5
    $region4: #{utilization_lstm_forward.1} parent=1 // pred_region
      _
    $region5: #{utilization_lstm_forward.1} parent=1 // pred_fallthru
      _
    // Predicated region
    $region6: #{utilization_lstm_forward.1} parent=1 // pred_check
      _
    $region7: #{utilization_lstm_forward.1} parent=1 // pred_check_branch
      %19 = sbr.rel (0) target = $region9
    $region8: #{utilization_lstm_forward.1} parent=1 // pred_region
      _
    $region9: #{utilization_lstm_forward.1} parent=1 // pred_fallthru
      _
    // Predicated region
    $region10: #{utilization_lstm_forward.1} parent=1 // pred_check
      _
    $region11: #{utilization_lstm_forward.1} parent=1 // pred_check_branch
      %21 = sbr.rel (0) target = $region13
    $region12: #{utilization_lstm_forward.1} parent=1 // pred_region
      %s23 = ssub.s32 2048, 2048
      %24 = vsyncadd [#allocation3], %s23
      %s25 = sshll.u32 [#allocation2], 4
      %s26 = int_to_ptr.vmem [resolvable:$true] %s25
      %31 = dma.hbm_to_vmem [thread:$0]  %s2, 2048, %s26, [#allocation3], 256, 256, 16
    $region13: #{utilization_lstm_forward.1} parent=1 // pred_fallthru
      _
    // Predicated region
    $region14: #{utilization_lstm_forward.1} parent=1 // pred_check
      _
    $region15: #{utilization_lstm_forward.1} parent=1 // pred_check_branch
      %33 = sbr.rel (0) target = $region17
    $region16: #{utilization_lstm_forward.1} parent=1 // pred_region
      %s35 = ssub.s32 8192, 8192
      %36 = vsyncadd [#allocation6], %s35
      %s37 = sshll.u32 [#allocation5], 4
      %s38 = int_to_ptr.vmem [resolvable:$true] %s37
      %43 = dma.hbm_to_vmem [thread:$0]  %s3, 8192, %s38, [#allocation6], 1024, 1024, 64
    $region17: #{utilization_lstm_forward.1} parent=1 // pred_fallthru
      _
    // Predicated region
    $region18: #{utilization_lstm_forward.1} parent=1 // pred_check
      _
    $region19: #{utilization_lstm_forward.1} parent=1 // pred_check_branch
      %45 = sbr.rel (0) target = $region21
    $region20: #{utilization_lstm_forward.1} parent=1 // pred_region
      %s47 = ssub.s32 32768, 32768
      %48 = vsyncadd [#allocation6], %s47
      %s49 = sshll.u32 [#allocation7], 4
      %s50 = int_to_ptr.vmem [resolvable:$true] %s49
      %55 = dma.hbm_to_vmem [thread:$0]  %s4, 32768, %s50, [#allocation6], 256, 256, 16
    $region21: #{utilization_lstm_forward.1} parent=1 // pred_fallthru
      _
    // Predicated region
    $region22: #{utilization_lstm_forward.1} parent=1 // pred_check
      _
    $region23: #{utilization_lstm_forward.1} parent=1 // pred_check_branch
      %57 = sbr.rel (0) target = $region25
    $region24: #{utilization_lstm_forward.1} parent=1 // pred_region
      %s59 = ssub.s32 4096, 4096
      %60 = vsyncadd [#allocation9], %s59
      %s61 = sshll.u32 [#allocation8], 4
      %s62 = int_to_ptr.vmem [resolvable:$true] %s61
      %67 = dma.hbm_to_vmem [thread:$0]  %s5, 4096, %s62, [#allocation9], 128, 128, 8
    $region25: #{utilization_lstm_forward.1} parent=1 // pred_fallthru
      _
    // Predicated region
    $region26: #{utilization_lstm_forward.1} parent=1 // pred_check
      _
    $region27: #{utilization_lstm_forward.1} parent=1 // pred_check_branch
      %69 = sbr.rel (0) target = $region29
    $region28: #{utilization_lstm_forward.1} parent=1 // pred_region
      %s71 = ssub.s32 560, 560
      %72 = vsyncadd [#allocation9], %s71
      %s74 = sshll.u32 [#allocation10], 4
      %s75 = int_to_ptr.vmem [resolvable:$true] %s74
      %77 = dma.hbm_to_vmem [thread:$0]  %s6, 560, %s75, [#allocation9]
    $region29: #{utilization_lstm_forward.1} parent=1 // pred_fallthru
      _
    // Predicated region
    $region30: #{utilization_lstm_forward.1} parent=1 // pred_check
      _
    $region31: #{utilization_lstm_forward.1} parent=1 // pred_check_branch
      %79 = sbr.rel (0) target = $region33
    $region32: #{utilization_lstm_forward.1} parent=1 // pred_region
      %80 = dma.done [#allocation3], 2048
    $region33: #{utilization_lstm_forward.1} parent=1 // pred_fallthru
      _
    // Predicated region
    $region34: #{utilization_lstm_forward.1} parent=1 // pred_check
      _
    $region35: #{utilization_lstm_forward.1} parent=1 // pred_check_branch
      %82 = sbr.rel (0) target = $region37
    $region36: #{utilization_lstm_forward.1} parent=1 // pred_region
      %83 = dma.done [#allocation6], 8192
    $region37: #{utilization_lstm_forward.1} parent=1 // pred_fallthru
      _
    // Predicated region
    $region38: #{utilization_lstm_forward.1} parent=1 // pred_check
      _
    $region39: #{utilization_lstm_forward.1} parent=1 // pred_check_branch
      %85 = sbr.rel (0) target = $region41
    $region40: #{utilization_lstm_forward.1} parent=1 // pred_region
      %86 = dma.done [#allocation6], 32768
    $region41: #{utilization_lstm_forward.1} parent=1 // pred_fallthru
      _
    // Predicated region
    $region42: #{utilization_lstm_forward.1} parent=1 // pred_check
      _
    $region43: #{utilization_lstm_forward.1} parent=1 // pred_check_branch
      %88 = sbr.rel (0) target = $region45
    $region44: #{utilization_lstm_forward.1} parent=1 // pred_region
      %89 = dma.done [#allocation9], 4096
    $region45: #{utilization_lstm_forward.1} parent=1 // pred_fallthru
      _
    // Predicated region
    $region46: #{utilization_lstm_forward.1} parent=1 // pred_check
      _
    $region47: #{utilization_lstm_forward.1} parent=1 // pred_check_branch
      %91 = sbr.rel (0) target = $region49
    $region48: #{utilization_lstm_forward.1} parent=1 // pred_region
      %92 = dma.done [#allocation9], 560
    $region49: #{utilization_lstm_forward.1} parent=1 // pred_fallthru
      _
    %v93 = vld [vmem:[%s0] sm:$0xff]
    %v94 = vld [vmem:[%s0 + $0x8] sm:$0xff]
    %v95 = vld [vmem:[%s1] sm:$0xff]
    %v96 = vld [vmem:[#allocation10] sm:$0x3]
    %v98 = vlaneseq
    %v99 = vshrl.u32 %v98, 7
    %v100 = vsub.s32 0, %v99
    %v101 = vrot.slane %v96, %v100
    %v102 = vlaneseq
    %v103 = vshrl.u32 %v102, 7
    %v104 = vsub.s32 1, %v103
    %v105 = vrot.slane %v96, %v104
    %v109 = vcombine.high %v95, %v95
    %vm110 = vcmask 31744
    %v112 = vsel %vm110, %v93, 0
    %v115 = vsel %vm110, %v94, 0
    %vm117 = vcmask 1043456
    %v118 = vsel %vm117, %v95, 0
    %v120 = vsel %vm117, %v109, 0
    %122 = vmatprep.subr.mxu0 0.0
    %123 = vmatpush1.msra.mxu0 0.0
    %124 = vmatprep.subr.mxu0 0.0
    %125 = vmatpush1.msra.mxu0 0.0
    %126 = vmatprep.subr.mxu0 0.0
    %127 = vmatpush1.msra.mxu0 0.0
    %128 = vmatprep.subr.mxu0 0.0
    %129 = vmatpush1.msra.mxu0 0.0
    %130 = vmatprep.subr.mxu0 0.0
    %131 = vmatpush1.msra.mxu0 0.0
    %132 = vmatprep.subr.mxu0 0.0
    %133 = vmatpush1.msra.mxu0 0.0
    %134 = vmatprep.subr.mxu0 0.0
    %135 = vmatpush1.msra.mxu0 0.0
    %136 = vmatprep.subr.mxu0 0.0
    %137 = vmatpush1.msra.mxu0 0.0
    %138 = vmatprep.subr.mxu0 0.0
    %139 = vmatpush1.msra.mxu0 0.0
    %140 = vmatprep.subr.mxu0 0.0
    %141 = vmatpush1.msra.mxu0 0.0
    %142 = vmatprep.subr.mxu0 0.0
    %143 = vmatpush1.msra.mxu0 0.0
    %144 = vmatprep.subr.mxu0 0.0
    %145 = vmatpush1.msra.mxu0 0.0
    %146 = vmatprep.subr.mxu0 0.0
    %147 = vmatpush1.msra.mxu0 0.0
    %148 = vmatprep.subr.mxu0 0.0
    %149 = vmatpush1.msra.mxu0 0.0
    %150 = vmatprep.subr.mxu0 0.0
    %151 = vmatpush1.msra.mxu0 0.0
    %152 = vmatprep.subr.mxu0 %v120
    %153 = vmatpush1.msra.mxu0 %v118
    %154 = vmatprep.subr.mxu0 0.0
    %155 = vmatpush2.msra.mxu0 0.0
    %156 = vmatprep.subr.mxu0 0.0
    %157 = vmatpush2.msra.mxu0 0.0
    %158 = vmatprep.subr.mxu0 0.0
    %159 = vmatpush2.msra.mxu0 0.0
    %160 = vmatprep.subr.mxu0 0.0
    %161 = vmatpush2.msra.mxu0 0.0
    %162 = vmatprep.subr.mxu0 0.0
    %163 = vmatpush2.msra.mxu0 0.0
    %164 = vmatprep.subr.mxu0 0.0
    %165 = vmatpush2.msra.mxu0 0.0
    %166 = vmatprep.subr.mxu0 0.0
    %167 = vmatpush2.msra.mxu0 0.0
    %168 = vmatprep.subr.mxu0 0.0
    %169 = vmatpush2.msra.mxu0 0.0
    %170 = vmatprep.subr.mxu0 0.0
    %171 = vmatpush2.msra.mxu0 0.0
    %172 = vmatprep.subr.mxu0 0.0
    %173 = vmatpush2.msra.mxu0 0.0
    %174 = vmatprep.subr.mxu0 0.0
    %175 = vmatpush2.msra.mxu0 0.0
    %176 = vmatprep.subr.mxu0 0.0
    %177 = vmatpush2.msra.mxu0 0.0
    %178 = vmatprep.subr.mxu0 0.0
    %179 = vmatpush2.msra.mxu0 0.0
    %180 = vmatprep.subr.mxu0 0.0
    %181 = vmatpush2.msra.mxu0 0.0
    %182 = vmatprep.subr.mxu0 0.0
    %183 = vmatpush2.msra.mxu0 0.0
    %184 = vmatprep.subr.mxu0 0.0
    %185 = vmatpush2.msra.mxu0 0.0
    %186 = vmatprep.mubr.f32.mxu0 0.0
    %187 = vmatmul.mubr.f32.gmra.mxu0 %v112
    %v188 = vpop.f32.mrf.mxu0
    %v189 = vadd.f32 %v101, %v188
    %v190 = vpop.f32.mrf.mxu0
    %v191 = vadd.f32 %v105, %v190
    %192 = vmatprep.mubr.f32.mxu0 0.0
    %193 = vmatmul.mubr.f32.gmra.mxu0 %v115
    %v194 = vpop.f32.mrf.mxu0
    %v195 = vadd.f32 %v101, %v194
    %v196 = vpop.f32.mrf.mxu0
    %v197 = vadd.f32 %v105, %v196
    %198 = vdwg.mxu0
    %v199 = vld [vmem:[#allocation2] sm:$0xff]
    %v200 = vld [vmem:[#allocation2 + $0x8] sm:$0xff]
    %v201 = vld [vmem:[#allocation2 + $0x10] sm:$0xff]
    %v202 = vld [vmem:[#allocation2 + $0x18] sm:$0xff]
    %v203 = vld [vmem:[#allocation2 + $0x20] sm:$0xff]
    %v204 = vld [vmem:[#allocation2 + $0x28] sm:$0xff]
    %v205 = vld [vmem:[#allocation2 + $0x30] sm:$0xff]
    %v206 = vld [vmem:[#allocation2 + $0x38] sm:$0xff]
    %v207 = vld [vmem:[#allocation2 + $0x40] sm:$0xff]
    %v208 = vld [vmem:[#allocation2 + $0x48] sm:$0xff]
    %v209 = vld [vmem:[#allocation2 + $0x50] sm:$0xff]
    %v210 = vld [vmem:[#allocation2 + $0x58] sm:$0xff]
    %v211 = vld [vmem:[#allocation2 + $0x60] sm:$0xff]
    %v212 = vld [vmem:[#allocation2 + $0x68] sm:$0xff]
    %v213 = vld [vmem:[#allocation2 + $0x70] sm:$0xff]
    %v214 = vld [vmem:[#allocation2 + $0x78] sm:$0xff]
    %vm215 = vcmask 523264
    %v217 = vsel %vm215, 0.0, 0
    %219 = vmatprep.subr.mxu0 0.0
    %220 = vmatpush1.msra.mxu0 0.0
    %221 = vmatprep.subr.mxu0 0.0
    %222 = vmatpush1.msra.mxu0 0.0
    %223 = vmatprep.subr.mxu0 0.0
    %224 = vmatpush1.msra.mxu0 0.0
    %225 = vmatprep.subr.mxu0 0.0
    %226 = vmatpush1.msra.mxu0 0.0
    %227 = vmatprep.subr.mxu0 0.0
    %228 = vmatpush1.msra.mxu0 0.0
    %229 = vmatprep.subr.mxu0 0.0
    %230 = vmatpush1.msra.mxu0 0.0
    %231 = vmatprep.subr.mxu0 0.0
    %232 = vmatpush1.msra.mxu0 0.0
    %233 = vmatprep.subr.mxu0 0.0
    %234 = vmatpush1.msra.mxu0 0.0
    %235 = vmatprep.subr.mxu0 %v214
    %236 = vmatpush1.msra.mxu0 %v213
    %237 = vmatprep.subr.mxu0 %v212
    %238 = vmatpush1.msra.mxu0 %v211
    %239 = vmatprep.subr.mxu0 %v210
    %240 = vmatpush1.msra.mxu0 %v209
    %241 = vmatprep.subr.mxu0 %v208
    %242 = vmatpush1.msra.mxu0 %v207
    %243 = vmatprep.subr.mxu0 %v206
    %244 = vmatpush1.msra.mxu0 %v205
    %245 = vmatprep.subr.mxu0 %v204
    %246 = vmatpush1.msra.mxu0 %v203
    %247 = vmatprep.subr.mxu0 %v202
    %248 = vmatpush1.msra.mxu0 %v201
    %249 = vmatprep.subr.mxu0 %v200
    %250 = vmatpush1.msra.mxu0 %v199
    %251 = vmatprep.subr.mxu0 0.0
    %252 = vmatpush2.msra.mxu0 0.0
    %253 = vmatprep.subr.mxu0 0.0
    %254 = vmatpush2.msra.mxu0 0.0
    %255 = vmatprep.subr.mxu0 0.0
    %256 = vmatpush2.msra.mxu0 0.0
    %257 = vmatprep.subr.mxu0 0.0
    %258 = vmatpush2.msra.mxu0 0.0
    %259 = vmatprep.subr.mxu0 0.0
    %260 = vmatpush2.msra.mxu0 0.0
    %261 = vmatprep.subr.mxu0 0.0
    %262 = vmatpush2.msra.mxu0 0.0
    %263 = vmatprep.subr.mxu0 0.0
    %264 = vmatpush2.msra.mxu0 0.0
    %265 = vmatprep.subr.mxu0 0.0
    %266 = vmatpush2.msra.mxu0 0.0
    %267 = vmatprep.subr.mxu0 0.0
    %268 = vmatpush2.msra.mxu0 0.0
    %269 = vmatprep.subr.mxu0 0.0
    %270 = vmatpush2.msra.mxu0 0.0
    %271 = vmatprep.subr.mxu0 0.0
    %272 = vmatpush2.msra.mxu0 0.0
    %273 = vmatprep.subr.mxu0 0.0
    %274 = vmatpush2.msra.mxu0 0.0
    %275 = vmatprep.subr.mxu0 0.0
    %276 = vmatpush2.msra.mxu0 0.0
    %277 = vmatprep.subr.mxu0 0.0
    %278 = vmatpush2.msra.mxu0 0.0
    %279 = vmatprep.subr.mxu0 0.0
    %280 = vmatpush2.msra.mxu0 0.0
    %281 = vmatprep.subr.mxu0 0.0
    %282 = vmatpush2.msra.mxu0 0.0
    %283 = vmatprep.mubr.f32.mxu0 0.0
    %284 = vmatmul.mubr.f32.gmra.mxu0 %v217
    %v285 = vpop.f32.mrf.mxu0
    %v286 = vadd.f32 0.0, %v285
    %v287 = vpop.f32.mrf.mxu0
    %v288 = vadd.f32 0.0, %v287
    %289 = vdwg.mxu0
    %v290 = vadd.f32 %v189, %v286
    %v291 = vadd.f32 %v191, %v288
    %v292 = vxor.u32 %v290, 2147483648
    %v293 = vmul.f32 %v292, 1.442695
    %v294 = vpow.pop %v293
    %v295 = vadd.f32 %v294, 1.0
    %v296 = vrcp.pop %v295
    %v297 = vmul.f32 1.0, %v296
    %v298 = vtanh.pop %v291
    %v299 = vxor.u32 %v291, 2147483648
    %v300 = vmul.f32 %v299, 1.442695
    %v301 = vpow.pop %v300
    %v302 = vadd.f32 %v301, 1.0
    %v303 = vrcp.pop %v302
    %v304 = vmul.f32 1.0, %v303
    %v305 = vmul.f32 %v297, 0.0
    %v306 = vmul.f32 %v297, %v298
    %308 = vrot.lane.b32.xlu0 %v306, 64
    %v309 = vpop.permute.xlu0 %308
    %v311 = vadd.f32 %v305, %v309
    %v312 = vtanh.pop %v311
    %v313 = vmul.f32 %v304, %v312
    %315 = vrot.lane.b32.xlu0 %v313, 64
    %v316 = vpop.permute.xlu0 %315
    %v317 = vsel %vm215, %v316, 0
    %319 = vmatprep.subr.mxu0 0.0
    %320 = vmatpush1.msra.mxu0 0.0
    %321 = vmatprep.subr.mxu0 0.0
    %322 = vmatpush1.msra.mxu0 0.0
    %323 = vmatprep.subr.mxu0 0.0
    %324 = vmatpush1.msra.mxu0 0.0
    %325 = vmatprep.subr.mxu0 0.0
    %326 = vmatpush1.msra.mxu0 0.0
    %327 = vmatprep.subr.mxu0 0.0
    %328 = vmatpush1.msra.mxu0 0.0
    %329 = vmatprep.subr.mxu0 0.0
    %330 = vmatpush1.msra.mxu0 0.0
    %331 = vmatprep.subr.mxu0 0.0
    %332 = vmatpush1.msra.mxu0 0.0
    %333 = vmatprep.subr.mxu0 0.0
    %334 = vmatpush1.msra.mxu0 0.0
    %335 = vmatprep.subr.mxu0 %v214
    %336 = vmatpush1.msra.mxu0 %v213
    %337 = vmatprep.subr.mxu0 %v212
    %338 = vmatpush1.msra.mxu0 %v211
    %339 = vmatprep.subr.mxu0 %v210
    %340 = vmatpush1.msra.mxu0 %v209
    %341 = vmatprep.subr.mxu0 %v208
    %342 = vmatpush1.msra.mxu0 %v207
    %343 = vmatprep.subr.mxu0 %v206
    %344 = vmatpush1.msra.mxu0 %v205
    %345 = vmatprep.subr.mxu0 %v204
    %346 = vmatpush1.msra.mxu0 %v203
    %347 = vmatprep.subr.mxu0 %v202
    %348 = vmatpush1.msra.mxu0 %v201
    %349 = vmatprep.subr.mxu0 %v200
    %350 = vmatpush1.msra.mxu0 %v199
    %351 = vmatprep.subr.mxu0 0.0
    %352 = vmatpush2.msra.mxu0 0.0
    %353 = vmatprep.subr.mxu0 0.0
    %354 = vmatpush2.msra.mxu0 0.0
    %355 = vmatprep.subr.mxu0 0.0
    %356 = vmatpush2.msra.mxu0 0.0
    %357 = vmatprep.subr.mxu0 0.0
    %358 = vmatpush2.msra.mxu0 0.0
    %359 = vmatprep.subr.mxu0 0.0
    %360 = vmatpush2.msra.mxu0 0.0
    %361 = vmatprep.subr.mxu0 0.0
    %362 = vmatpush2.msra.mxu0 0.0
    %363 = vmatprep.subr.mxu0 0.0
    %364 = vmatpush2.msra.mxu0 0.0
    %365 = vmatprep.subr.mxu0 0.0
    %366 = vmatpush2.msra.mxu0 0.0
    %367 = vmatprep.subr.mxu0 0.0
    %368 = vmatpush2.msra.mxu0 0.0
    %369 = vmatprep.subr.mxu0 0.0
    %370 = vmatpush2.msra.mxu0 0.0
    %371 = vmatprep.subr.mxu0 0.0
    %372 = vmatpush2.msra.mxu0 0.0
    %373 = vmatprep.subr.mxu0 0.0
    %374 = vmatpush2.msra.mxu0 0.0
    %375 = vmatprep.subr.mxu0 0.0
    %376 = vmatpush2.msra.mxu0 0.0
    %377 = vmatprep.subr.mxu0 0.0
    %378 = vmatpush2.msra.mxu0 0.0
    %379 = vmatprep.subr.mxu0 0.0
    %380 = vmatpush2.msra.mxu0 0.0
    %381 = vmatprep.subr.mxu0 0.0
    %382 = vmatpush2.msra.mxu0 0.0
    %383 = vmatprep.mubr.f32.mxu0 0.0
    %384 = vmatmul.mubr.f32.gmra.mxu0 %v317
    %v385 = vpop.f32.mrf.mxu0
    %v386 = vadd.f32 0.0, %v385
    %v387 = vpop.f32.mrf.mxu0
    %v388 = vadd.f32 0.0, %v387
    %389 = vdwg.mxu0
    %v392 = vrot.slane %v386, 6
    %v393 = vrot.slane %v388, 6
    %v396 = vadd.f32 %v189, %v392
    %v397 = vadd.f32 %v191, %v393
    %v398 = vxor.u32 %v396, 2147483648
    %v399 = vmul.f32 %v398, 1.442695
    %v400 = vpow.pop %v399
    %v401 = vadd.f32 %v400, 1.0
    %v402 = vrcp.pop %v401
    %v403 = vmul.f32 1.0, %v402
    %v404 = vtanh.pop %v397
    %v405 = vxor.u32 %v397, 2147483648
    %v406 = vmul.f32 %v405, 1.442695
    %v407 = vpow.pop %v406
    %v408 = vadd.f32 %v407, 1.0
    %v409 = vrcp.pop %v408
    %v410 = vmul.f32 1.0, %v409
    %v412 = vrot.slane %v311, 6
    %v414 = vmul.f32 %v403, %v412
    %v415 = vmul.f32 %v403, %v404
    %417 = vrot.lane.b32.xlu0 %v415, 64
    %v418 = vpop.permute.xlu0 %417
    %v420 = vadd.f32 %v414, %v418
    %v421 = vtanh.pop %v420
    %v422 = vmul.f32 %v410, %v421
    %v424 = vrot.slane %v422, 2
    %425 = vrot.lane.b32.xlu0 %v424, 64
    %v426 = vpop.permute.xlu0 %425
    %v427 = vsel %vm215, %v426, 0
    %429 = vmatprep.subr.mxu0 0.0
    %430 = vmatpush1.msra.mxu0 0.0
    %431 = vmatprep.subr.mxu0 0.0
    %432 = vmatpush1.msra.mxu0 0.0
    %433 = vmatprep.subr.mxu0 0.0
    %434 = vmatpush1.msra.mxu0 0.0
    %435 = vmatprep.subr.mxu0 0.0
    %436 = vmatpush1.msra.mxu0 0.0
    %437 = vmatprep.subr.mxu0 0.0
    %438 = vmatpush1.msra.mxu0 0.0
    %439 = vmatprep.subr.mxu0 0.0
    %440 = vmatpush1.msra.mxu0 0.0
    %441 = vmatprep.subr.mxu0 0.0
    %442 = vmatpush1.msra.mxu0 0.0
    %443 = vmatprep.subr.mxu0 0.0
    %444 = vmatpush1.msra.mxu0 0.0
    %445 = vmatprep.subr.mxu0 %v214
    %446 = vmatpush1.msra.mxu0 %v213
    %447 = vmatprep.subr.mxu0 %v212
    %448 = vmatpush1.msra.mxu0 %v211
    %449 = vmatprep.subr.mxu0 %v210
    %450 = vmatpush1.msra.mxu0 %v209
    %451 = vmatprep.subr.mxu0 %v208
    %452 = vmatpush1.msra.mxu0 %v207
    %453 = vmatprep.subr.mxu0 %v206
    %454 = vmatpush1.msra.mxu0 %v205
    %455 = vmatprep.subr.mxu0 %v204
    %456 = vmatpush1.msra.mxu0 %v203
    %457 = vmatprep.subr.mxu0 %v202
    %458 = vmatpush1.msra.mxu0 %v201
    %459 = vmatprep.subr.mxu0 %v200
    %460 = vmatpush1.msra.mxu0 %v199
    %461 = vmatprep.subr.mxu0 0.0
    %462 = vmatpush2.msra.mxu0 0.0
    %463 = vmatprep.subr.mxu0 0.0
    %464 = vmatpush2.msra.mxu0 0.0
    %465 = vmatprep.subr.mxu0 0.0
    %466 = vmatpush2.msra.mxu0 0.0
    %467 = vmatprep.subr.mxu0 0.0
    %468 = vmatpush2.msra.mxu0 0.0
    %469 = vmatprep.subr.mxu0 0.0
    %470 = vmatpush2.msra.mxu0 0.0
    %471 = vmatprep.subr.mxu0 0.0
    %472 = vmatpush2.msra.mxu0 0.0
    %473 = vmatprep.subr.mxu0 0.0
    %474 = vmatpush2.msra.mxu0 0.0
    %475 = vmatprep.subr.mxu0 0.0
    %476 = vmatpush2.msra.mxu0 0.0
    %477 = vmatprep.subr.mxu0 0.0
    %478 = vmatpush2.msra.mxu0 0.0
    %479 = vmatprep.subr.mxu0 0.0
    %480 = vmatpush2.msra.mxu0 0.0
    %481 = vmatprep.subr.mxu0 0.0
    %482 = vmatpush2.msra.mxu0 0.0
    %483 = vmatprep.subr.mxu0 0.0
    %484 = vmatpush2.msra.mxu0 0.0
    %485 = vmatprep.subr.mxu0 0.0
    %486 = vmatpush2.msra.mxu0 0.0
    %487 = vmatprep.subr.mxu0 0.0
    %488 = vmatpush2.msra.mxu0 0.0
    %489 = vmatprep.subr.mxu0 0.0
    %490 = vmatpush2.msra.mxu0 0.0
    %491 = vmatprep.subr.mxu0 0.0
    %492 = vmatpush2.msra.mxu0 0.0
    %493 = vmatprep.mubr.f32.mxu0 0.0
    %494 = vmatmul.mubr.f32.gmra.mxu0 %v427
    %v495 = vpop.f32.mrf.mxu0
    %v496 = vadd.f32 0.0, %v495
    %v497 = vpop.f32.mrf.mxu0
    %v498 = vadd.f32 0.0, %v497
    %499 = vdwg.mxu0
    %v502 = vrot.slane %v496, 4
    %v503 = vrot.slane %v498, 4
    %v506 = vadd.f32 %v189, %v502
    %v507 = vadd.f32 %v191, %v503
    %v508 = vxor.u32 %v506, 2147483648
    %v509 = vmul.f32 %v508, 1.442695
    %v510 = vpow.pop %v509
    %v511 = vadd.f32 %v510, 1.0
    %v512 = vrcp.pop %v511
    %v513 = vmul.f32 1.0, %v512
    %v514 = vtanh.pop %v507
    %v515 = vxor.u32 %v507, 2147483648
    %v516 = vmul.f32 %v515, 1.442695
    %v517 = vpow.pop %v516
    %v518 = vadd.f32 %v517, 1.0
    %v519 = vrcp.pop %v518
    %v520 = vmul.f32 1.0, %v519
    %v522 = vrot.slane %v420, 6
    %v524 = vmul.f32 %v513, %v522
    %v525 = vmul.f32 %v513, %v514
    %527 = vrot.lane.b32.xlu0 %v525, 64
    %v528 = vpop.permute.xlu0 %527
    %v530 = vadd.f32 %v524, %v528
    %v531 = vtanh.pop %v530
    %v532 = vmul.f32 %v520, %v531
    %v534 = vrot.slane %v532, 4
    %535 = vrot.lane.b32.xlu0 %v534, 64
    %v536 = vpop.permute.xlu0 %535
    %v537 = vsel %vm215, %v536, 0
    %539 = vmatprep.subr.mxu0 0.0
    %540 = vmatpush1.msra.mxu0 0.0
    %541 = vmatprep.subr.mxu0 0.0
    %542 = vmatpush1.msra.mxu0 0.0
    %543 = vmatprep.subr.mxu0 0.0
    %544 = vmatpush1.msra.mxu0 0.0
    %545 = vmatprep.subr.mxu0 0.0
    %546 = vmatpush1.msra.mxu0 0.0
    %547 = vmatprep.subr.mxu0 0.0
    %548 = vmatpush1.msra.mxu0 0.0
    %549 = vmatprep.subr.mxu0 0.0
    %550 = vmatpush1.msra.mxu0 0.0
    %551 = vmatprep.subr.mxu0 0.0
    %552 = vmatpush1.msra.mxu0 0.0
    %553 = vmatprep.subr.mxu0 0.0
    %554 = vmatpush1.msra.mxu0 0.0
    %555 = vmatprep.subr.mxu0 %v214
    %556 = vmatpush1.msra.mxu0 %v213
    %557 = vmatprep.subr.mxu0 %v212
    %558 = vmatpush1.msra.mxu0 %v211
    %559 = vmatprep.subr.mxu0 %v210
    %560 = vmatpush1.msra.mxu0 %v209
    %561 = vmatprep.subr.mxu0 %v208
    %562 = vmatpush1.msra.mxu0 %v207
    %563 = vmatprep.subr.mxu0 %v206
    %564 = vmatpush1.msra.mxu0 %v205
    %565 = vmatprep.subr.mxu0 %v204
    %566 = vmatpush1.msra.mxu0 %v203
    %567 = vmatprep.subr.mxu0 %v202
    %568 = vmatpush1.msra.mxu0 %v201
    %569 = vmatprep.subr.mxu0 %v200
    %570 = vmatpush1.msra.mxu0 %v199
    %571 = vmatprep.subr.mxu0 0.0
    %572 = vmatpush2.msra.mxu0 0.0
    %573 = vmatprep.subr.mxu0 0.0
    %574 = vmatpush2.msra.mxu0 0.0
    %575 = vmatprep.subr.mxu0 0.0
    %576 = vmatpush2.msra.mxu0 0.0
    %577 = vmatprep.subr.mxu0 0.0
    %578 = vmatpush2.msra.mxu0 0.0
    %579 = vmatprep.subr.mxu0 0.0
    %580 = vmatpush2.msra.mxu0 0.0
    %581 = vmatprep.subr.mxu0 0.0
    %582 = vmatpush2.msra.mxu0 0.0
    %583 = vmatprep.subr.mxu0 0.0
    %584 = vmatpush2.msra.mxu0 0.0
    %585 = vmatprep.subr.mxu0 0.0
    %586 = vmatpush2.msra.mxu0 0.0
    %587 = vmatprep.subr.mxu0 0.0
    %588 = vmatpush2.msra.mxu0 0.0
    %589 = vmatprep.subr.mxu0 0.0
    %590 = vmatpush2.msra.mxu0 0.0
    %591 = vmatprep.subr.mxu0 0.0
    %592 = vmatpush2.msra.mxu0 0.0
    %593 = vmatprep.subr.mxu0 0.0
    %594 = vmatpush2.msra.mxu0 0.0
    %595 = vmatprep.subr.mxu0 0.0
    %596 = vmatpush2.msra.mxu0 0.0
    %597 = vmatprep.subr.mxu0 0.0
    %598 = vmatpush2.msra.mxu0 0.0
    %599 = vmatprep.subr.mxu0 0.0
    %600 = vmatpush2.msra.mxu0 0.0
    %601 = vmatprep.subr.mxu0 0.0
    %602 = vmatpush2.msra.mxu0 0.0
    %603 = vmatprep.mubr.f32.mxu0 0.0
    %604 = vmatmul.mubr.f32.gmra.mxu0 %v537
    %v605 = vpop.f32.mrf.mxu0
    %v606 = vadd.f32 0.0, %v605
    %v607 = vpop.f32.mrf.mxu0
    %v608 = vadd.f32 0.0, %v607
    %609 = vdwg.mxu0
    %v612 = vrot.slane %v606, 2
    %v613 = vrot.slane %v608, 2
    %v616 = vadd.f32 %v189, %v612
    %v617 = vadd.f32 %v191, %v613
    %v618 = vxor.u32 %v616, 2147483648
    %v619 = vmul.f32 %v618, 1.442695
    %v620 = vpow.pop %v619
    %v621 = vadd.f32 %v620, 1.0
    %v622 = vrcp.pop %v621
    %v623 = vmul.f32 1.0, %v622
    %v624 = vtanh.pop %v617
    %v625 = vxor.u32 %v617, 2147483648
    %v626 = vmul.f32 %v625, 1.442695
    %v627 = vpow.pop %v626
    %v628 = vadd.f32 %v627, 1.0
    %v629 = vrcp.pop %v628
    %v630 = vmul.f32 1.0, %v629
    %v632 = vrot.slane %v530, 6
    %v634 = vmul.f32 %v623, %v632
    %v635 = vmul.f32 %v623, %v624
    %637 = vrot.lane.b32.xlu0 %v635, 64
    %v638 = vpop.permute.xlu0 %637
    %v640 = vadd.f32 %v634, %v638
    %v641 = vtanh.pop %v640
    %v642 = vmul.f32 %v630, %v641
    %v644 = vrot.slane %v642, 6
    %645 = vrot.lane.b32.xlu0 %v644, 64
    %v646 = vpop.permute.xlu0 %645
    %v647 = vsel %vm215, %v646, 0
    %649 = vmatprep.subr.mxu0 0.0
    %650 = vmatpush1.msra.mxu0 0.0
    %651 = vmatprep.subr.mxu0 0.0
    %652 = vmatpush1.msra.mxu0 0.0
    %653 = vmatprep.subr.mxu0 0.0
    %654 = vmatpush1.msra.mxu0 0.0
    %655 = vmatprep.subr.mxu0 0.0
    %656 = vmatpush1.msra.mxu0 0.0
    %657 = vmatprep.subr.mxu0 0.0
    %658 = vmatpush1.msra.mxu0 0.0
    %659 = vmatprep.subr.mxu0 0.0
    %660 = vmatpush1.msra.mxu0 0.0
    %661 = vmatprep.subr.mxu0 0.0
    %662 = vmatpush1.msra.mxu0 0.0
    %663 = vmatprep.subr.mxu0 0.0
    %664 = vmatpush1.msra.mxu0 0.0
    %665 = vmatprep.subr.mxu0 %v214
    %666 = vmatpush1.msra.mxu0 %v213
    %667 = vmatprep.subr.mxu0 %v212
    %668 = vmatpush1.msra.mxu0 %v211
    %669 = vmatprep.subr.mxu0 %v210
    %670 = vmatpush1.msra.mxu0 %v209
    %671 = vmatprep.subr.mxu0 %v208
    %672 = vmatpush1.msra.mxu0 %v207
    %673 = vmatprep.subr.mxu0 %v206
    %674 = vmatpush1.msra.mxu0 %v205
    %675 = vmatprep.subr.mxu0 %v204
    %676 = vmatpush1.msra.mxu0 %v203
    %677 = vmatprep.subr.mxu0 %v202
    %678 = vmatpush1.msra.mxu0 %v201
    %679 = vmatprep.subr.mxu0 %v200
    %680 = vmatpush1.msra.mxu0 %v199
    %681 = vmatprep.subr.mxu0 0.0
    %682 = vmatpush2.msra.mxu0 0.0
    %683 = vmatprep.subr.mxu0 0.0
    %684 = vmatpush2.msra.mxu0 0.0
    %685 = vmatprep.subr.mxu0 0.0
    %686 = vmatpush2.msra.mxu0 0.0
    %687 = vmatprep.subr.mxu0 0.0
    %688 = vmatpush2.msra.mxu0 0.0
    %689 = vmatprep.subr.mxu0 0.0
    %690 = vmatpush2.msra.mxu0 0.0
    %691 = vmatprep.subr.mxu0 0.0
    %692 = vmatpush2.msra.mxu0 0.0
    %693 = vmatprep.subr.mxu0 0.0
    %694 = vmatpush2.msra.mxu0 0.0
    %695 = vmatprep.subr.mxu0 0.0
    %696 = vmatpush2.msra.mxu0 0.0
    %697 = vmatprep.subr.mxu0 0.0
    %698 = vmatpush2.msra.mxu0 0.0
    %699 = vmatprep.subr.mxu0 0.0
    %700 = vmatpush2.msra.mxu0 0.0
    %701 = vmatprep.subr.mxu0 0.0
    %702 = vmatpush2.msra.mxu0 0.0
    %703 = vmatprep.subr.mxu0 0.0
    %704 = vmatpush2.msra.mxu0 0.0
    %705 = vmatprep.subr.mxu0 0.0
    %706 = vmatpush2.msra.mxu0 0.0
    %707 = vmatprep.subr.mxu0 0.0
    %708 = vmatpush2.msra.mxu0 0.0
    %709 = vmatprep.subr.mxu0 0.0
    %710 = vmatpush2.msra.mxu0 0.0
    %711 = vmatprep.subr.mxu0 0.0
    %712 = vmatpush2.msra.mxu0 0.0
    %713 = vmatprep.mubr.f32.mxu0 0.0
    %714 = vmatmul.mubr.f32.gmra.mxu0 %v647
    %v715 = vpop.f32.mrf.mxu0
    %v716 = vadd.f32 0.0, %v715
    %v717 = vpop.f32.mrf.mxu0
    %v718 = vadd.f32 0.0, %v717
    %719 = vdwg.mxu0
    %v720 = vadd.f32 %v195, %v716
    %v721 = vadd.f32 %v197, %v718
    %v722 = vxor.u32 %v720, 2147483648
    %v723 = vmul.f32 %v722, 1.442695
    %v724 = vpow.pop %v723
    %v725 = vadd.f32 %v724, 1.0
    %v726 = vrcp.pop %v725
    %v727 = vmul.f32 1.0, %v726
    %v728 = vtanh.pop %v721
    %v729 = vxor.u32 %v721, 2147483648
    %v730 = vmul.f32 %v729, 1.442695
    %v731 = vpow.pop %v730
    %v732 = vadd.f32 %v731, 1.0
    %v733 = vrcp.pop %v732
    %v734 = vmul.f32 1.0, %v733
    %v736 = vrot.slane %v640, 6
    %v738 = vmul.f32 %v727, %v736
    %v739 = vmul.f32 %v727, %v728
    %741 = vrot.lane.b32.xlu0 %v739, 64
    %v742 = vpop.permute.xlu0 %741
    %v744 = vadd.f32 %v738, %v742
    %v745 = vtanh.pop %v744
    %v746 = vmul.f32 %v734, %v745
    %748 = vrot.lane.b32.xlu0 %v746, 64
    %v749 = vpop.permute.xlu0 %748
    %v750 = vsel %vm215, %v749, 0
    %752 = vmatprep.subr.mxu0 0.0
    %753 = vmatpush1.msra.mxu0 0.0
    %754 = vmatprep.subr.mxu0 0.0
    %755 = vmatpush1.msra.mxu0 0.0
    %756 = vmatprep.subr.mxu0 0.0
    %757 = vmatpush1.msra.mxu0 0.0
    %758 = vmatprep.subr.mxu0 0.0
    %759 = vmatpush1.msra.mxu0 0.0
    %760 = vmatprep.subr.mxu0 0.0
    %761 = vmatpush1.msra.mxu0 0.0
    %762 = vmatprep.subr.mxu0 0.0
    %763 = vmatpush1.msra.mxu0 0.0
    %764 = vmatprep.subr.mxu0 0.0
    %765 = vmatpush1.msra.mxu0 0.0
    %766 = vmatprep.subr.mxu0 0.0
    %767 = vmatpush1.msra.mxu0 0.0
    %768 = vmatprep.subr.mxu0 %v214
    %769 = vmatpush1.msra.mxu0 %v213
    %770 = vmatprep.subr.mxu0 %v212
    %771 = vmatpush1.msra.mxu0 %v211
    %772 = vmatprep.subr.mxu0 %v210
    %773 = vmatpush1.msra.mxu0 %v209
    %774 = vmatprep.subr.mxu0 %v208
    %775 = vmatpush1.msra.mxu0 %v207
    %776 = vmatprep.subr.mxu0 %v206
    %777 = vmatpush1.msra.mxu0 %v205
    %778 = vmatprep.subr.mxu0 %v204
    %779 = vmatpush1.msra.mxu0 %v203
    %780 = vmatprep.subr.mxu0 %v202
    %781 = vmatpush1.msra.mxu0 %v201
    %782 = vmatprep.subr.mxu0 %v200
    %783 = vmatpush1.msra.mxu0 %v199
    %784 = vmatprep.subr.mxu0 0.0
    %785 = vmatpush2.msra.mxu0 0.0
    %786 = vmatprep.subr.mxu0 0.0
    %787 = vmatpush2.msra.mxu0 0.0
    %788 = vmatprep.subr.mxu0 0.0
    %789 = vmatpush2.msra.mxu0 0.0
    %790 = vmatprep.subr.mxu0 0.0
    %791 = vmatpush2.msra.mxu0 0.0
    %792 = vmatprep.subr.mxu0 0.0
    %793 = vmatpush2.msra.mxu0 0.0
    %794 = vmatprep.subr.mxu0 0.0
    %795 = vmatpush2.msra.mxu0 0.0
    %796 = vmatprep.subr.mxu0 0.0
    %797 = vmatpush2.msra.mxu0 0.0
    %798 = vmatprep.subr.mxu0 0.0
    %799 = vmatpush2.msra.mxu0 0.0
    %800 = vmatprep.subr.mxu0 0.0
    %801 = vmatpush2.msra.mxu0 0.0
    %802 = vmatprep.subr.mxu0 0.0
    %803 = vmatpush2.msra.mxu0 0.0
    %804 = vmatprep.subr.mxu0 0.0
    %805 = vmatpush2.msra.mxu0 0.0
    %806 = vmatprep.subr.mxu0 0.0
    %807 = vmatpush2.msra.mxu0 0.0
    %808 = vmatprep.subr.mxu0 0.0
    %809 = vmatpush2.msra.mxu0 0.0
    %810 = vmatprep.subr.mxu0 0.0
    %811 = vmatpush2.msra.mxu0 0.0
    %812 = vmatprep.subr.mxu0 0.0
    %813 = vmatpush2.msra.mxu0 0.0
    %814 = vmatprep.subr.mxu0 0.0
    %815 = vmatpush2.msra.mxu0 0.0
    %816 = vmatprep.mubr.f32.mxu0 0.0
    %817 = vmatmul.mubr.f32.gmra.mxu0 %v750
    %v818 = vpop.f32.mrf.mxu0
    %v819 = vadd.f32 0.0, %v818
    %v820 = vpop.f32.mrf.mxu0
    %v821 = vadd.f32 0.0, %v820
    %822 = vdwg.mxu0
    %v825 = vrot.slane %v819, 6
    %v826 = vrot.slane %v821, 6
    %v829 = vadd.f32 %v195, %v825
    %v830 = vadd.f32 %v197, %v826
    %v831 = vxor.u32 %v829, 2147483648
    %v832 = vmul.f32 %v831, 1.442695
    %v833 = vpow.pop %v832
    %v834 = vadd.f32 %v833, 1.0
    %v835 = vrcp.pop %v834
    %v836 = vmul.f32 1.0, %v835
    %v837 = vtanh.pop %v830
    %v838 = vxor.u32 %v830, 2147483648
    %v839 = vmul.f32 %v838, 1.442695
    %v840 = vpow.pop %v839
    %v841 = vadd.f32 %v840, 1.0
    %v842 = vrcp.pop %v841
    %v843 = vmul.f32 1.0, %v842
    %v845 = vrot.slane %v744, 6
    %v847 = vmul.f32 %v836, %v845
    %v848 = vmul.f32 %v836, %v837
    %850 = vrot.lane.b32.xlu0 %v848, 64
    %v851 = vpop.permute.xlu0 %850
    %v853 = vadd.f32 %v847, %v851
    %v854 = vtanh.pop %v853
    %v855 = vmul.f32 %v843, %v854
    %v857 = vrot.slane %v855, 2
    %858 = vrot.lane.b32.xlu0 %v857, 64
    %v859 = vpop.permute.xlu0 %858
    %v860 = vsel %vm215, %v859, 0
    %862 = vmatprep.subr.mxu0 0.0
    %863 = vmatpush1.msra.mxu0 0.0
    %864 = vmatprep.subr.mxu0 0.0
    %865 = vmatpush1.msra.mxu0 0.0
    %866 = vmatprep.subr.mxu0 0.0
    %867 = vmatpush1.msra.mxu0 0.0
    %868 = vmatprep.subr.mxu0 0.0
    %869 = vmatpush1.msra.mxu0 0.0
    %870 = vmatprep.subr.mxu0 0.0
    %871 = vmatpush1.msra.mxu0 0.0
    %872 = vmatprep.subr.mxu0 0.0
    %873 = vmatpush1.msra.mxu0 0.0
    %874 = vmatprep.subr.mxu0 0.0
    %875 = vmatpush1.msra.mxu0 0.0
    %876 = vmatprep.subr.mxu0 0.0
    %877 = vmatpush1.msra.mxu0 0.0
    %878 = vmatprep.subr.mxu0 %v214
    %879 = vmatpush1.msra.mxu0 %v213
    %880 = vmatprep.subr.mxu0 %v212
    %881 = vmatpush1.msra.mxu0 %v211
    %882 = vmatprep.subr.mxu0 %v210
    %883 = vmatpush1.msra.mxu0 %v209
    %884 = vmatprep.subr.mxu0 %v208
    %885 = vmatpush1.msra.mxu0 %v207
    %886 = vmatprep.subr.mxu0 %v206
    %887 = vmatpush1.msra.mxu0 %v205
    %888 = vmatprep.subr.mxu0 %v204
    %889 = vmatpush1.msra.mxu0 %v203
    %890 = vmatprep.subr.mxu0 %v202
    %891 = vmatpush1.msra.mxu0 %v201
    %892 = vmatprep.subr.mxu0 %v200
    %893 = vmatpush1.msra.mxu0 %v199
    %894 = vmatprep.subr.mxu0 0.0
    %895 = vmatpush2.msra.mxu0 0.0
    %896 = vmatprep.subr.mxu0 0.0
    %897 = vmatpush2.msra.mxu0 0.0
    %898 = vmatprep.subr.mxu0 0.0
    %899 = vmatpush2.msra.mxu0 0.0
    %900 = vmatprep.subr.mxu0 0.0
    %901 = vmatpush2.msra.mxu0 0.0
    %902 = vmatprep.subr.mxu0 0.0
    %903 = vmatpush2.msra.mxu0 0.0
    %904 = vmatprep.subr.mxu0 0.0
    %905 = vmatpush2.msra.mxu0 0.0
    %906 = vmatprep.subr.mxu0 0.0
    %907 = vmatpush2.msra.mxu0 0.0
    %908 = vmatprep.subr.mxu0 0.0
    %909 = vmatpush2.msra.mxu0 0.0
    %910 = vmatprep.subr.mxu0 0.0
    %911 = vmatpush2.msra.mxu0 0.0
    %912 = vmatprep.subr.mxu0 0.0
    %913 = vmatpush2.msra.mxu0 0.0
    %914 = vmatprep.subr.mxu0 0.0
    %915 = vmatpush2.msra.mxu0 0.0
    %916 = vmatprep.subr.mxu0 0.0
    %917 = vmatpush2.msra.mxu0 0.0
    %918 = vmatprep.subr.mxu0 0.0
    %919 = vmatpush2.msra.mxu0 0.0
    %920 = vmatprep.subr.mxu0 0.0
    %921 = vmatpush2.msra.mxu0 0.0
    %922 = vmatprep.subr.mxu0 0.0
    %923 = vmatpush2.msra.mxu0 0.0
    %924 = vmatprep.subr.mxu0 0.0
    %925 = vmatpush2.msra.mxu0 0.0
    %926 = vmatprep.mubr.f32.mxu0 0.0
    %927 = vmatmul.mubr.f32.gmra.mxu0 %v860
    %v928 = vpop.f32.mrf.mxu0
    %v929 = vadd.f32 0.0, %v928
    %v930 = vpop.f32.mrf.mxu0
    %v931 = vadd.f32 0.0, %v930
    %932 = vdwg.mxu0
    %v935 = vrot.slane %v929, 4
    %v936 = vrot.slane %v931, 4
    %v939 = vadd.f32 %v195, %v935
    %v940 = vadd.f32 %v197, %v936
    %v941 = vxor.u32 %v939, 2147483648
    %v942 = vmul.f32 %v941, 1.442695
    %v943 = vpow.pop %v942
    %v944 = vadd.f32 %v943, 1.0
    %v945 = vrcp.pop %v944
    %v946 = vmul.f32 1.0, %v945
    %v947 = vtanh.pop %v940
    %v948 = vxor.u32 %v940, 2147483648
    %v949 = vmul.f32 %v948, 1.442695
    %v950 = vpow.pop %v949
    %v951 = vadd.f32 %v950, 1.0
    %v952 = vrcp.pop %v951
    %v953 = vmul.f32 1.0, %v952
    %v955 = vrot.slane %v853, 6
    %v957 = vmul.f32 %v946, %v955
    %v958 = vmul.f32 %v946, %v947
    %960 = vrot.lane.b32.xlu0 %v958, 64
    %v961 = vpop.permute.xlu0 %960
    %v963 = vadd.f32 %v957, %v961
    %v964 = vtanh.pop %v963
    %v965 = vmul.f32 %v953, %v964
    %v967 = vrot.slane %v965, 4
    %968 = vrot.lane.b32.xlu0 %v967, 64
    %v969 = vpop.permute.xlu0 %968
    %v970 = vsel %vm215, %v969, 0
    %972 = vmatprep.subr.mxu0 0.0
    %973 = vmatpush1.msra.mxu0 0.0
    %974 = vmatprep.subr.mxu0 0.0
    %975 = vmatpush1.msra.mxu0 0.0
    %976 = vmatprep.subr.mxu0 0.0
    %977 = vmatpush1.msra.mxu0 0.0
    %978 = vmatprep.subr.mxu0 0.0
    %979 = vmatpush1.msra.mxu0 0.0
    %980 = vmatprep.subr.mxu0 0.0
    %981 = vmatpush1.msra.mxu0 0.0
    %982 = vmatprep.subr.mxu0 0.0
    %983 = vmatpush1.msra.mxu0 0.0
    %984 = vmatprep.subr.mxu0 0.0
    %985 = vmatpush1.msra.mxu0 0.0
    %986 = vmatprep.subr.mxu0 0.0
    %987 = vmatpush1.msra.mxu0 0.0
    %988 = vmatprep.subr.mxu0 %v214
    %989 = vmatpush1.msra.mxu0 %v213
    %990 = vmatprep.subr.mxu0 %v212
    %991 = vmatpush1.msra.mxu0 %v211
    %992 = vmatprep.subr.mxu0 %v210
    %993 = vmatpush1.msra.mxu0 %v209
    %994 = vmatprep.subr.mxu0 %v208
    %995 = vmatpush1.msra.mxu0 %v207
    %996 = vmatprep.subr.mxu0 %v206
    %997 = vmatpush1.msra.mxu0 %v205
    %998 = vmatprep.subr.mxu0 %v204
    %999 = vmatpush1.msra.mxu0 %v203
    %1000 = vmatprep.subr.mxu0 %v202
    %1001 = vmatpush1.msra.mxu0 %v201
    %1002 = vmatprep.subr.mxu0 %v200
    %1003 = vmatpush1.msra.mxu0 %v199
    %1004 = vmatprep.subr.mxu0 0.0
    %1005 = vmatpush2.msra.mxu0 0.0
    %1006 = vmatprep.subr.mxu0 0.0
    %1007 = vmatpush2.msra.mxu0 0.0
    %1008 = vmatprep.subr.mxu0 0.0
    %1009 = vmatpush2.msra.mxu0 0.0
    %1010 = vmatprep.subr.mxu0 0.0
    %1011 = vmatpush2.msra.mxu0 0.0
    %1012 = vmatprep.subr.mxu0 0.0
    %1013 = vmatpush2.msra.mxu0 0.0
    %1014 = vmatprep.subr.mxu0 0.0
    %1015 = vmatpush2.msra.mxu0 0.0
    %1016 = vmatprep.subr.mxu0 0.0
    %1017 = vmatpush2.msra.mxu0 0.0
    %1018 = vmatprep.subr.mxu0 0.0
    %1019 = vmatpush2.msra.mxu0 0.0
    %1020 = vmatprep.subr.mxu0 0.0
    %1021 = vmatpush2.msra.mxu0 0.0
    %1022 = vmatprep.subr.mxu0 0.0
    %1023 = vmatpush2.msra.mxu0 0.0
    %1024 = vmatprep.subr.mxu0 0.0
    %1025 = vmatpush2.msra.mxu0 0.0
    %1026 = vmatprep.subr.mxu0 0.0
    %1027 = vmatpush2.msra.mxu0 0.0
    %1028 = vmatprep.subr.mxu0 0.0
    %1029 = vmatpush2.msra.mxu0 0.0
    %1030 = vmatprep.subr.mxu0 0.0
    %1031 = vmatpush2.msra.mxu0 0.0
    %1032 = vmatprep.subr.mxu0 0.0
    %1033 = vmatpush2.msra.mxu0 0.0
    %1034 = vmatprep.subr.mxu0 0.0
    %1035 = vmatpush2.msra.mxu0 0.0
    %1036 = vmatprep.mubr.f32.mxu0 0.0
    %1037 = vmatmul.mubr.f32.gmra.mxu0 %v970
    %v1038 = vpop.f32.mrf.mxu0
    %v1039 = vadd.f32 0.0, %v1038
    %v1040 = vpop.f32.mrf.mxu0
    %v1041 = vadd.f32 0.0, %v1040
    %1042 = vdwg.mxu0
    %v1045 = vrot.slane %v1039, 2
    %v1046 = vrot.slane %v1041, 2
    %v1049 = vadd.f32 %v195, %v1045
    %v1050 = vadd.f32 %v197, %v1046
    %v1051 = vxor.u32 %v1049, 2147483648
    %v1052 = vmul.f32 %v1051, 1.442695
    %v1053 = vpow.pop %v1052
    %v1054 = vadd.f32 %v1053, 1.0
    %v1055 = vrcp.pop %v1054
    %v1056 = vmul.f32 1.0, %v1055
    %v1057 = vtanh.pop %v1050
    %v1058 = vxor.u32 %v1050, 2147483648
    %v1059 = vmul.f32 %v1058, 1.442695
    %v1060 = vpow.pop %v1059
    %v1061 = vadd.f32 %v1060, 1.0
    %v1062 = vrcp.pop %v1061
    %v1063 = vmul.f32 1.0, %v1062
    %v1065 = vrot.slane %v963, 6
    %v1067 = vmul.f32 %v1056, %v1065
    %v1068 = vmul.f32 %v1056, %v1057
    %1070 = vrot.lane.b32.xlu0 %v1068, 64
    %v1071 = vpop.permute.xlu0 %1070
    %v1073 = vadd.f32 %v1067, %v1071
    %v1074 = vtanh.pop %v1073
    %v1075 = vmul.f32 %v1063, %v1074
    %v1076 = vmax.f32 %v1075, 0.0
    %v1077 = vld [vmem:[#allocation10 + $0x2] sm:$0x1]
    %v1078 = vld [vmem:[#allocation10 + $0x3] sm:$0x1]
    %v1080 = vrot.slane %v1076, 6
    %vm1082 = vcmask 1041920
    %v1083 = vsel %vm1082, %v1080, 0.0
    %v1084 = vrot.slane %v1083, 4
    %v1085 = vadd.f32 %v1083, %v1084
    %v1086 = vrot.slane %v1085, 2
    %v1087 = vadd.f32 %v1085, %v1086
    %v1088 = vrot.slane %v1087, 1
    %v1089 = vadd.f32 %v1087, %v1088
    %v1090 = vrcp.pop 2.0
    %v1091 = vmul.f32 %v1089, %v1090
    %v1092 = vsub.f32 %v1076, %v1091
    %v1093 = vmul.f32 %v1092, %v1092
    %v1095 = vrot.slane %v1093, 6
    %v1097 = vsel %vm1082, %v1095, 0.0
    %v1098 = vrot.slane %v1097, 4
    %v1099 = vadd.f32 %v1097, %v1098
    %v1100 = vrot.slane %v1099, 2
    %v1101 = vadd.f32 %v1099, %v1100
    %v1102 = vrot.slane %v1101, 1
    %v1103 = vadd.f32 %v1101, %v1102
    %v1104 = vmul.f32 %v1103, %v1090
    %v1105 = vadd.f32 %v1104, 1e-05
    %v1106 = vrsqrt.pop %v1105
    %v1109 = vunpack.c.l.s4 1966171168
    %v1110 = vunpack.c.0.s8 %v1109
    %v1111 = vlaneseq
    %v1112 = vshrl.u32 %v1111, 7
    %v1113 = vsub.s32 %v1110, %v1112
    %v1114 = vrot.slane %v1106, %v1113
    %v1116 = vunpack.c.l.s4 1966171168
    %v1117 = vunpack.c.0.s8 %v1116
    %v1118 = vlaneseq
    %v1119 = vshrl.u32 %v1118, 7
    %v1120 = vsub.s32 %v1117, %v1119
    %v1121 = vrot.slane %v1114, %v1120
    %1122 = vrot.lane.b32.xlu0 %v1121, 64
    %v1123 = vpop.permute.xlu0 %1122
    %v1125 = vmul.f32 %v1077, %v1123
    %v1127 = vlaneseq
    %v1128 = vshrl.u32 %v1127, 7
    %v1129 = vsub.s32 0, %v1128
    %v1130 = vrot.slane %v1125, %v1129
    %1131 = vrot.lane.b32.xlu0 %v1130, 64
    %v1132 = vpop.permute.xlu0 %1131
    %v1134 = vmul.f32 %v1092, %v1132
    %v1136 = vlaneseq
    %v1137 = vshrl.u32 %v1136, 7
    %v1138 = vsub.s32 0, %v1137
    %v1139 = vrot.slane %v1078, %v1138
    %1140 = vrot.lane.b32.xlu0 %v1139, 64
    %v1141 = vpop.permute.xlu0 %1140
    %v1143 = vadd.f32 %v1134, %v1141
    %v1144 = vld [vmem:[#allocation5] sm:$0xff]
    %v1145 = vld [vmem:[#allocation5 + $0x8] sm:$0xff]
    %v1146 = vld [vmem:[#allocation5 + $0x10] sm:$0xff]
    %v1147 = vld [vmem:[#allocation5 + $0x18] sm:$0xff]
    %v1148 = vld [vmem:[#allocation5 + $0x20] sm:$0xff]
    %v1149 = vld [vmem:[#allocation5 + $0x28] sm:$0xff]
    %v1150 = vld [vmem:[#allocation5 + $0x30] sm:$0xff]
    %v1151 = vld [vmem:[#allocation5 + $0x38] sm:$0xff]
    %v1152 = vld [vmem:[#allocation5 + $0x40] sm:$0xff]
    %v1153 = vld [vmem:[#allocation5 + $0x48] sm:$0xff]
    %v1154 = vld [vmem:[#allocation5 + $0x50] sm:$0xff]
    %v1155 = vld [vmem:[#allocation5 + $0x58] sm:$0xff]
    %v1156 = vld [vmem:[#allocation5 + $0x60] sm:$0xff]
    %v1157 = vld [vmem:[#allocation5 + $0x68] sm:$0xff]
    %v1158 = vld [vmem:[#allocation5 + $0x70] sm:$0xff]
    %v1159 = vld [vmem:[#allocation5 + $0x78] sm:$0xff]
    %v1160 = vld [vmem:[#allocation5 + $0x80] sm:$0xff]
    %v1161 = vld [vmem:[#allocation5 + $0x88] sm:$0xff]
    %v1162 = vld [vmem:[#allocation5 + $0x90] sm:$0xff]
    %v1163 = vld [vmem:[#allocation5 + $0x98] sm:$0xff]
    %v1164 = vld [vmem:[#allocation5 + $0xa0] sm:$0xff]
    %v1165 = vld [vmem:[#allocation5 + $0xa8] sm:$0xff]
    %v1166 = vld [vmem:[#allocation5 + $0xb0] sm:$0xff]
    %v1167 = vld [vmem:[#allocation5 + $0xb8] sm:$0xff]
    %v1168 = vld [vmem:[#allocation5 + $0xc0] sm:$0xff]
    %v1169 = vld [vmem:[#allocation5 + $0xc8] sm:$0xff]
    %v1170 = vld [vmem:[#allocation5 + $0xd0] sm:$0xff]
    %v1171 = vld [vmem:[#allocation5 + $0xd8] sm:$0xff]
    %v1172 = vld [vmem:[#allocation5 + $0xe0] sm:$0xff]
    %v1173 = vld [vmem:[#allocation5 + $0xe8] sm:$0xff]
    %v1174 = vld [vmem:[#allocation5 + $0xf0] sm:$0xff]
    %v1175 = vld [vmem:[#allocation5 + $0xf8] sm:$0xff]
    %v1176 = vld [vmem:[#allocation5 + $0x100] sm:$0xff]
    %v1177 = vld [vmem:[#allocation5 + $0x108] sm:$0xff]
    %v1178 = vld [vmem:[#allocation5 + $0x110] sm:$0xff]
    %v1179 = vld [vmem:[#allocation5 + $0x118] sm:$0xff]
    %v1180 = vld [vmem:[#allocation5 + $0x120] sm:$0xff]
    %v1181 = vld [vmem:[#allocation5 + $0x128] sm:$0xff]
    %v1182 = vld [vmem:[#allocation5 + $0x130] sm:$0xff]
    %v1183 = vld [vmem:[#allocation5 + $0x138] sm:$0xff]
    %v1184 = vld [vmem:[#allocation5 + $0x140] sm:$0xff]
    %v1185 = vld [vmem:[#allocation5 + $0x148] sm:$0xff]
    %v1186 = vld [vmem:[#allocation5 + $0x150] sm:$0xff]
    %v1187 = vld [vmem:[#allocation5 + $0x158] sm:$0xff]
    %v1188 = vld [vmem:[#allocation5 + $0x160] sm:$0xff]
    %v1189 = vld [vmem:[#allocation5 + $0x168] sm:$0xff]
    %v1190 = vld [vmem:[#allocation5 + $0x170] sm:$0xff]
    %v1191 = vld [vmem:[#allocation5 + $0x178] sm:$0xff]
    %v1192 = vld [vmem:[#allocation5 + $0x180] sm:$0xff]
    %v1193 = vld [vmem:[#allocation5 + $0x188] sm:$0xff]
    %v1194 = vld [vmem:[#allocation5 + $0x190] sm:$0xff]
    %v1195 = vld [vmem:[#allocation5 + $0x198] sm:$0xff]
    %v1196 = vld [vmem:[#allocation5 + $0x1a0] sm:$0xff]
    %v1197 = vld [vmem:[#allocation5 + $0x1a8] sm:$0xff]
    %v1198 = vld [vmem:[#allocation5 + $0x1b0] sm:$0xff]
    %v1199 = vld [vmem:[#allocation5 + $0x1b8] sm:$0xff]
    %v1200 = vld [vmem:[#allocation5 + $0x1c0] sm:$0xff]
    %v1201 = vld [vmem:[#allocation5 + $0x1c8] sm:$0xff]
    %v1202 = vld [vmem:[#allocation5 + $0x1d0] sm:$0xff]
    %v1203 = vld [vmem:[#allocation5 + $0x1d8] sm:$0xff]
    %v1204 = vld [vmem:[#allocation5 + $0x1e0] sm:$0xff]
    %v1205 = vld [vmem:[#allocation5 + $0x1e8] sm:$0xff]
    %v1206 = vld [vmem:[#allocation5 + $0x1f0] sm:$0xff]
    %v1207 = vld [vmem:[#allocation5 + $0x1f8] sm:$0xff]
    %v1208 = vld [vmem:[#allocation10 + $0x4] sm:$0xff]
    %v1210 = vlaneseq
    %v1211 = vshrl.u32 %v1210, 7
    %v1212 = vsub.s32 0, %v1211
    %v1213 = vrot.slane %v1208, %v1212
    %v1214 = vlaneseq
    %v1215 = vshrl.u32 %v1214, 7
    %v1216 = vsub.s32 1, %v1215
    %v1217 = vrot.slane %v1208, %v1216
    %v1218 = vlaneseq
    %v1219 = vshrl.u32 %v1218, 7
    %v1220 = vsub.s32 2, %v1219
    %v1221 = vrot.slane %v1208, %v1220
    %v1222 = vlaneseq
    %v1223 = vshrl.u32 %v1222, 7
    %v1224 = vsub.s32 3, %v1223
    %v1225 = vrot.slane %v1208, %v1224
    %v1226 = vlaneseq
    %v1227 = vshrl.u32 %v1226, 7
    %v1228 = vsub.s32 4, %v1227
    %v1229 = vrot.slane %v1208, %v1228
    %v1230 = vlaneseq
    %v1231 = vshrl.u32 %v1230, 7
    %v1232 = vsub.s32 5, %v1231
    %v1233 = vrot.slane %v1208, %v1232
    %v1234 = vlaneseq
    %v1235 = vshrl.u32 %v1234, 7
    %v1236 = vsub.s32 6, %v1235
    %v1237 = vrot.slane %v1208, %v1236
    %v1238 = vlaneseq
    %v1239 = vshrl.u32 %v1238, 7
    %v1240 = vsub.s32 7, %v1239
    %v1241 = vrot.slane %v1208, %v1240
    %v1251 = vrot.slane %v1143, 6
    %1252 = vrot.lane.b32.xlu0 %v1251, 64
    %v1253 = vpop.permute.xlu0 %1252
    %v1254 = vsel %vm215, %v1253, 0
    %1256 = vmatprep.subr.mxu0 0.0
    %1257 = vmatpush1.msra.mxu0 0.0
    %1258 = vmatprep.subr.mxu0 0.0
    %1259 = vmatpush1.msra.mxu0 0.0
    %1260 = vmatprep.subr.mxu0 0.0
    %1261 = vmatpush1.msra.mxu0 0.0
    %1262 = vmatprep.subr.mxu0 0.0
    %1263 = vmatpush1.msra.mxu0 0.0
    %1264 = vmatprep.subr.mxu0 0.0
    %1265 = vmatpush1.msra.mxu0 0.0
    %1266 = vmatprep.subr.mxu0 0.0
    %1267 = vmatpush1.msra.mxu0 0.0
    %1268 = vmatprep.subr.mxu0 0.0
    %1269 = vmatpush1.msra.mxu0 0.0
    %1270 = vmatprep.subr.mxu0 0.0
    %1271 = vmatpush1.msra.mxu0 0.0
    %1272 = vmatprep.subr.mxu0 %v1201
    %1273 = vmatpush1.msra.mxu0 %v1200
    %1274 = vmatprep.subr.mxu0 %v1193
    %1275 = vmatpush1.msra.mxu0 %v1192
    %1276 = vmatprep.subr.mxu0 %v1185
    %1277 = vmatpush1.msra.mxu0 %v1184
    %1278 = vmatprep.subr.mxu0 %v1177
    %1279 = vmatpush1.msra.mxu0 %v1176
    %1280 = vmatprep.subr.mxu0 %v1169
    %1281 = vmatpush1.msra.mxu0 %v1168
    %1282 = vmatprep.subr.mxu0 %v1161
    %1283 = vmatpush1.msra.mxu0 %v1160
    %1284 = vmatprep.subr.mxu0 %v1153
    %1285 = vmatpush1.msra.mxu0 %v1152
    %1286 = vmatprep.subr.mxu0 %v1145
    %1287 = vmatpush1.msra.mxu0 %v1144
    %1288 = vmatprep.subr.mxu0 0.0
    %1289 = vmatpush2.msra.mxu0 0.0
    %1290 = vmatprep.subr.mxu0 0.0
    %1291 = vmatpush2.msra.mxu0 0.0
    %1292 = vmatprep.subr.mxu0 0.0
    %1293 = vmatpush2.msra.mxu0 0.0
    %1294 = vmatprep.subr.mxu0 0.0
    %1295 = vmatpush2.msra.mxu0 0.0
    %1296 = vmatprep.subr.mxu0 0.0
    %1297 = vmatpush2.msra.mxu0 0.0
    %1298 = vmatprep.subr.mxu0 0.0
    %1299 = vmatpush2.msra.mxu0 0.0
    %1300 = vmatprep.subr.mxu0 0.0
    %1301 = vmatpush2.msra.mxu0 0.0
    %1302 = vmatprep.subr.mxu0 0.0
    %1303 = vmatpush2.msra.mxu0 0.0
    %1304 = vmatprep.subr.mxu0 0.0
    %1305 = vmatpush2.msra.mxu0 0.0
    %1306 = vmatprep.subr.mxu0 0.0
    %1307 = vmatpush2.msra.mxu0 0.0
    %1308 = vmatprep.subr.mxu0 0.0
    %1309 = vmatpush2.msra.mxu0 0.0
    %1310 = vmatprep.subr.mxu0 0.0
    %1311 = vmatpush2.msra.mxu0 0.0
    %1312 = vmatprep.subr.mxu0 0.0
    %1313 = vmatpush2.msra.mxu0 0.0
    %1314 = vmatprep.subr.mxu0 0.0
    %1315 = vmatpush2.msra.mxu0 0.0
    %1316 = vmatprep.subr.mxu0 0.0
    %1317 = vmatpush2.msra.mxu0 0.0
    %1318 = vmatprep.subr.mxu0 0.0
    %1319 = vmatpush2.msra.mxu0 0.0
    %1320 = vmatprep.mubr.f32.mxu0 0.0
    %1321 = vmatmul.mubr.f32.gmra.mxu0 %v1254
    %v1322 = vpop.f32.mrf.mxu0
    %v1323 = vadd.f32 %v1213, %v1322
    %v1324 = vpop.f32.mrf.mxu0
    %v1325 = vadd.f32 %v1217, %v1324
    %1326 = vdwg.mxu0
    %1327 = vmatprep.subr.mxu0 0.0
    %1328 = vmatpush1.msra.mxu0 0.0
    %1329 = vmatprep.subr.mxu0 0.0
    %1330 = vmatpush1.msra.mxu0 0.0
    %1331 = vmatprep.subr.mxu0 0.0
    %1332 = vmatpush1.msra.mxu0 0.0
    %1333 = vmatprep.subr.mxu0 0.0
    %1334 = vmatpush1.msra.mxu0 0.0
    %1335 = vmatprep.subr.mxu0 0.0
    %1336 = vmatpush1.msra.mxu0 0.0
    %1337 = vmatprep.subr.mxu0 0.0
    %1338 = vmatpush1.msra.mxu0 0.0
    %1339 = vmatprep.subr.mxu0 0.0
    %1340 = vmatpush1.msra.mxu0 0.0
    %1341 = vmatprep.subr.mxu0 0.0
    %1342 = vmatpush1.msra.mxu0 0.0
    %1343 = vmatprep.subr.mxu0 %v1203
    %1344 = vmatpush1.msra.mxu0 %v1202
    %1345 = vmatprep.subr.mxu0 %v1195
    %1346 = vmatpush1.msra.mxu0 %v1194
    %1347 = vmatprep.subr.mxu0 %v1187
    %1348 = vmatpush1.msra.mxu0 %v1186
    %1349 = vmatprep.subr.mxu0 %v1179
    %1350 = vmatpush1.msra.mxu0 %v1178
    %1351 = vmatprep.subr.mxu0 %v1171
    %1352 = vmatpush1.msra.mxu0 %v1170
    %1353 = vmatprep.subr.mxu0 %v1163
    %1354 = vmatpush1.msra.mxu0 %v1162
    %1355 = vmatprep.subr.mxu0 %v1155
    %1356 = vmatpush1.msra.mxu0 %v1154
    %1357 = vmatprep.subr.mxu0 %v1147
    %1358 = vmatpush1.msra.mxu0 %v1146
    %1359 = vmatprep.subr.mxu0 0.0
    %1360 = vmatpush2.msra.mxu0 0.0
    %1361 = vmatprep.subr.mxu0 0.0
    %1362 = vmatpush2.msra.mxu0 0.0
    %1363 = vmatprep.subr.mxu0 0.0
    %1364 = vmatpush2.msra.mxu0 0.0
    %1365 = vmatprep.subr.mxu0 0.0
    %1366 = vmatpush2.msra.mxu0 0.0
    %1367 = vmatprep.subr.mxu0 0.0
    %1368 = vmatpush2.msra.mxu0 0.0
    %1369 = vmatprep.subr.mxu0 0.0
    %1370 = vmatpush2.msra.mxu0 0.0
    %1371 = vmatprep.subr.mxu0 0.0
    %1372 = vmatpush2.msra.mxu0 0.0
    %1373 = vmatprep.subr.mxu0 0.0
    %1374 = vmatpush2.msra.mxu0 0.0
    %1375 = vmatprep.subr.mxu0 0.0
    %1376 = vmatpush2.msra.mxu0 0.0
    %1377 = vmatprep.subr.mxu0 0.0
    %1378 = vmatpush2.msra.mxu0 0.0
    %1379 = vmatprep.subr.mxu0 0.0
    %1380 = vmatpush2.msra.mxu0 0.0
    %1381 = vmatprep.subr.mxu0 0.0
    %1382 = vmatpush2.msra.mxu0 0.0
    %1383 = vmatprep.subr.mxu0 0.0
    %1384 = vmatpush2.msra.mxu0 0.0
    %1385 = vmatprep.subr.mxu0 0.0
    %1386 = vmatpush2.msra.mxu0 0.0
    %1387 = vmatprep.subr.mxu0 0.0
    %1388 = vmatpush2.msra.mxu0 0.0
    %1389 = vmatprep.subr.mxu0 0.0
    %1390 = vmatpush2.msra.mxu0 0.0
    %1391 = vmatprep.mubr.f32.mxu0 0.0
    %1392 = vmatmul.mubr.f32.gmra.mxu0 %v1254
    %v1393 = vpop.f32.mrf.mxu0
    %v1394 = vadd.f32 %v1221, %v1393
    %v1395 = vpop.f32.mrf.mxu0
    %v1396 = vadd.f32 %v1225, %v1395
    %1397 = vdwg.mxu0
    %1398 = vmatprep.subr.mxu0 0.0
    %1399 = vmatpush1.msra.mxu0 0.0
    %1400 = vmatprep.subr.mxu0 0.0
    %1401 = vmatpush1.msra.mxu0 0.0
    %1402 = vmatprep.subr.mxu0 0.0
    %1403 = vmatpush1.msra.mxu0 0.0
    %1404 = vmatprep.subr.mxu0 0.0
    %1405 = vmatpush1.msra.mxu0 0.0
    %1406 = vmatprep.subr.mxu0 0.0
    %1407 = vmatpush1.msra.mxu0 0.0
    %1408 = vmatprep.subr.mxu0 0.0
    %1409 = vmatpush1.msra.mxu0 0.0
    %1410 = vmatprep.subr.mxu0 0.0
    %1411 = vmatpush1.msra.mxu0 0.0
    %1412 = vmatprep.subr.mxu0 0.0
    %1413 = vmatpush1.msra.mxu0 0.0
    %1414 = vmatprep.subr.mxu0 %v1205
    %1415 = vmatpush1.msra.mxu0 %v1204
    %1416 = vmatprep.subr.mxu0 %v1197
    %1417 = vmatpush1.msra.mxu0 %v1196
    %1418 = vmatprep.subr.mxu0 %v1189
    %1419 = vmatpush1.msra.mxu0 %v1188
    %1420 = vmatprep.subr.mxu0 %v1181
    %1421 = vmatpush1.msra.mxu0 %v1180
    %1422 = vmatprep.subr.mxu0 %v1173
    %1423 = vmatpush1.msra.mxu0 %v1172
    %1424 = vmatprep.subr.mxu0 %v1165
    %1425 = vmatpush1.msra.mxu0 %v1164
    %1426 = vmatprep.subr.mxu0 %v1157
    %1427 = vmatpush1.msra.mxu0 %v1156
    %1428 = vmatprep.subr.mxu0 %v1149
    %1429 = vmatpush1.msra.mxu0 %v1148
    %1430 = vmatprep.subr.mxu0 0.0
    %1431 = vmatpush2.msra.mxu0 0.0
    %1432 = vmatprep.subr.mxu0 0.0
    %1433 = vmatpush2.msra.mxu0 0.0
    %1434 = vmatprep.subr.mxu0 0.0
    %1435 = vmatpush2.msra.mxu0 0.0
    %1436 = vmatprep.subr.mxu0 0.0
    %1437 = vmatpush2.msra.mxu0 0.0
    %1438 = vmatprep.subr.mxu0 0.0
    %1439 = vmatpush2.msra.mxu0 0.0
    %1440 = vmatprep.subr.mxu0 0.0
    %1441 = vmatpush2.msra.mxu0 0.0
    %1442 = vmatprep.subr.mxu0 0.0
    %1443 = vmatpush2.msra.mxu0 0.0
    %1444 = vmatprep.subr.mxu0 0.0
    %1445 = vmatpush2.msra.mxu0 0.0
    %1446 = vmatprep.subr.mxu0 0.0
    %1447 = vmatpush2.msra.mxu0 0.0
    %1448 = vmatprep.subr.mxu0 0.0
    %1449 = vmatpush2.msra.mxu0 0.0
    %1450 = vmatprep.subr.mxu0 0.0
    %1451 = vmatpush2.msra.mxu0 0.0
    %1452 = vmatprep.subr.mxu0 0.0
    %1453 = vmatpush2.msra.mxu0 0.0
    %1454 = vmatprep.subr.mxu0 0.0
    %1455 = vmatpush2.msra.mxu0 0.0
    %1456 = vmatprep.subr.mxu0 0.0
    %1457 = vmatpush2.msra.mxu0 0.0
    %1458 = vmatprep.subr.mxu0 0.0
    %1459 = vmatpush2.msra.mxu0 0.0
    %1460 = vmatprep.subr.mxu0 0.0
    %1461 = vmatpush2.msra.mxu0 0.0
    %1462 = vmatprep.mubr.f32.mxu0 0.0
    %1463 = vmatmul.mubr.f32.gmra.mxu0 %v1254
    %v1464 = vpop.f32.mrf.mxu0
    %v1465 = vadd.f32 %v1229, %v1464
    %v1466 = vpop.f32.mrf.mxu0
    %v1467 = vadd.f32 %v1233, %v1466
    %1468 = vdwg.mxu0
    %1469 = vmatprep.subr.mxu0 0.0
    %1470 = vmatpush1.msra.mxu0 0.0
    %1471 = vmatprep.subr.mxu0 0.0
    %1472 = vmatpush1.msra.mxu0 0.0
    %1473 = vmatprep.subr.mxu0 0.0
    %1474 = vmatpush1.msra.mxu0 0.0
    %1475 = vmatprep.subr.mxu0 0.0
    %1476 = vmatpush1.msra.mxu0 0.0
    %1477 = vmatprep.subr.mxu0 0.0
    %1478 = vmatpush1.msra.mxu0 0.0
    %1479 = vmatprep.subr.mxu0 0.0
    %1480 = vmatpush1.msra.mxu0 0.0
    %1481 = vmatprep.subr.mxu0 0.0
    %1482 = vmatpush1.msra.mxu0 0.0
    %1483 = vmatprep.subr.mxu0 0.0
    %1484 = vmatpush1.msra.mxu0 0.0
    %1485 = vmatprep.subr.mxu0 %v1207
    %1486 = vmatpush1.msra.mxu0 %v1206
    %1487 = vmatprep.subr.mxu0 %v1199
    %1488 = vmatpush1.msra.mxu0 %v1198
    %1489 = vmatprep.subr.mxu0 %v1191
    %1490 = vmatpush1.msra.mxu0 %v1190
    %1491 = vmatprep.subr.mxu0 %v1183
    %1492 = vmatpush1.msra.mxu0 %v1182
    %1493 = vmatprep.subr.mxu0 %v1175
    %1494 = vmatpush1.msra.mxu0 %v1174
    %1495 = vmatprep.subr.mxu0 %v1167
    %1496 = vmatpush1.msra.mxu0 %v1166
    %1497 = vmatprep.subr.mxu0 %v1159
    %1498 = vmatpush1.msra.mxu0 %v1158
    %1499 = vmatprep.subr.mxu0 %v1151
    %1500 = vmatpush1.msra.mxu0 %v1150
    %1501 = vmatprep.subr.mxu0 0.0
    %1502 = vmatpush2.msra.mxu0 0.0
    %1503 = vmatprep.subr.mxu0 0.0
    %1504 = vmatpush2.msra.mxu0 0.0
    %1505 = vmatprep.subr.mxu0 0.0
    %1506 = vmatpush2.msra.mxu0 0.0
    %1507 = vmatprep.subr.mxu0 0.0
    %1508 = vmatpush2.msra.mxu0 0.0
    %1509 = vmatprep.subr.mxu0 0.0
    %1510 = vmatpush2.msra.mxu0 0.0
    %1511 = vmatprep.subr.mxu0 0.0
    %1512 = vmatpush2.msra.mxu0 0.0
    %1513 = vmatprep.subr.mxu0 0.0
    %1514 = vmatpush2.msra.mxu0 0.0
    %1515 = vmatprep.subr.mxu0 0.0
    %1516 = vmatpush2.msra.mxu0 0.0
    %1517 = vmatprep.subr.mxu0 0.0
    %1518 = vmatpush2.msra.mxu0 0.0
    %1519 = vmatprep.subr.mxu0 0.0
    %1520 = vmatpush2.msra.mxu0 0.0
    %1521 = vmatprep.subr.mxu0 0.0
    %1522 = vmatpush2.msra.mxu0 0.0
    %1523 = vmatprep.subr.mxu0 0.0
    %1524 = vmatpush2.msra.mxu0 0.0
    %1525 = vmatprep.subr.mxu0 0.0
    %1526 = vmatpush2.msra.mxu0 0.0
    %1527 = vmatprep.subr.mxu0 0.0
    %1528 = vmatpush2.msra.mxu0 0.0
    %1529 = vmatprep.subr.mxu0 0.0
    %1530 = vmatpush2.msra.mxu0 0.0
    %1531 = vmatprep.subr.mxu0 0.0
    %1532 = vmatpush2.msra.mxu0 0.0
    %1533 = vmatprep.mubr.f32.mxu0 0.0
    %1534 = vmatmul.mubr.f32.gmra.mxu0 %v1254
    %v1535 = vpop.f32.mrf.mxu0
    %v1536 = vadd.f32 %v1237, %v1535
    %v1537 = vpop.f32.mrf.mxu0
    %v1538 = vadd.f32 %v1241, %v1537
    %1539 = vdwg.mxu0
    %v1540 = vmax.f32 %v1323, 0.0
    %v1541 = vmax.f32 %v1325, 0.0
    %v1542 = vmax.f32 %v1394, 0.0
    %v1543 = vmax.f32 %v1396, 0.0
    %v1544 = vmax.f32 %v1465, 0.0
    %v1545 = vmax.f32 %v1467, 0.0
    %v1546 = vmax.f32 %v1536, 0.0
    %v1547 = vmax.f32 %v1538, 0.0
    %v1548 = vld [vmem:[#allocation10 + $0xc] sm:$0xff]
    %v1549 = vld [vmem:[#allocation10 + $0x14] sm:$0xff]
    %vm1550 = vcmask 1041408
    %v1551 = vsel %vm1550, %v1540, 0.0
    %v1552 = vrot.slane %v1551, 4
    %v1553 = vadd.f32 %v1551, %v1552
    %v1554 = vrot.slane %v1553, 2
    %v1555 = vadd.f32 %v1553, %v1554
    %v1556 = vrot.slane %v1555, 1
    %v1557 = vadd.f32 %v1555, %v1556
    %v1558 = vsel %vm1550, %v1541, 0.0
    %v1559 = vrot.slane %v1558, 4
    %v1560 = vadd.f32 %v1558, %v1559
    %v1561 = vrot.slane %v1560, 2
    %v1562 = vadd.f32 %v1560, %v1561
    %v1563 = vrot.slane %v1562, 1
    %v1564 = vadd.f32 %v1562, %v1563
    %v1565 = vsel %vm1550, %v1542, 0.0
    %v1566 = vrot.slane %v1565, 4
    %v1567 = vadd.f32 %v1565, %v1566
    %v1568 = vrot.slane %v1567, 2
    %v1569 = vadd.f32 %v1567, %v1568
    %v1570 = vrot.slane %v1569, 1
    %v1571 = vadd.f32 %v1569, %v1570
    %v1572 = vsel %vm1550, %v1543, 0.0
    %v1573 = vrot.slane %v1572, 4
    %v1574 = vadd.f32 %v1572, %v1573
    %v1575 = vrot.slane %v1574, 2
    %v1576 = vadd.f32 %v1574, %v1575
    %v1577 = vrot.slane %v1576, 1
    %v1578 = vadd.f32 %v1576, %v1577
    %v1579 = vsel %vm1550, %v1544, 0.0
    %v1580 = vrot.slane %v1579, 4
    %v1581 = vadd.f32 %v1579, %v1580
    %v1582 = vrot.slane %v1581, 2
    %v1583 = vadd.f32 %v1581, %v1582
    %v1584 = vrot.slane %v1583, 1
    %v1585 = vadd.f32 %v1583, %v1584
    %v1586 = vsel %vm1550, %v1545, 0.0
    %v1587 = vrot.slane %v1586, 4
    %v1588 = vadd.f32 %v1586, %v1587
    %v1589 = vrot.slane %v1588, 2
    %v1590 = vadd.f32 %v1588, %v1589
    %v1591 = vrot.slane %v1590, 1
    %v1592 = vadd.f32 %v1590, %v1591
    %v1593 = vsel %vm1550, %v1546, 0.0
    %v1594 = vrot.slane %v1593, 4
    %v1595 = vadd.f32 %v1593, %v1594
    %v1596 = vrot.slane %v1595, 2
    %v1597 = vadd.f32 %v1595, %v1596
    %v1598 = vrot.slane %v1597, 1
    %v1599 = vadd.f32 %v1597, %v1598
    %v1600 = vsel %vm1550, %v1547, 0.0
    %v1601 = vrot.slane %v1600, 4
    %v1602 = vadd.f32 %v1600, %v1601
    %v1603 = vrot.slane %v1602, 2
    %v1604 = vadd.f32 %v1602, %v1603
    %v1605 = vrot.slane %v1604, 1
    %v1606 = vadd.f32 %v1604, %v1605
    %v1607 = vmul.f32 %v1557, %v1090
    %v1608 = vmul.f32 %v1564, %v1090
    %v1609 = vmul.f32 %v1571, %v1090
    %v1610 = vmul.f32 %v1578, %v1090
    %v1611 = vmul.f32 %v1585, %v1090
    %v1612 = vmul.f32 %v1592, %v1090
    %v1613 = vmul.f32 %v1599, %v1090
    %v1614 = vmul.f32 %v1606, %v1090
    %v1615 = vsub.f32 %v1540, %v1607
    %v1616 = vsub.f32 %v1541, %v1608
    %v1617 = vsub.f32 %v1542, %v1609
    %v1618 = vsub.f32 %v1543, %v1610
    %v1619 = vsub.f32 %v1544, %v1611
    %v1620 = vsub.f32 %v1545, %v1612
    %v1621 = vsub.f32 %v1546, %v1613
    %v1622 = vsub.f32 %v1547, %v1614
    %v1623 = vmul.f32 %v1615, %v1615
    %v1624 = vmul.f32 %v1616, %v1616
    %v1625 = vmul.f32 %v1617, %v1617
    %v1626 = vmul.f32 %v1618, %v1618
    %v1627 = vmul.f32 %v1619, %v1619
    %v1628 = vmul.f32 %v1620, %v1620
    %v1629 = vmul.f32 %v1621, %v1621
    %v1630 = vmul.f32 %v1622, %v1622
    %v1631 = vsel %vm1550, %v1623, 0.0
    %v1632 = vrot.slane %v1631, 4
    %v1633 = vadd.f32 %v1631, %v1632
    %v1634 = vrot.slane %v1633, 2
    %v1635 = vadd.f32 %v1633, %v1634
    %v1636 = vrot.slane %v1635, 1
    %v1637 = vadd.f32 %v1635, %v1636
    %v1638 = vsel %vm1550, %v1624, 0.0
    %v1639 = vrot.slane %v1638, 4
    %v1640 = vadd.f32 %v1638, %v1639
    %v1641 = vrot.slane %v1640, 2
    %v1642 = vadd.f32 %v1640, %v1641
    %v1643 = vrot.slane %v1642, 1
    %v1644 = vadd.f32 %v1642, %v1643
    %v1645 = vsel %vm1550, %v1625, 0.0
    %v1646 = vrot.slane %v1645, 4
    %v1647 = vadd.f32 %v1645, %v1646
    %v1648 = vrot.slane %v1647, 2
    %v1649 = vadd.f32 %v1647, %v1648
    %v1650 = vrot.slane %v1649, 1
    %v1651 = vadd.f32 %v1649, %v1650
    %v1652 = vsel %vm1550, %v1626, 0.0
    %v1653 = vrot.slane %v1652, 4
    %v1654 = vadd.f32 %v1652, %v1653
    %v1655 = vrot.slane %v1654, 2
    %v1656 = vadd.f32 %v1654, %v1655
    %v1657 = vrot.slane %v1656, 1
    %v1658 = vadd.f32 %v1656, %v1657
    %v1659 = vsel %vm1550, %v1627, 0.0
    %v1660 = vrot.slane %v1659, 4
    %v1661 = vadd.f32 %v1659, %v1660
    %v1662 = vrot.slane %v1661, 2
    %v1663 = vadd.f32 %v1661, %v1662
    %v1664 = vrot.slane %v1663, 1
    %v1665 = vadd.f32 %v1663, %v1664
    %v1666 = vsel %vm1550, %v1628, 0.0
    %v1667 = vrot.slane %v1666, 4
    %v1668 = vadd.f32 %v1666, %v1667
    %v1669 = vrot.slane %v1668, 2
    %v1670 = vadd.f32 %v1668, %v1669
    %v1671 = vrot.slane %v1670, 1
    %v1672 = vadd.f32 %v1670, %v1671
    %v1673 = vsel %vm1550, %v1629, 0.0
    %v1674 = vrot.slane %v1673, 4
    %v1675 = vadd.f32 %v1673, %v1674
    %v1676 = vrot.slane %v1675, 2
    %v1677 = vadd.f32 %v1675, %v1676
    %v1678 = vrot.slane %v1677, 1
    %v1679 = vadd.f32 %v1677, %v1678
    %v1680 = vsel %vm1550, %v1630, 0.0
    %v1681 = vrot.slane %v1680, 4
    %v1682 = vadd.f32 %v1680, %v1681
    %v1683 = vrot.slane %v1682, 2
    %v1684 = vadd.f32 %v1682, %v1683
    %v1685 = vrot.slane %v1684, 1
    %v1686 = vadd.f32 %v1684, %v1685
    %v1687 = vmul.f32 %v1637, %v1090
    %v1688 = vmul.f32 %v1644, %v1090
    %v1689 = vmul.f32 %v1651, %v1090
    %v1690 = vmul.f32 %v1658, %v1090
    %v1691 = vmul.f32 %v1665, %v1090
    %v1692 = vmul.f32 %v1672, %v1090
    %v1693 = vmul.f32 %v1679, %v1090
    %v1694 = vmul.f32 %v1686, %v1090
    %v1695 = vadd.f32 %v1687, 1e-05
    %v1696 = vadd.f32 %v1688, 1e-05
    %v1697 = vadd.f32 %v1689, 1e-05
    %v1698 = vadd.f32 %v1690, 1e-05
    %v1699 = vadd.f32 %v1691, 1e-05
    %v1700 = vadd.f32 %v1692, 1e-05
    %v1701 = vadd.f32 %v1693, 1e-05
    %v1702 = vadd.f32 %v1694, 1e-05
    %v1703 = vrsqrt.pop %v1695
    %v1704 = vrsqrt.pop %v1696
    %v1705 = vrsqrt.pop %v1697
    %v1706 = vrsqrt.pop %v1698
    %v1707 = vrsqrt.pop %v1699
    %v1708 = vrsqrt.pop %v1700
    %v1709 = vrsqrt.pop %v1701
    %v1710 = vrsqrt.pop %v1702
    %v1719 = vcombine.low %v1703, %v1704
    %v1720 = vcombine.low %v1705, %v1706
    %v1721 = vcombine.low %v1707, %v1708
    %v1722 = vcombine.low %v1709, %v1710
    %v1724 = vunpack.c.l.s4 1966171168
    %v1725 = vunpack.c.0.s8 %v1724
    %v1726 = vlaneseq
    %v1727 = vshrl.u32 %v1726, 7
    %v1728 = vsub.s32 %v1725, %v1727
    %v1729 = vrot.slane %v1719, %v1728
    %v1731 = vunpack.c.l.s4 1966171168
    %v1732 = vunpack.c.0.s8 %v1731
    %v1733 = vlaneseq
    %v1734 = vshrl.u32 %v1733, 7
    %v1735 = vsub.s32 %v1732, %v1734
    %v1736 = vrot.slane %v1720, %v1735
    %v1738 = vunpack.c.l.s4 1966171168
    %v1739 = vunpack.c.0.s8 %v1738
    %v1740 = vlaneseq
    %v1741 = vshrl.u32 %v1740, 7
    %v1742 = vsub.s32 %v1739, %v1741
    %v1743 = vrot.slane %v1721, %v1742
    %v1745 = vunpack.c.l.s4 1966171168
    %v1746 = vunpack.c.0.s8 %v1745
    %v1747 = vlaneseq
    %v1748 = vshrl.u32 %v1747, 7
    %v1749 = vsub.s32 %v1746, %v1748
    %v1750 = vrot.slane %v1722, %v1749
    %v1751 = vcombine.low %v1729, %v1736
    %v1752 = vcombine.low %v1743, %v1750
    %v1754 = vunpack.c.l.s4 1966171168
    %v1755 = vunpack.c.0.s8 %v1754
    %v1756 = vlaneseq
    %v1757 = vshrl.u32 %v1756, 7
    %v1758 = vsub.s32 %v1755, %v1757
    %v1759 = vrot.slane %v1751, %v1758
    %v1761 = vunpack.c.l.s4 1966171168
    %v1762 = vunpack.c.0.s8 %v1761
    %v1763 = vlaneseq
    %v1764 = vshrl.u32 %v1763, 7
    %v1765 = vsub.s32 %v1762, %v1764
    %v1766 = vrot.slane %v1752, %v1765
    %v1767 = vcombine.low %v1759, %v1766
    %v1769 = vmul.f32 %v1548, %v1767
    %v1771 = vlaneseq
    %v1772 = vshrl.u32 %v1771, 7
    %v1773 = vsub.s32 0, %v1772
    %v1774 = vrot.slane %v1769, %v1773
    %v1775 = vlaneseq
    %v1776 = vshrl.u32 %v1775, 7
    %v1777 = vsub.s32 1, %v1776
    %v1778 = vrot.slane %v1769, %v1777
    %v1779 = vlaneseq
    %v1780 = vshrl.u32 %v1779, 7
    %v1781 = vsub.s32 2, %v1780
    %v1782 = vrot.slane %v1769, %v1781
    %v1783 = vlaneseq
    %v1784 = vshrl.u32 %v1783, 7
    %v1785 = vsub.s32 3, %v1784
    %v1786 = vrot.slane %v1769, %v1785
    %v1787 = vlaneseq
    %v1788 = vshrl.u32 %v1787, 7
    %v1789 = vsub.s32 4, %v1788
    %v1790 = vrot.slane %v1769, %v1789
    %v1791 = vlaneseq
    %v1792 = vshrl.u32 %v1791, 7
    %v1793 = vsub.s32 5, %v1792
    %v1794 = vrot.slane %v1769, %v1793
    %v1795 = vlaneseq
    %v1796 = vshrl.u32 %v1795, 7
    %v1797 = vsub.s32 6, %v1796
    %v1798 = vrot.slane %v1769, %v1797
    %v1799 = vlaneseq
    %v1800 = vshrl.u32 %v1799, 7
    %v1801 = vsub.s32 7, %v1800
    %v1802 = vrot.slane %v1769, %v1801
    %v1811 = vmul.f32 %v1615, %v1774
    %v1812 = vmul.f32 %v1616, %v1778
    %v1813 = vmul.f32 %v1617, %v1782
    %v1814 = vmul.f32 %v1618, %v1786
    %v1815 = vmul.f32 %v1619, %v1790
    %v1816 = vmul.f32 %v1620, %v1794
    %v1817 = vmul.f32 %v1621, %v1798
    %v1818 = vmul.f32 %v1622, %v1802
    %v1820 = vlaneseq
    %v1821 = vshrl.u32 %v1820, 7
    %v1822 = vsub.s32 0, %v1821
    %v1823 = vrot.slane %v1549, %v1822
    %v1824 = vlaneseq
    %v1825 = vshrl.u32 %v1824, 7
    %v1826 = vsub.s32 1, %v1825
    %v1827 = vrot.slane %v1549, %v1826
    %v1828 = vlaneseq
    %v1829 = vshrl.u32 %v1828, 7
    %v1830 = vsub.s32 2, %v1829
    %v1831 = vrot.slane %v1549, %v1830
    %v1832 = vlaneseq
    %v1833 = vshrl.u32 %v1832, 7
    %v1834 = vsub.s32 3, %v1833
    %v1835 = vrot.slane %v1549, %v1834
    %v1836 = vlaneseq
    %v1837 = vshrl.u32 %v1836, 7
    %v1838 = vsub.s32 4, %v1837
    %v1839 = vrot.slane %v1549, %v1838
    %v1840 = vlaneseq
    %v1841 = vshrl.u32 %v1840, 7
    %v1842 = vsub.s32 5, %v1841
    %v1843 = vrot.slane %v1549, %v1842
    %v1844 = vlaneseq
    %v1845 = vshrl.u32 %v1844, 7
    %v1846 = vsub.s32 6, %v1845
    %v1847 = vrot.slane %v1549, %v1846
    %v1848 = vlaneseq
    %v1849 = vshrl.u32 %v1848, 7
    %v1850 = vsub.s32 7, %v1849
    %v1851 = vrot.slane %v1549, %v1850
    %v1860 = vadd.f32 %v1811, %v1823
    %v1861 = vadd.f32 %v1812, %v1827
    %v1862 = vadd.f32 %v1813, %v1831
    %v1863 = vadd.f32 %v1814, %v1835
    %v1864 = vadd.f32 %v1815, %v1839
    %v1865 = vadd.f32 %v1816, %v1843
    %v1866 = vadd.f32 %v1817, %v1847
    %v1867 = vadd.f32 %v1818, %v1851
    %v1868 = vld [vmem:[#allocation7] sm:$0xff]
    %v1869 = vld [vmem:[#allocation7 + $0x8] sm:$0xff]
    %v1870 = vld [vmem:[#allocation7 + $0x10] sm:$0xff]
    %v1871 = vld [vmem:[#allocation7 + $0x18] sm:$0xff]
    %v1872 = vld [vmem:[#allocation7 + $0x20] sm:$0xff]
    %v1873 = vld [vmem:[#allocation7 + $0x28] sm:$0xff]
    %v1874 = vld [vmem:[#allocation7 + $0x30] sm:$0xff]
    %v1875 = vld [vmem:[#allocation7 + $0x38] sm:$0xff]
    %v1876 = vld [vmem:[#allocation7 + $0x40] sm:$0xff]
    %v1877 = vld [vmem:[#allocation7 + $0x48] sm:$0xff]
    %v1878 = vld [vmem:[#allocation7 + $0x50] sm:$0xff]
    %v1879 = vld [vmem:[#allocation7 + $0x58] sm:$0xff]
    %v1880 = vld [vmem:[#allocation7 + $0x60] sm:$0xff]
    %v1881 = vld [vmem:[#allocation7 + $0x68] sm:$0xff]
    %v1882 = vld [vmem:[#allocation7 + $0x70] sm:$0xff]
    %v1883 = vld [vmem:[#allocation7 + $0x78] sm:$0xff]
    %v1884 = vld [vmem:[#allocation7 + $0x80] sm:$0xff]
    %v1885 = vld [vmem:[#allocation7 + $0x88] sm:$0xff]
    %v1886 = vld [vmem:[#allocation7 + $0x90] sm:$0xff]
    %v1887 = vld [vmem:[#allocation7 + $0x98] sm:$0xff]
    %v1888 = vld [vmem:[#allocation7 + $0xa0] sm:$0xff]
    %v1889 = vld [vmem:[#allocation7 + $0xa8] sm:$0xff]
    %v1890 = vld [vmem:[#allocation7 + $0xb0] sm:$0xff]
    %v1891 = vld [vmem:[#allocation7 + $0xb8] sm:$0xff]
    %v1892 = vld [vmem:[#allocation7 + $0xc0] sm:$0xff]
    %v1893 = vld [vmem:[#allocation7 + $0xc8] sm:$0xff]
    %v1894 = vld [vmem:[#allocation7 + $0xd0] sm:$0xff]
    %v1895 = vld [vmem:[#allocation7 + $0xd8] sm:$0xff]
    %v1896 = vld [vmem:[#allocation7 + $0xe0] sm:$0xff]
    %v1897 = vld [vmem:[#allocation7 + $0xe8] sm:$0xff]
    %v1898 = vld [vmem:[#allocation7 + $0xf0] sm:$0xff]
    %v1899 = vld [vmem:[#allocation7 + $0xf8] sm:$0xff]
    %v1900 = vld [vmem:[#allocation7 + $0x100] sm:$0xff]
    %v1901 = vld [vmem:[#allocation7 + $0x108] sm:$0xff]
    %v1902 = vld [vmem:[#allocation7 + $0x110] sm:$0xff]
    %v1903 = vld [vmem:[#allocation7 + $0x118] sm:$0xff]
    %v1904 = vld [vmem:[#allocation7 + $0x120] sm:$0xff]
    %v1905 = vld [vmem:[#allocation7 + $0x128] sm:$0xff]
    %v1906 = vld [vmem:[#allocation7 + $0x130] sm:$0xff]
    %v1907 = vld [vmem:[#allocation7 + $0x138] sm:$0xff]
    %v1908 = vld [vmem:[#allocation7 + $0x140] sm:$0xff]
    %v1909 = vld [vmem:[#allocation7 + $0x148] sm:$0xff]
    %v1910 = vld [vmem:[#allocation7 + $0x150] sm:$0xff]
    %v1911 = vld [vmem:[#allocation7 + $0x158] sm:$0xff]
    %v1912 = vld [vmem:[#allocation7 + $0x160] sm:$0xff]
    %v1913 = vld [vmem:[#allocation7 + $0x168] sm:$0xff]
    %v1914 = vld [vmem:[#allocation7 + $0x170] sm:$0xff]
    %v1915 = vld [vmem:[#allocation7 + $0x178] sm:$0xff]
    %v1916 = vld [vmem:[#allocation7 + $0x180] sm:$0xff]
    %v1917 = vld [vmem:[#allocation7 + $0x188] sm:$0xff]
    %v1918 = vld [vmem:[#allocation7 + $0x190] sm:$0xff]
    %v1919 = vld [vmem:[#allocation7 + $0x198] sm:$0xff]
    %v1920 = vld [vmem:[#allocation7 + $0x1a0] sm:$0xff]
    %v1921 = vld [vmem:[#allocation7 + $0x1a8] sm:$0xff]
    %v1922 = vld [vmem:[#allocation7 + $0x1b0] sm:$0xff]
    %v1923 = vld [vmem:[#allocation7 + $0x1b8] sm:$0xff]
    %v1924 = vld [vmem:[#allocation7 + $0x1c0] sm:$0xff]
    %v1925 = vld [vmem:[#allocation7 + $0x1c8] sm:$0xff]
    %v1926 = vld [vmem:[#allocation7 + $0x1d0] sm:$0xff]
    %v1927 = vld [vmem:[#allocation7 + $0x1d8] sm:$0xff]
    %v1928 = vld [vmem:[#allocation7 + $0x1e0] sm:$0xff]
    %v1929 = vld [vmem:[#allocation7 + $0x1e8] sm:$0xff]
    %v1930 = vld [vmem:[#allocation7 + $0x1f0] sm:$0xff]
    %v1931 = vld [vmem:[#allocation7 + $0x1f8] sm:$0xff]
    %v1932 = vld [vmem:[#allocation7 + $0x200] sm:$0xff]
    %v1933 = vld [vmem:[#allocation7 + $0x208] sm:$0xff]
    %v1934 = vld [vmem:[#allocation7 + $0x210] sm:$0xff]
    %v1935 = vld [vmem:[#allocation7 + $0x218] sm:$0xff]
    %v1936 = vld [vmem:[#allocation7 + $0x220] sm:$0xff]
    %v1937 = vld [vmem:[#allocation7 + $0x228] sm:$0xff]
    %v1938 = vld [vmem:[#allocation7 + $0x230] sm:$0xff]
    %v1939 = vld [vmem:[#allocation7 + $0x238] sm:$0xff]
    %v1940 = vld [vmem:[#allocation7 + $0x240] sm:$0xff]
    %v1941 = vld [vmem:[#allocation7 + $0x248] sm:$0xff]
    %v1942 = vld [vmem:[#allocation7 + $0x250] sm:$0xff]
    %v1943 = vld [vmem:[#allocation7 + $0x258] sm:$0xff]
    %v1944 = vld [vmem:[#allocation7 + $0x260] sm:$0xff]
    %v1945 = vld [vmem:[#allocation7 + $0x268] sm:$0xff]
    %v1946 = vld [vmem:[#allocation7 + $0x270] sm:$0xff]
    %v1947 = vld [vmem:[#allocation7 + $0x278] sm:$0xff]
    %v1948 = vld [vmem:[#allocation7 + $0x280] sm:$0xff]
    %v1949 = vld [vmem:[#allocation7 + $0x288] sm:$0xff]
    %v1950 = vld [vmem:[#allocation7 + $0x290] sm:$0xff]
    %v1951 = vld [vmem:[#allocation7 + $0x298] sm:$0xff]
    %v1952 = vld [vmem:[#allocation7 + $0x2a0] sm:$0xff]
    %v1953 = vld [vmem:[#allocation7 + $0x2a8] sm:$0xff]
    %v1954 = vld [vmem:[#allocation7 + $0x2b0] sm:$0xff]
    %v1955 = vld [vmem:[#allocation7 + $0x2b8] sm:$0xff]
    %v1956 = vld [vmem:[#allocation7 + $0x2c0] sm:$0xff]
    %v1957 = vld [vmem:[#allocation7 + $0x2c8] sm:$0xff]
    %v1958 = vld [vmem:[#allocation7 + $0x2d0] sm:$0xff]
    %v1959 = vld [vmem:[#allocation7 + $0x2d8] sm:$0xff]
    %v1960 = vld [vmem:[#allocation7 + $0x2e0] sm:$0xff]
    %v1961 = vld [vmem:[#allocation7 + $0x2e8] sm:$0xff]
    %v1962 = vld [vmem:[#allocation7 + $0x2f0] sm:$0xff]
    %v1963 = vld [vmem:[#allocation7 + $0x2f8] sm:$0xff]
    %v1964 = vld [vmem:[#allocation7 + $0x300] sm:$0xff]
    %v1965 = vld [vmem:[#allocation7 + $0x308] sm:$0xff]
    %v1966 = vld [vmem:[#allocation7 + $0x310] sm:$0xff]
    %v1967 = vld [vmem:[#allocation7 + $0x318] sm:$0xff]
    %v1968 = vld [vmem:[#allocation7 + $0x320] sm:$0xff]
    %v1969 = vld [vmem:[#allocation7 + $0x328] sm:$0xff]
    %v1970 = vld [vmem:[#allocation7 + $0x330] sm:$0xff]
    %v1971 = vld [vmem:[#allocation7 + $0x338] sm:$0xff]
    %v1972 = vld [vmem:[#allocation7 + $0x340] sm:$0xff]
    %v1973 = vld [vmem:[#allocation7 + $0x348] sm:$0xff]
    %v1974 = vld [vmem:[#allocation7 + $0x350] sm:$0xff]
    %v1975 = vld [vmem:[#allocation7 + $0x358] sm:$0xff]
    %v1976 = vld [vmem:[#allocation7 + $0x360] sm:$0xff]
    %v1977 = vld [vmem:[#allocation7 + $0x368] sm:$0xff]
    %v1978 = vld [vmem:[#allocation7 + $0x370] sm:$0xff]
    %v1979 = vld [vmem:[#allocation7 + $0x378] sm:$0xff]
    %v1980 = vld [vmem:[#allocation7 + $0x380] sm:$0xff]
    %v1981 = vld [vmem:[#allocation7 + $0x388] sm:$0xff]
    %v1982 = vld [vmem:[#allocation7 + $0x390] sm:$0xff]
    %v1983 = vld [vmem:[#allocation7 + $0x398] sm:$0xff]
    %v1984 = vld [vmem:[#allocation7 + $0x3a0] sm:$0xff]
    %v1985 = vld [vmem:[#allocation7 + $0x3a8] sm:$0xff]
    %v1986 = vld [vmem:[#allocation7 + $0x3b0] sm:$0xff]
    %v1987 = vld [vmem:[#allocation7 + $0x3b8] sm:$0xff]
    %v1988 = vld [vmem:[#allocation7 + $0x3c0] sm:$0xff]
    %v1989 = vld [vmem:[#allocation7 + $0x3c8] sm:$0xff]
    %v1990 = vld [vmem:[#allocation7 + $0x3d0] sm:$0xff]
    %v1991 = vld [vmem:[#allocation7 + $0x3d8] sm:$0xff]
    %v1992 = vld [vmem:[#allocation7 + $0x3e0] sm:$0xff]
    %v1993 = vld [vmem:[#allocation7 + $0x3e8] sm:$0xff]
    %v1994 = vld [vmem:[#allocation7 + $0x3f0] sm:$0xff]
    %v1995 = vld [vmem:[#allocation7 + $0x3f8] sm:$0xff]
    %v1996 = vld [vmem:[#allocation7 + $0x400] sm:$0xff]
    %v1997 = vld [vmem:[#allocation7 + $0x408] sm:$0xff]
    %v1998 = vld [vmem:[#allocation7 + $0x410] sm:$0xff]
    %v1999 = vld [vmem:[#allocation7 + $0x418] sm:$0xff]
    %v2000 = vld [vmem:[#allocation7 + $0x420] sm:$0xff]
    %v2001 = vld [vmem:[#allocation7 + $0x428] sm:$0xff]
    %v2002 = vld [vmem:[#allocation7 + $0x430] sm:$0xff]
    %v2003 = vld [vmem:[#allocation7 + $0x438] sm:$0xff]
    %v2004 = vld [vmem:[#allocation7 + $0x440] sm:$0xff]
    %v2005 = vld [vmem:[#allocation7 + $0x448] sm:$0xff]
    %v2006 = vld [vmem:[#allocation7 + $0x450] sm:$0xff]
    %v2007 = vld [vmem:[#allocation7 + $0x458] sm:$0xff]
    %v2008 = vld [vmem:[#allocation7 + $0x460] sm:$0xff]
    %v2009 = vld [vmem:[#allocation7 + $0x468] sm:$0xff]
    %v2010 = vld [vmem:[#allocation7 + $0x470] sm:$0xff]
    %v2011 = vld [vmem:[#allocation7 + $0x478] sm:$0xff]
    %v2012 = vld [vmem:[#allocation7 + $0x480] sm:$0xff]
    %v2013 = vld [vmem:[#allocation7 + $0x488] sm:$0xff]
    %v2014 = vld [vmem:[#allocation7 + $0x490] sm:$0xff]
    %v2015 = vld [vmem:[#allocation7 + $0x498] sm:$0xff]
    %v2016 = vld [vmem:[#allocation7 + $0x4a0] sm:$0xff]
    %v2017 = vld [vmem:[#allocation7 + $0x4a8] sm:$0xff]
    %v2018 = vld [vmem:[#allocation7 + $0x4b0] sm:$0xff]
    %v2019 = vld [vmem:[#allocation7 + $0x4b8] sm:$0xff]
    %v2020 = vld [vmem:[#allocation7 + $0x4c0] sm:$0xff]
    %v2021 = vld [vmem:[#allocation7 + $0x4c8] sm:$0xff]
    %v2022 = vld [vmem:[#allocation7 + $0x4d0] sm:$0xff]
    %v2023 = vld [vmem:[#allocation7 + $0x4d8] sm:$0xff]
    %v2024 = vld [vmem:[#allocation7 + $0x4e0] sm:$0xff]
    %v2025 = vld [vmem:[#allocation7 + $0x4e8] sm:$0xff]
    %v2026 = vld [vmem:[#allocation7 + $0x4f0] sm:$0xff]
    %v2027 = vld [vmem:[#allocation7 + $0x4f8] sm:$0xff]
    %v2028 = vld [vmem:[#allocation7 + $0x500] sm:$0xff]
    %v2029 = vld [vmem:[#allocation7 + $0x508] sm:$0xff]
    %v2030 = vld [vmem:[#allocation7 + $0x510] sm:$0xff]
    %v2031 = vld [vmem:[#allocation7 + $0x518] sm:$0xff]
    %v2032 = vld [vmem:[#allocation7 + $0x520] sm:$0xff]
    %v2033 = vld [vmem:[#allocation7 + $0x528] sm:$0xff]
    %v2034 = vld [vmem:[#allocation7 + $0x530] sm:$0xff]
    %v2035 = vld [vmem:[#allocation7 + $0x538] sm:$0xff]
    %v2036 = vld [vmem:[#allocation7 + $0x540] sm:$0xff]
    %v2037 = vld [vmem:[#allocation7 + $0x548] sm:$0xff]
    %v2038 = vld [vmem:[#allocation7 + $0x550] sm:$0xff]
    %v2039 = vld [vmem:[#allocation7 + $0x558] sm:$0xff]
    %v2040 = vld [vmem:[#allocation7 + $0x560] sm:$0xff]
    %v2041 = vld [vmem:[#allocation7 + $0x568] sm:$0xff]
    %v2042 = vld [vmem:[#allocation7 + $0x570] sm:$0xff]
    %v2043 = vld [vmem:[#allocation7 + $0x578] sm:$0xff]
    %v2044 = vld [vmem:[#allocation7 + $0x580] sm:$0xff]
    %v2045 = vld [vmem:[#allocation7 + $0x588] sm:$0xff]
    %v2046 = vld [vmem:[#allocation7 + $0x590] sm:$0xff]
    %v2047 = vld [vmem:[#allocation7 + $0x598] sm:$0xff]
    %v2048 = vld [vmem:[#allocation7 + $0x5a0] sm:$0xff]
    %v2049 = vld [vmem:[#allocation7 + $0x5a8] sm:$0xff]
    %v2050 = vld [vmem:[#allocation7 + $0x5b0] sm:$0xff]
    %v2051 = vld [vmem:[#allocation7 + $0x5b8] sm:$0xff]
    %v2052 = vld [vmem:[#allocation7 + $0x5c0] sm:$0xff]
    %v2053 = vld [vmem:[#allocation7 + $0x5c8] sm:$0xff]
    %v2054 = vld [vmem:[#allocation7 + $0x5d0] sm:$0xff]
    %v2055 = vld [vmem:[#allocation7 + $0x5d8] sm:$0xff]
    %v2056 = vld [vmem:[#allocation7 + $0x5e0] sm:$0xff]
    %v2057 = vld [vmem:[#allocation7 + $0x5e8] sm:$0xff]
    %v2058 = vld [vmem:[#allocation7 + $0x5f0] sm:$0xff]
    %v2059 = vld [vmem:[#allocation7 + $0x5f8] sm:$0xff]
    %v2060 = vld [vmem:[#allocation7 + $0x600] sm:$0xff]
    %v2061 = vld [vmem:[#allocation7 + $0x608] sm:$0xff]
    %v2062 = vld [vmem:[#allocation7 + $0x610] sm:$0xff]
    %v2063 = vld [vmem:[#allocation7 + $0x618] sm:$0xff]
    %v2064 = vld [vmem:[#allocation7 + $0x620] sm:$0xff]
    %v2065 = vld [vmem:[#allocation7 + $0x628] sm:$0xff]
    %v2066 = vld [vmem:[#allocation7 + $0x630] sm:$0xff]
    %v2067 = vld [vmem:[#allocation7 + $0x638] sm:$0xff]
    %v2068 = vld [vmem:[#allocation7 + $0x640] sm:$0xff]
    %v2069 = vld [vmem:[#allocation7 + $0x648] sm:$0xff]
    %v2070 = vld [vmem:[#allocation7 + $0x650] sm:$0xff]
    %v2071 = vld [vmem:[#allocation7 + $0x658] sm:$0xff]
    %v2072 = vld [vmem:[#allocation7 + $0x660] sm:$0xff]
    %v2073 = vld [vmem:[#allocation7 + $0x668] sm:$0xff]
    %v2074 = vld [vmem:[#allocation7 + $0x670] sm:$0xff]
    %v2075 = vld [vmem:[#allocation7 + $0x678] sm:$0xff]
    %v2076 = vld [vmem:[#allocation7 + $0x680] sm:$0xff]
    %v2077 = vld [vmem:[#allocation7 + $0x688] sm:$0xff]
    %v2078 = vld [vmem:[#allocation7 + $0x690] sm:$0xff]
    %v2079 = vld [vmem:[#allocation7 + $0x698] sm:$0xff]
    %v2080 = vld [vmem:[#allocation7 + $0x6a0] sm:$0xff]
    %v2081 = vld [vmem:[#allocation7 + $0x6a8] sm:$0xff]
    %v2082 = vld [vmem:[#allocation7 + $0x6b0] sm:$0xff]
    %v2083 = vld [vmem:[#allocation7 + $0x6b8] sm:$0xff]
    %v2084 = vld [vmem:[#allocation7 + $0x6c0] sm:$0xff]
    %v2085 = vld [vmem:[#allocation7 + $0x6c8] sm:$0xff]
    %v2086 = vld [vmem:[#allocation7 + $0x6d0] sm:$0xff]
    %v2087 = vld [vmem:[#allocation7 + $0x6d8] sm:$0xff]
    %v2088 = vld [vmem:[#allocation7 + $0x6e0] sm:$0xff]
    %v2089 = vld [vmem:[#allocation7 + $0x6e8] sm:$0xff]
    %v2090 = vld [vmem:[#allocation7 + $0x6f0] sm:$0xff]
    %v2091 = vld [vmem:[#allocation7 + $0x6f8] sm:$0xff]
    %v2092 = vld [vmem:[#allocation7 + $0x700] sm:$0xff]
    %v2093 = vld [vmem:[#allocation7 + $0x708] sm:$0xff]
    %v2094 = vld [vmem:[#allocation7 + $0x710] sm:$0xff]
    %v2095 = vld [vmem:[#allocation7 + $0x718] sm:$0xff]
    %v2096 = vld [vmem:[#allocation7 + $0x720] sm:$0xff]
    %v2097 = vld [vmem:[#allocation7 + $0x728] sm:$0xff]
    %v2098 = vld [vmem:[#allocation7 + $0x730] sm:$0xff]
    %v2099 = vld [vmem:[#allocation7 + $0x738] sm:$0xff]
    %v2100 = vld [vmem:[#allocation7 + $0x740] sm:$0xff]
    %v2101 = vld [vmem:[#allocation7 + $0x748] sm:$0xff]
    %v2102 = vld [vmem:[#allocation7 + $0x750] sm:$0xff]
    %v2103 = vld [vmem:[#allocation7 + $0x758] sm:$0xff]
    %v2104 = vld [vmem:[#allocation7 + $0x760] sm:$0xff]
    %v2105 = vld [vmem:[#allocation7 + $0x768] sm:$0xff]
    %v2106 = vld [vmem:[#allocation7 + $0x770] sm:$0xff]
    %v2107 = vld [vmem:[#allocation7 + $0x778] sm:$0xff]
    %v2108 = vld [vmem:[#allocation7 + $0x780] sm:$0xff]
    %v2109 = vld [vmem:[#allocation7 + $0x788] sm:$0xff]
    %v2110 = vld [vmem:[#allocation7 + $0x790] sm:$0xff]
    %v2111 = vld [vmem:[#allocation7 + $0x798] sm:$0xff]
    %v2112 = vld [vmem:[#allocation7 + $0x7a0] sm:$0xff]
    %v2113 = vld [vmem:[#allocation7 + $0x7a8] sm:$0xff]
    %v2114 = vld [vmem:[#allocation7 + $0x7b0] sm:$0xff]
    %v2115 = vld [vmem:[#allocation7 + $0x7b8] sm:$0xff]
    %v2116 = vld [vmem:[#allocation7 + $0x7c0] sm:$0xff]
    %v2117 = vld [vmem:[#allocation7 + $0x7c8] sm:$0xff]
    %v2118 = vld [vmem:[#allocation7 + $0x7d0] sm:$0xff]
    %v2119 = vld [vmem:[#allocation7 + $0x7d8] sm:$0xff]
    %v2120 = vld [vmem:[#allocation7 + $0x7e0] sm:$0xff]
    %v2121 = vld [vmem:[#allocation7 + $0x7e8] sm:$0xff]
    %v2122 = vld [vmem:[#allocation7 + $0x7f0] sm:$0xff]
    %v2123 = vld [vmem:[#allocation7 + $0x7f8] sm:$0xff]
    %v2124 = vld [vmem:[#allocation10 + $0x1c] sm:$0x3]
    %v2126 = vlaneseq
    %v2127 = vshrl.u32 %v2126, 7
    %v2128 = vsub.s32 0, %v2127
    %v2129 = vrot.slane %v2124, %v2128
    %v2130 = vlaneseq
    %v2131 = vshrl.u32 %v2130, 7
    %v2132 = vsub.s32 1, %v2131
    %v2133 = vrot.slane %v2124, %v2132
    %2136 = vmatprep.subr.mxu0 %v1899
    %2137 = vmatpush1.msra.mxu0 %v1898
    %2138 = vmatprep.subr.mxu0 %v1897
    %2139 = vmatpush1.msra.mxu0 %v1896
    %2140 = vmatprep.subr.mxu0 %v1895
    %2141 = vmatpush1.msra.mxu0 %v1894
    %2142 = vmatprep.subr.mxu0 %v1893
    %2143 = vmatpush1.msra.mxu0 %v1892
    %2144 = vmatprep.subr.mxu0 %v1891
    %2145 = vmatpush1.msra.mxu0 %v1890
    %2146 = vmatprep.subr.mxu0 %v1889
    %2147 = vmatpush1.msra.mxu0 %v1888
    %2148 = vmatprep.subr.mxu0 %v1887
    %2149 = vmatpush1.msra.mxu0 %v1886
    %2150 = vmatprep.subr.mxu0 %v1885
    %2151 = vmatpush1.msra.mxu0 %v1884
    %2152 = vmatprep.subr.mxu0 %v1883
    %2153 = vmatpush1.msra.mxu0 %v1882
    %2154 = vmatprep.subr.mxu0 %v1881
    %2155 = vmatpush1.msra.mxu0 %v1880
    %2156 = vmatprep.subr.mxu0 %v1879
    %2157 = vmatpush1.msra.mxu0 %v1878
    %2158 = vmatprep.subr.mxu0 %v1877
    %2159 = vmatpush1.msra.mxu0 %v1876
    %2160 = vmatprep.subr.mxu0 %v1875
    %2161 = vmatpush1.msra.mxu0 %v1874
    %2162 = vmatprep.subr.mxu0 %v1873
    %2163 = vmatpush1.msra.mxu0 %v1872
    %2164 = vmatprep.subr.mxu0 %v1871
    %2165 = vmatpush1.msra.mxu0 %v1870
    %2166 = vmatprep.subr.mxu0 %v1869
    %2167 = vmatpush1.msra.mxu0 %v1868
    %2168 = vmatprep.subr.mxu0 %v1931
    %2169 = vmatpush2.msra.mxu0 %v1930
    %2170 = vmatprep.subr.mxu0 %v1929
    %2171 = vmatpush2.msra.mxu0 %v1928
    %2172 = vmatprep.subr.mxu0 %v1927
    %2173 = vmatpush2.msra.mxu0 %v1926
    %2174 = vmatprep.subr.mxu0 %v1925
    %2175 = vmatpush2.msra.mxu0 %v1924
    %2176 = vmatprep.subr.mxu0 %v1923
    %2177 = vmatpush2.msra.mxu0 %v1922
    %2178 = vmatprep.subr.mxu0 %v1921
    %2179 = vmatpush2.msra.mxu0 %v1920
    %2180 = vmatprep.subr.mxu0 %v1919
    %2181 = vmatpush2.msra.mxu0 %v1918
    %2182 = vmatprep.subr.mxu0 %v1917
    %2183 = vmatpush2.msra.mxu0 %v1916
    %2184 = vmatprep.subr.mxu0 %v1915
    %2185 = vmatpush2.msra.mxu0 %v1914
    %2186 = vmatprep.subr.mxu0 %v1913
    %2187 = vmatpush2.msra.mxu0 %v1912
    %2188 = vmatprep.subr.mxu0 %v1911
    %2189 = vmatpush2.msra.mxu0 %v1910
    %2190 = vmatprep.subr.mxu0 %v1909
    %2191 = vmatpush2.msra.mxu0 %v1908
    %2192 = vmatprep.subr.mxu0 %v1907
    %2193 = vmatpush2.msra.mxu0 %v1906
    %2194 = vmatprep.subr.mxu0 %v1905
    %2195 = vmatpush2.msra.mxu0 %v1904
    %2196 = vmatprep.subr.mxu0 %v1903
    %2197 = vmatpush2.msra.mxu0 %v1902
    %2198 = vmatprep.subr.mxu0 %v1901
    %2199 = vmatpush2.msra.mxu0 %v1900
    %2200 = vmatprep.mubr.f32.mxu0 %v1861
    %2201 = vmatmul.mubr.f32.gmra.mxu0 %v1860
    %v2202 = vpop.f32.mrf.mxu0
    %v2203 = vadd.f32 %v2129, %v2202
    %v2204 = vpop.f32.mrf.mxu0
    %v2205 = vadd.f32 %v2133, %v2204
    %2206 = vdwg.mxu0
    %2207 = vmatprep.subr.mxu0 %v1963
    %2208 = vmatpush1.msra.mxu0 %v1962
    %2209 = vmatprep.subr.mxu0 %v1961
    %2210 = vmatpush1.msra.mxu0 %v1960
    %2211 = vmatprep.subr.mxu0 %v1959
    %2212 = vmatpush1.msra.mxu0 %v1958
    %2213 = vmatprep.subr.mxu0 %v1957
    %2214 = vmatpush1.msra.mxu0 %v1956
    %2215 = vmatprep.subr.mxu0 %v1955
    %2216 = vmatpush1.msra.mxu0 %v1954
    %2217 = vmatprep.subr.mxu0 %v1953
    %2218 = vmatpush1.msra.mxu0 %v1952
    %2219 = vmatprep.subr.mxu0 %v1951
    %2220 = vmatpush1.msra.mxu0 %v1950
    %2221 = vmatprep.subr.mxu0 %v1949
    %2222 = vmatpush1.msra.mxu0 %v1948
    %2223 = vmatprep.subr.mxu0 %v1947
    %2224 = vmatpush1.msra.mxu0 %v1946
    %2225 = vmatprep.subr.mxu0 %v1945
    %2226 = vmatpush1.msra.mxu0 %v1944
    %2227 = vmatprep.subr.mxu0 %v1943
    %2228 = vmatpush1.msra.mxu0 %v1942
    %2229 = vmatprep.subr.mxu0 %v1941
    %2230 = vmatpush1.msra.mxu0 %v1940
    %2231 = vmatprep.subr.mxu0 %v1939
    %2232 = vmatpush1.msra.mxu0 %v1938
    %2233 = vmatprep.subr.mxu0 %v1937
    %2234 = vmatpush1.msra.mxu0 %v1936
    %2235 = vmatprep.subr.mxu0 %v1935
    %2236 = vmatpush1.msra.mxu0 %v1934
    %2237 = vmatprep.subr.mxu0 %v1933
    %2238 = vmatpush1.msra.mxu0 %v1932
    %2239 = vmatprep.subr.mxu0 %v1995
    %2240 = vmatpush2.msra.mxu0 %v1994
    %2241 = vmatprep.subr.mxu0 %v1993
    %2242 = vmatpush2.msra.mxu0 %v1992
    %2243 = vmatprep.subr.mxu0 %v1991
    %2244 = vmatpush2.msra.mxu0 %v1990
    %2245 = vmatprep.subr.mxu0 %v1989
    %2246 = vmatpush2.msra.mxu0 %v1988
    %2247 = vmatprep.subr.mxu0 %v1987
    %2248 = vmatpush2.msra.mxu0 %v1986
    %2249 = vmatprep.subr.mxu0 %v1985
    %2250 = vmatpush2.msra.mxu0 %v1984
    %2251 = vmatprep.subr.mxu0 %v1983
    %2252 = vmatpush2.msra.mxu0 %v1982
    %2253 = vmatprep.subr.mxu0 %v1981
    %2254 = vmatpush2.msra.mxu0 %v1980
    %2255 = vmatprep.subr.mxu0 %v1979
    %2256 = vmatpush2.msra.mxu0 %v1978
    %2257 = vmatprep.subr.mxu0 %v1977
    %2258 = vmatpush2.msra.mxu0 %v1976
    %2259 = vmatprep.subr.mxu0 %v1975
    %2260 = vmatpush2.msra.mxu0 %v1974
    %2261 = vmatprep.subr.mxu0 %v1973
    %2262 = vmatpush2.msra.mxu0 %v1972
    %2263 = vmatprep.subr.mxu0 %v1971
    %2264 = vmatpush2.msra.mxu0 %v1970
    %2265 = vmatprep.subr.mxu0 %v1969
    %2266 = vmatpush2.msra.mxu0 %v1968
    %2267 = vmatprep.subr.mxu0 %v1967
    %2268 = vmatpush2.msra.mxu0 %v1966
    %2269 = vmatprep.subr.mxu0 %v1965
    %2270 = vmatpush2.msra.mxu0 %v1964
    %2271 = vmatprep.mubr.f32.mxu0 %v1863
    %2272 = vmatmul.mubr.f32.gmra.mxu0 %v1862
    %v2273 = vpop.f32.mrf.mxu0
    %v2274 = vadd.f32 %v2203, %v2273
    %v2275 = vpop.f32.mrf.mxu0
    %v2276 = vadd.f32 %v2205, %v2275
    %2277 = vdwg.mxu0
    %2278 = vmatprep.subr.mxu0 %v2027
    %2279 = vmatpush1.msra.mxu0 %v2026
    %2280 = vmatprep.subr.mxu0 %v2025
    %2281 = vmatpush1.msra.mxu0 %v2024
    %2282 = vmatprep.subr.mxu0 %v2023
    %2283 = vmatpush1.msra.mxu0 %v2022
    %2284 = vmatprep.subr.mxu0 %v2021
    %2285 = vmatpush1.msra.mxu0 %v2020
    %2286 = vmatprep.subr.mxu0 %v2019
    %2287 = vmatpush1.msra.mxu0 %v2018
    %2288 = vmatprep.subr.mxu0 %v2017
    %2289 = vmatpush1.msra.mxu0 %v2016
    %2290 = vmatprep.subr.mxu0 %v2015
    %2291 = vmatpush1.msra.mxu0 %v2014
    %2292 = vmatprep.subr.mxu0 %v2013
    %2293 = vmatpush1.msra.mxu0 %v2012
    %2294 = vmatprep.subr.mxu0 %v2011
    %2295 = vmatpush1.msra.mxu0 %v2010
    %2296 = vmatprep.subr.mxu0 %v2009
    %2297 = vmatpush1.msra.mxu0 %v2008
    %2298 = vmatprep.subr.mxu0 %v2007
    %2299 = vmatpush1.msra.mxu0 %v2006
    %2300 = vmatprep.subr.mxu0 %v2005
    %2301 = vmatpush1.msra.mxu0 %v2004
    %2302 = vmatprep.subr.mxu0 %v2003
    %2303 = vmatpush1.msra.mxu0 %v2002
    %2304 = vmatprep.subr.mxu0 %v2001
    %2305 = vmatpush1.msra.mxu0 %v2000
    %2306 = vmatprep.subr.mxu0 %v1999
    %2307 = vmatpush1.msra.mxu0 %v1998
    %2308 = vmatprep.subr.mxu0 %v1997
    %2309 = vmatpush1.msra.mxu0 %v1996
    %2310 = vmatprep.subr.mxu0 %v2059
    %2311 = vmatpush2.msra.mxu0 %v2058
    %2312 = vmatprep.subr.mxu0 %v2057
    %2313 = vmatpush2.msra.mxu0 %v2056
    %2314 = vmatprep.subr.mxu0 %v2055
    %2315 = vmatpush2.msra.mxu0 %v2054
    %2316 = vmatprep.subr.mxu0 %v2053
    %2317 = vmatpush2.msra.mxu0 %v2052
    %2318 = vmatprep.subr.mxu0 %v2051
    %2319 = vmatpush2.msra.mxu0 %v2050
    %2320 = vmatprep.subr.mxu0 %v2049
    %2321 = vmatpush2.msra.mxu0 %v2048
    %2322 = vmatprep.subr.mxu0 %v2047
    %2323 = vmatpush2.msra.mxu0 %v2046
    %2324 = vmatprep.subr.mxu0 %v2045
    %2325 = vmatpush2.msra.mxu0 %v2044
    %2326 = vmatprep.subr.mxu0 %v2043
    %2327 = vmatpush2.msra.mxu0 %v2042
    %2328 = vmatprep.subr.mxu0 %v2041
    %2329 = vmatpush2.msra.mxu0 %v2040
    %2330 = vmatprep.subr.mxu0 %v2039
    %2331 = vmatpush2.msra.mxu0 %v2038
    %2332 = vmatprep.subr.mxu0 %v2037
    %2333 = vmatpush2.msra.mxu0 %v2036
    %2334 = vmatprep.subr.mxu0 %v2035
    %2335 = vmatpush2.msra.mxu0 %v2034
    %2336 = vmatprep.subr.mxu0 %v2033
    %2337 = vmatpush2.msra.mxu0 %v2032
    %2338 = vmatprep.subr.mxu0 %v2031
    %2339 = vmatpush2.msra.mxu0 %v2030
    %2340 = vmatprep.subr.mxu0 %v2029
    %2341 = vmatpush2.msra.mxu0 %v2028
    %2342 = vmatprep.mubr.f32.mxu0 %v1865
    %2343 = vmatmul.mubr.f32.gmra.mxu0 %v1864
    %v2344 = vpop.f32.mrf.mxu0
    %v2345 = vadd.f32 %v2274, %v2344
    %v2346 = vpop.f32.mrf.mxu0
    %v2347 = vadd.f32 %v2276, %v2346
    %2348 = vdwg.mxu0
    %2349 = vmatprep.subr.mxu0 %v2091
    %2350 = vmatpush1.msra.mxu0 %v2090
    %2351 = vmatprep.subr.mxu0 %v2089
    %2352 = vmatpush1.msra.mxu0 %v2088
    %2353 = vmatprep.subr.mxu0 %v2087
    %2354 = vmatpush1.msra.mxu0 %v2086
    %2355 = vmatprep.subr.mxu0 %v2085
    %2356 = vmatpush1.msra.mxu0 %v2084
    %2357 = vmatprep.subr.mxu0 %v2083
    %2358 = vmatpush1.msra.mxu0 %v2082
    %2359 = vmatprep.subr.mxu0 %v2081
    %2360 = vmatpush1.msra.mxu0 %v2080
    %2361 = vmatprep.subr.mxu0 %v2079
    %2362 = vmatpush1.msra.mxu0 %v2078
    %2363 = vmatprep.subr.mxu0 %v2077
    %2364 = vmatpush1.msra.mxu0 %v2076
    %2365 = vmatprep.subr.mxu0 %v2075
    %2366 = vmatpush1.msra.mxu0 %v2074
    %2367 = vmatprep.subr.mxu0 %v2073
    %2368 = vmatpush1.msra.mxu0 %v2072
    %2369 = vmatprep.subr.mxu0 %v2071
    %2370 = vmatpush1.msra.mxu0 %v2070
    %2371 = vmatprep.subr.mxu0 %v2069
    %2372 = vmatpush1.msra.mxu0 %v2068
    %2373 = vmatprep.subr.mxu0 %v2067
    %2374 = vmatpush1.msra.mxu0 %v2066
    %2375 = vmatprep.subr.mxu0 %v2065
    %2376 = vmatpush1.msra.mxu0 %v2064
    %2377 = vmatprep.subr.mxu0 %v2063
    %2378 = vmatpush1.msra.mxu0 %v2062
    %2379 = vmatprep.subr.mxu0 %v2061
    %2380 = vmatpush1.msra.mxu0 %v2060
    %2381 = vmatprep.subr.mxu0 %v2123
    %2382 = vmatpush2.msra.mxu0 %v2122
    %2383 = vmatprep.subr.mxu0 %v2121
    %2384 = vmatpush2.msra.mxu0 %v2120
    %2385 = vmatprep.subr.mxu0 %v2119
    %2386 = vmatpush2.msra.mxu0 %v2118
    %2387 = vmatprep.subr.mxu0 %v2117
    %2388 = vmatpush2.msra.mxu0 %v2116
    %2389 = vmatprep.subr.mxu0 %v2115
    %2390 = vmatpush2.msra.mxu0 %v2114
    %2391 = vmatprep.subr.mxu0 %v2113
    %2392 = vmatpush2.msra.mxu0 %v2112
    %2393 = vmatprep.subr.mxu0 %v2111
    %2394 = vmatpush2.msra.mxu0 %v2110
    %2395 = vmatprep.subr.mxu0 %v2109
    %2396 = vmatpush2.msra.mxu0 %v2108
    %2397 = vmatprep.subr.mxu0 %v2107
    %2398 = vmatpush2.msra.mxu0 %v2106
    %2399 = vmatprep.subr.mxu0 %v2105
    %2400 = vmatpush2.msra.mxu0 %v2104
    %2401 = vmatprep.subr.mxu0 %v2103
    %2402 = vmatpush2.msra.mxu0 %v2102
    %2403 = vmatprep.subr.mxu0 %v2101
    %2404 = vmatpush2.msra.mxu0 %v2100
    %2405 = vmatprep.subr.mxu0 %v2099
    %2406 = vmatpush2.msra.mxu0 %v2098
    %2407 = vmatprep.subr.mxu0 %v2097
    %2408 = vmatpush2.msra.mxu0 %v2096
    %2409 = vmatprep.subr.mxu0 %v2095
    %2410 = vmatpush2.msra.mxu0 %v2094
    %2411 = vmatprep.subr.mxu0 %v2093
    %2412 = vmatpush2.msra.mxu0 %v2092
    %2413 = vmatprep.mubr.f32.mxu0 %v1867
    %2414 = vmatmul.mubr.f32.gmra.mxu0 %v1866
    %v2415 = vpop.f32.mrf.mxu0
    %v2416 = vadd.f32 %v2345, %v2415
    %v2417 = vpop.f32.mrf.mxu0
    %v2418 = vadd.f32 %v2347, %v2417
    %2419 = vdwg.mxu0
    %v2420 = vmax.f32 %v2416, 0.0
    %v2421 = vmax.f32 %v2418, 0.0
    %v2422 = vld [vmem:[#allocation10 + $0x1e] sm:$0x3]
    %v2423 = vld [vmem:[#allocation10 + $0x20] sm:$0x3]
    %v2424 = vsel %vm1550, %v2420, 0.0
    %v2425 = vrot.slane %v2424, 4
    %v2426 = vadd.f32 %v2424, %v2425
    %v2427 = vrot.slane %v2426, 2
    %v2428 = vadd.f32 %v2426, %v2427
    %v2429 = vrot.slane %v2428, 1
    %v2430 = vadd.f32 %v2428, %v2429
    %v2431 = vsel %vm1550, %v2421, 0.0
    %v2432 = vrot.slane %v2431, 4
    %v2433 = vadd.f32 %v2431, %v2432
    %v2434 = vrot.slane %v2433, 2
    %v2435 = vadd.f32 %v2433, %v2434
    %v2436 = vrot.slane %v2435, 1
    %v2437 = vadd.f32 %v2435, %v2436
    %v2438 = vmul.f32 %v2430, %v1090
    %v2439 = vmul.f32 %v2437, %v1090
    %v2440 = vsub.f32 %v2420, %v2438
    %v2441 = vsub.f32 %v2421, %v2439
    %v2442 = vmul.f32 %v2440, %v2440
    %v2443 = vmul.f32 %v2441, %v2441
    %v2444 = vsel %vm1550, %v2442, 0.0
    %v2445 = vrot.slane %v2444, 4
    %v2446 = vadd.f32 %v2444, %v2445
    %v2447 = vrot.slane %v2446, 2
    %v2448 = vadd.f32 %v2446, %v2447
    %v2449 = vrot.slane %v2448, 1
    %v2450 = vadd.f32 %v2448, %v2449
    %v2451 = vsel %vm1550, %v2443, 0.0
    %v2452 = vrot.slane %v2451, 4
    %v2453 = vadd.f32 %v2451, %v2452
    %v2454 = vrot.slane %v2453, 2
    %v2455 = vadd.f32 %v2453, %v2454
    %v2456 = vrot.slane %v2455, 1
    %v2457 = vadd.f32 %v2455, %v2456
    %v2458 = vmul.f32 %v2450, %v1090
    %v2459 = vmul.f32 %v2457, %v1090
    %v2460 = vadd.f32 %v2458, 1e-05
    %v2461 = vadd.f32 %v2459, 1e-05
    %v2462 = vrsqrt.pop %v2460
    %v2463 = vrsqrt.pop %v2461
    %v2466 = vcombine.low %v2462, %v2463
    %v2468 = vunpack.c.l.s4 1966171168
    %v2469 = vunpack.c.0.s8 %v2468
    %v2470 = vlaneseq
    %v2471 = vshrl.u32 %v2470, 7
    %v2472 = vsub.s32 %v2469, %v2471
    %v2473 = vrot.slane %v2466, %v2472
    %v2475 = vunpack.c.l.s4 1966171168
    %v2476 = vunpack.c.0.s8 %v2475
    %v2477 = vlaneseq
    %v2478 = vshrl.u32 %v2477, 7
    %v2479 = vsub.s32 %v2476, %v2478
    %v2480 = vrot.slane %v2473, %v2479
    %v2482 = vmul.f32 %v2422, %v2480
    %v2484 = vlaneseq
    %v2485 = vshrl.u32 %v2484, 7
    %v2486 = vsub.s32 0, %v2485
    %v2487 = vrot.slane %v2482, %v2486
    %v2488 = vlaneseq
    %v2489 = vshrl.u32 %v2488, 7
    %v2490 = vsub.s32 1, %v2489
    %v2491 = vrot.slane %v2482, %v2490
    %v2494 = vmul.f32 %v2440, %v2487
    %v2495 = vmul.f32 %v2441, %v2491
    %v2497 = vlaneseq
    %v2498 = vshrl.u32 %v2497, 7
    %v2499 = vsub.s32 0, %v2498
    %v2500 = vrot.slane %v2423, %v2499
    %v2501 = vlaneseq
    %v2502 = vshrl.u32 %v2501, 7
    %v2503 = vsub.s32 1, %v2502
    %v2504 = vrot.slane %v2423, %v2503
    %v2507 = vadd.f32 %v2494, %v2500
    %v2508 = vadd.f32 %v2495, %v2504
    %v2509 = vld [vmem:[#allocation8] sm:$0xff]
    %v2510 = vld [vmem:[#allocation8 + $0x8] sm:$0xff]
    %v2511 = vld [vmem:[#allocation8 + $0x10] sm:$0xff]
    %v2512 = vld [vmem:[#allocation8 + $0x18] sm:$0xff]
    %v2513 = vld [vmem:[#allocation8 + $0x20] sm:$0xff]
    %v2514 = vld [vmem:[#allocation8 + $0x28] sm:$0xff]
    %v2515 = vld [vmem:[#allocation8 + $0x30] sm:$0xff]
    %v2516 = vld [vmem:[#allocation8 + $0x38] sm:$0xff]
    %v2517 = vld [vmem:[#allocation8 + $0x40] sm:$0xff]
    %v2518 = vld [vmem:[#allocation8 + $0x48] sm:$0xff]
    %v2519 = vld [vmem:[#allocation8 + $0x50] sm:$0xff]
    %v2520 = vld [vmem:[#allocation8 + $0x58] sm:$0xff]
    %v2521 = vld [vmem:[#allocation8 + $0x60] sm:$0xff]
    %v2522 = vld [vmem:[#allocation8 + $0x68] sm:$0xff]
    %v2523 = vld [vmem:[#allocation8 + $0x70] sm:$0xff]
    %v2524 = vld [vmem:[#allocation8 + $0x78] sm:$0xff]
    %v2525 = vld [vmem:[#allocation8 + $0x80] sm:$0xff]
    %v2526 = vld [vmem:[#allocation8 + $0x88] sm:$0xff]
    %v2527 = vld [vmem:[#allocation8 + $0x90] sm:$0xff]
    %v2528 = vld [vmem:[#allocation8 + $0x98] sm:$0xff]
    %v2529 = vld [vmem:[#allocation8 + $0xa0] sm:$0xff]
    %v2530 = vld [vmem:[#allocation8 + $0xa8] sm:$0xff]
    %v2531 = vld [vmem:[#allocation8 + $0xb0] sm:$0xff]
    %v2532 = vld [vmem:[#allocation8 + $0xb8] sm:$0xff]
    %v2533 = vld [vmem:[#allocation8 + $0xc0] sm:$0xff]
    %v2534 = vld [vmem:[#allocation8 + $0xc8] sm:$0xff]
    %v2535 = vld [vmem:[#allocation8 + $0xd0] sm:$0xff]
    %v2536 = vld [vmem:[#allocation8 + $0xd8] sm:$0xff]
    %v2537 = vld [vmem:[#allocation8 + $0xe0] sm:$0xff]
    %v2538 = vld [vmem:[#allocation8 + $0xe8] sm:$0xff]
    %v2539 = vld [vmem:[#allocation8 + $0xf0] sm:$0xff]
    %v2540 = vld [vmem:[#allocation8 + $0xf8] sm:$0xff]
    %v2541 = vld [vmem:[#allocation10 + $0x22] sm:$0x1]
    %v2543 = vlaneseq
    %v2544 = vshrl.u32 %v2543, 7
    %v2545 = vsub.s32 0, %v2544
    %v2546 = vrot.slane %v2541, %v2545
    %2548 = vmatprep.subr.mxu0 0.0
    %2549 = vmatpush1.msra.mxu0 %v2524
    %2550 = vmatprep.subr.mxu0 0.0
    %2551 = vmatpush1.msra.mxu0 %v2523
    %2552 = vmatprep.subr.mxu0 0.0
    %2553 = vmatpush1.msra.mxu0 %v2522
    %2554 = vmatprep.subr.mxu0 0.0
    %2555 = vmatpush1.msra.mxu0 %v2521
    %2556 = vmatprep.subr.mxu0 0.0
    %2557 = vmatpush1.msra.mxu0 %v2520
    %2558 = vmatprep.subr.mxu0 0.0
    %2559 = vmatpush1.msra.mxu0 %v2519
    %2560 = vmatprep.subr.mxu0 0.0
    %2561 = vmatpush1.msra.mxu0 %v2518
    %2562 = vmatprep.subr.mxu0 0.0
    %2563 = vmatpush1.msra.mxu0 %v2517
    %2564 = vmatprep.subr.mxu0 0.0
    %2565 = vmatpush1.msra.mxu0 %v2516
    %2566 = vmatprep.subr.mxu0 0.0
    %2567 = vmatpush1.msra.mxu0 %v2515
    %2568 = vmatprep.subr.mxu0 0.0
    %2569 = vmatpush1.msra.mxu0 %v2514
    %2570 = vmatprep.subr.mxu0 0.0
    %2571 = vmatpush1.msra.mxu0 %v2513
    %2572 = vmatprep.subr.mxu0 0.0
    %2573 = vmatpush1.msra.mxu0 %v2512
    %2574 = vmatprep.subr.mxu0 0.0
    %2575 = vmatpush1.msra.mxu0 %v2511
    %2576 = vmatprep.subr.mxu0 0.0
    %2577 = vmatpush1.msra.mxu0 %v2510
    %2578 = vmatprep.subr.mxu0 0.0
    %2579 = vmatpush1.msra.mxu0 %v2509
    %2580 = vmatprep.subr.mxu0 0.0
    %2581 = vmatpush2.msra.mxu0 %v2540
    %2582 = vmatprep.subr.mxu0 0.0
    %2583 = vmatpush2.msra.mxu0 %v2539
    %2584 = vmatprep.subr.mxu0 0.0
    %2585 = vmatpush2.msra.mxu0 %v2538
    %2586 = vmatprep.subr.mxu0 0.0
    %2587 = vmatpush2.msra.mxu0 %v2537
    %2588 = vmatprep.subr.mxu0 0.0
    %2589 = vmatpush2.msra.mxu0 %v2536
    %2590 = vmatprep.subr.mxu0 0.0
    %2591 = vmatpush2.msra.mxu0 %v2535
    %2592 = vmatprep.subr.mxu0 0.0
    %2593 = vmatpush2.msra.mxu0 %v2534
    %2594 = vmatprep.subr.mxu0 0.0
    %2595 = vmatpush2.msra.mxu0 %v2533
    %2596 = vmatprep.subr.mxu0 0.0
    %2597 = vmatpush2.msra.mxu0 %v2532
    %2598 = vmatprep.subr.mxu0 0.0
    %2599 = vmatpush2.msra.mxu0 %v2531
    %2600 = vmatprep.subr.mxu0 0.0
    %2601 = vmatpush2.msra.mxu0 %v2530
    %2602 = vmatprep.subr.mxu0 0.0
    %2603 = vmatpush2.msra.mxu0 %v2529
    %2604 = vmatprep.subr.mxu0 0.0
    %2605 = vmatpush2.msra.mxu0 %v2528
    %2606 = vmatprep.subr.mxu0 0.0
    %2607 = vmatpush2.msra.mxu0 %v2527
    %2608 = vmatprep.subr.mxu0 0.0
    %2609 = vmatpush2.msra.mxu0 %v2526
    %2610 = vmatprep.subr.mxu0 0.0
    %2611 = vmatpush2.msra.mxu0 %v2525
    %2612 = vmatprep.mubr.f32.mxu0 %v2508
    %2613 = vmatmul.mubr.f32.gmra.mxu0 %v2507
    %v2614 = vpop.f32.mrf.mxu0
    %v2615 = vadd.f32 %v2546, %v2614
    %v2616 = vpop.f32.mrf.mxu0
    %2617 = vdwg.mxu0
    %v2618 = vand.u32 2147483647, %v2615
    %2619 = vst [vmem:[#allocation11] sm:$0x3] %v2618
    // Predicated region
    $region50: #{utilization_lstm_forward.1} parent=1 // pred_check
      _
    $region51: #{utilization_lstm_forward.1} parent=1 // pred_check_branch
      %2621 = sbr.rel (0) target = $region53
    $region52: #{utilization_lstm_forward.1} parent=1 // pred_region
      %s2623 = ssub.s32 32, 32
      %2624 = vsyncadd [#allocation4], %s2623
      %s2626 = sshll.u32 [#allocation11], 4
      %s2627 = int_to_ptr.vmem [resolvable:$true] %s2626
      %2629 = dma.vmem_to_hbm [thread:$0]  %s2627, 32, %s7, [#allocation4]
    $region53: #{utilization_lstm_forward.1} parent=1 // pred_fallthru
      _
    // Predicated region
    $region54: #{utilization_lstm_forward.1} parent=1 // pred_check
      _
    $region55: #{utilization_lstm_forward.1} parent=1 // pred_check_branch
      %2631 = sbr.rel (0) target = $region57
    $region56: #{utilization_lstm_forward.1} parent=1 // pred_region
      %2632 = dma.done [#allocation4], 32
    $region57: #{utilization_lstm_forward.1} parent=1 // pred_fallthru
      _
    %2633 = vsyncpa [#allocation3], 1
    %2634 = vsyncpa [#allocation6], 1
    %2635 = vsyncpa [#allocation9], 1
    %2636 = vsyncpa [#allocation4], 1

</llo_original>
